<compile_context>
chip_gen: v5e
topology: v5e:2x2
jax: 0.10.0
libtpu: 0.0.40
codegen_flags: <defaults>
</compile_context>

<pallas_src>
import jax
import jax.numpy as jnp
from jax import lax
from jax.experimental import pallas as pl
from jax.experimental.pallas import tpu as pltpu

D = 512            # emb_dim1 (fai_x = torch.ones(512, 1) in __init__)
N = 64             # batch size (I = torch.eye(64, 64) in get_em_param)
EMB_DIM2 = 64      # classifier input dim = columns of E1^T
NUM_CLASSES = 10
NS_BF16_ITERS = 8  # early Newton-Schulz iterations with bf16 MXU operands
NS_F32_ITERS = 6   # f32 refinement iterations (quadratic, self-correcting)

_VMEM = pl.BlockSpec(memory_space=pltpu.MemorySpace.VMEM)


def cqt_mgd_kernel(z_ref, x_ref, y_ref, fai_x_ref, fai_y_ref, wT_ref, b_ref,
                   vec_ref, out_ref):
    f32 = jnp.float32
    bf16 = jnp.bfloat16
    n, d = x_ref.shape
    nn = 2 * n

    x = x_ref[...]                                    # (N, D) batch-major
    y = y_ref[...]
    # Reciprocal-then-multiply of 1/fai (reference divides; no epsilon guard, same
    # as torch code — if fai_z drives fai <= 0 during EM this diverges like 1/fai).
    scaled_x = x * (1.0 / fai_x_ref[...])             # rows of B
    scaled_y = y * (1.0 / fai_y_ref[...])             # rows of C

    # gram = B@x + C@y  (N,N); z = [x;y] (torch frame) gives a standard-layout RHS.
    gram = (jnp.dot(scaled_x, z_ref[:d, :], preferred_element_type=f32)
            + jnp.dot(scaled_y, z_ref[d:, :], preferred_element_type=f32))

    ii = lax.broadcasted_iota(jnp.int32, (n, n), 0)
    jj = lax.broadcasted_iota(jnp.int32, (n, n), 1)
    eye_n = jnp.where(ii == jj, 1.0, 0.0).astype(f32)

    l_mat = eye_n + gram                              # L = I + B@x + C@y  (SPD)
    # Rank-1 correction: B@centeredM + C@centeredY = gram - rowmean(gram).
    rhs = gram - jnp.mean(gram, axis=1, keepdims=True)
    # Decoupled second inverse: E2 = cov @ M @ cov, M = rhs rhs^T + N*L (SPD),
    # so pinv(E2) = L @ inv(M) @ L; inv(L) and inv(M) only need gram.
    m_mat = lax.dot_general(rhs, rhs, (((1,), (1,)), ((), ())),
                            preferred_element_type=f32) + float(n) * l_mat

    # Pack L and M block-diagonally and invert both in ONE Newton-Schulz chain.
    # Block-diagonal structure is preserved exactly by the iteration when the
    # initial guess is block-diagonal (per-block Gershgorin scaling below).
    zero_nn = jnp.zeros((n, n), f32)
    packed = jnp.concatenate(
        [jnp.concatenate([l_mat, zero_nn], axis=1),
         jnp.concatenate([zero_nn, m_mat], axis=1)], axis=0)      # (2N, 2N)

    s_l = jnp.max(jnp.sum(jnp.abs(l_mat), axis=1, keepdims=True),
                  axis=0, keepdims=True)              # (1,1) >= lambda_max(L)
    s_m = jnp.max(jnp.sum(jnp.abs(m_mat), axis=1, keepdims=True),
                  axis=0, keepdims=True)              # (1,1) >= lambda_max(M)

    bi = lax.broadcasted_iota(jnp.int32, (nn, nn), 0)
    bj = lax.broadcasted_iota(jnp.int32, (nn, nn), 1)
    eye2 = jnp.where(bi == bj, 1.0, 0.0).astype(f32)
    two_eye2 = eye2 + eye2
    inv_s = jnp.where(bi < n, 1.0 / s_l, 1.0 / s_m)   # per-row-block scale
    x0 = jnp.where(bi == bj, inv_s, 0.0).astype(f32)  # blockdiag(I/s_l, I/s_m)

    packed_bf = packed.astype(bf16)                   # hoisted out of the loop

    def ns_bf16(_, xk):
        # bf16 only on MXU operands; accumulation and carry stay f32.
        ax = jnp.dot(packed_bf, xk.astype(bf16), preferred_element_type=f32)
        return jnp.dot(xk.astype(bf16), (two_eye2 - ax).astype(bf16),
                       preferred_element_type=f32)

    def ns_f32(_, xk):
        ax = jnp.dot(packed, xk, preferred_element_type=f32)
        return jnp.dot(xk, two_eye2 - ax, preferred_element_type=f32)

    xk = lax.fori_loop(0, NS_BF16_ITERS, ns_bf16, x0, unroll=True)
    xk = lax.fori_loop(0, NS_F32_ITERS, ns_f32, xk, unroll=True)

    cov = xk[:n, :n]          # inv(L)  == torch.linalg.pinv(L)   (L SPD)
    inv_m = xk[n:, n:]        # inv(M)

    # Means / centering / variances (off the NS critical path; biased mean of
    # squares, exactly as torch.mean(centered**2, dim=1)).
    mu_x = jnp.mean(x, axis=0, keepdims=True)         # (1, D)
    mu_y = jnp.mean(y, axis=0, keepdims=True)
    c_x = x - mu_x
    c_y = y - mu_y
    var_x = jnp.mean(c_x * c_x, axis=0, keepdims=True)
    var_y = jnp.mean(c_y * c_y, axis=0, keepdims=True)

    e1 = jnp.dot(cov, rhs, preferred_element_type=f32)                  # E1 (N,N)
    e2 = lax.dot_general(e1, e1, (((1,), (1,)), ((), ())),
                         preferred_element_type=f32) + float(n) * cov   # E1 E1^T + N cov
    # p = pinv(E2) @ E1 = L @ inv(M) @ L @ cov @ rhs = L @ inv(M) @ rhs  (exact).
    p = jnp.dot(l_mat, jnp.dot(inv_m, rhs, preferred_element_type=f32),
                preferred_element_type=f32)

    tq_x = jnp.dot(p, c_x, preferred_element_type=f32)      # T^T  (N, D)
    tq_y = jnp.dot(p, c_y, preferred_element_type=f32)      # Q^T
    tqe2_x = jnp.dot(e2, tq_x, preferred_element_type=f32)  # (T @ E2)^T  (E2 sym.)
    tqe2_y = jnp.dot(e2, tq_y, preferred_element_type=f32)

    fai_x_new = var_x - jnp.mean(tq_x * tqe2_x, axis=0, keepdims=True)
    fai_y_new = var_y - jnp.mean(tq_y * tqe2_y, axis=0, keepdims=True)

    vec_ref[0:1, 0:d] = mu_x                 # mu_z   (row 0, lane-aligned slabs)
    vec_ref[0:1, d:2 * d] = mu_y
    vec_ref[1:2, 0:d] = fai_x_new            # fai_z  (row 1)
    vec_ref[1:2, d:2 * d] = fai_y_new

    # classifier_layer(E1^T) = E1^T @ W^T + b   (output lane-padded to 128 cols).
    out_ref[...] = (jnp.dot(e1.T, wT_ref[...], preferred_element_type=f32)
                    + b_ref[...])


def cqt_mgd_forward(x_emb, y_emb, fai_x, fai_y, cls_w, cls_b):
    # TODO(synk): VGGVox2 / resnet backbones (BasicBlock, [2,2,2,2]) are not defined
    # in the provided source; x_emb / y_emb are the (batch, 512) embeddings they produce.
    f32 = jnp.float32
    n, d = x_emb.shape
    num_classes = cls_w.shape[0]
    c_pad = ((num_classes + 127) // 128) * 128

    x_emb = x_emb.astype(f32)
    y_emb = y_emb.astype(f32)
    # z = torch.cat((x, y), 0) is a required forward output; it is reused as the
    # standard-layout RHS of the in-kernel gram matmul (no extra transposes).
    z = jnp.concatenate([x_emb.T, y_emb.T], axis=0)                    # (2D, N)

    fai_x_row = fai_x.reshape(1, d).astype(f32)
    fai_y_row = fai_y.reshape(1, d).astype(f32)
    # TODO(synk): hoist this tiny padding out of the per-call path if the classifier
    # weights are static across calls.
    wT_pad = jnp.zeros((cls_w.shape[1], c_pad), f32).at[:, :num_classes].set(
        cls_w.T.astype(f32))
    b_pad = jnp.zeros((1, c_pad), f32).at[:, :num_classes].set(
        cls_b.astype(f32)[None, :])

    vec, out_pad = pl.pallas_call(
        cqt_mgd_kernel,
        out_shape=(jax.ShapeDtypeStruct((2, 2 * d), f32),    # row0: mu_z, row1: fai_z
                   jax.ShapeDtypeStruct((n, c_pad), f32)),   # padded classifier out
        in_specs=[_VMEM] * 7,
        out_specs=(_VMEM, _VMEM),
    )(z, x_emb, y_emb, fai_x_row, fai_y_row, wT_pad, b_pad)

    mu_z = vec[0]
    fai_z = vec[1]
    out = out_pad[:, :num_classes]
    return z, mu_z, fai_z, out


if __name__ == "__main__":
    key = jax.random.PRNGKey(0)
    k1, k2, k3, k4 = jax.random.split(key, 4)

    # Post-backbone embeddings (batch, emb_dim1) and deterministic parameters.
    x_emb = jax.random.normal(k1, (N, D), jnp.float32)
    y_emb = jax.random.normal(k2, (N, D), jnp.float32)
    fai_x = jnp.ones((D, 1), jnp.float32)       # as in module __init__
    fai_y = jnp.ones((D, 1), jnp.float32)
    cls_w = jax.random.normal(k3, (NUM_CLASSES, EMB_DIM2), jnp.float32) * 0.05
    cls_b = jax.random.normal(k4, (NUM_CLASSES,), jnp.float32) * 0.05

    z, mu_z, fai_z, out = jax.jit(cqt_mgd_forward)(
        x_emb, y_emb, fai_x, fai_y, cls_w, cls_b)
    jax.block_until_ready((z, mu_z, fai_z, out))

    assert z.shape == (2 * D, N)
    assert mu_z.shape == (2 * D,)
    assert fai_z.shape == (2 * D,)
    assert out.shape == (N, NUM_CLASSES)
    print("KERNEL_OK")
</pallas_src>

<mosaic_0001>
module attributes {stable_mosaic.version = 11 : i64} {
  func.func @cqt_mgd_kernel(%arg0: memref<1024x64xf32, #tpu.memory_space<vmem>>, %arg1: memref<64x512xf32, #tpu.memory_space<vmem>>, %arg2: memref<64x512xf32, #tpu.memory_space<vmem>>, %arg3: memref<1x512xf32, #tpu.memory_space<vmem>>, %arg4: memref<1x512xf32, #tpu.memory_space<vmem>>, %arg5: memref<64x128xf32, #tpu.memory_space<vmem>>, %arg6: memref<1x128xf32, #tpu.memory_space<vmem>>, %arg7: memref<2x1024xf32, #tpu.memory_space<vmem>>, %arg8: memref<64x128xf32, #tpu.memory_space<vmem>>) attributes {dimension_semantics = [], scalar_prefetch = 0 : i64, scratch_operands = 0 : i64, tpu.core_type = #tpu.core_type<tc>} {
    %c0 = arith.constant 0 : index
    %c0_0 = arith.constant 0 : index
    %0 = vector.load %arg1[%c0, %c0_0] : memref<64x512xf32, #tpu.memory_space<vmem>>, vector<64x512xf32>
    %c0_1 = arith.constant 0 : index
    %c0_2 = arith.constant 0 : index
    %1 = vector.load %arg2[%c0_1, %c0_2] : memref<64x512xf32, #tpu.memory_space<vmem>>, vector<64x512xf32>
    %c0_3 = arith.constant 0 : index
    %c0_4 = arith.constant 0 : index
    %2 = vector.load %arg3[%c0_3, %c0_4] : memref<1x512xf32, #tpu.memory_space<vmem>>, vector<1x512xf32>
    %cst = arith.constant 1.000000e+00 : f32
    %3 = vector.broadcast %cst : f32 to vector<1x512xf32>
    %4 = arith.divf %3, %2 : vector<1x512xf32>
    %5 = vector.broadcast %4 : vector<1x512xf32> to vector<64x512xf32>
    %6 = arith.mulf %0, %5 : vector<64x512xf32>
    %c0_5 = arith.constant 0 : index
    %c0_6 = arith.constant 0 : index
    %7 = vector.load %arg4[%c0_5, %c0_6] : memref<1x512xf32, #tpu.memory_space<vmem>>, vector<1x512xf32>
    %cst_7 = arith.constant 1.000000e+00 : f32
    %8 = vector.broadcast %cst_7 : f32 to vector<1x512xf32>
    %9 = arith.divf %8, %7 : vector<1x512xf32>
    %10 = vector.broadcast %9 : vector<1x512xf32> to vector<64x512xf32>
    %11 = arith.mulf %1, %10 : vector<64x512xf32>
    %c0_8 = arith.constant 0 : index
    %c0_9 = arith.constant 0 : index
    %12 = vector.load %arg0[%c0_8, %c0_9] : memref<1024x64xf32, #tpu.memory_space<vmem>>, vector<512x64xf32>
    %cst_10 = arith.constant dense<0.000000e+00> : vector<64x64xf32>
    %13 = tpu.matmul %6, %12, %cst_10 {dimension_numbers = #tpu.dot_dimension_numbers<[1], [0], [0], [1], [0, 0, 1, 1], [], []>} : vector<64x512xf32>, vector<512x64xf32>, vector<64x64xf32> -> vector<64x64xf32>
    %c512 = arith.constant 512 : index
    %c0_11 = arith.constant 0 : index
    %14 = vector.load %arg0[%c512, %c0_11] : memref<1024x64xf32, #tpu.memory_space<vmem>>, vector<512x64xf32>
    %cst_12 = arith.constant dense<0.000000e+00> : vector<64x64xf32>
    %15 = tpu.matmul %11, %14, %cst_12 {dimension_numbers = #tpu.dot_dimension_numbers<[1], [0], [0], [1], [0, 0, 1, 1], [], []>} : vector<64x512xf32>, vector<512x64xf32>, vector<64x64xf32> -> vector<64x64xf32>
    %16 = arith.addf %13, %15 : vector<64x64xf32>
    %17 = tpu.iota {dimensions = array<i32: 0>} : vector<64x64xi32>
    %18 = tpu.iota {dimensions = array<i32: 1>} : vector<64x64xi32>
    %19 = arith.cmpi eq, %17, %18 : vector<64x64xi32>
    %cst_13 = arith.constant 1.000000e+00 : f32
    %cst_14 = arith.constant 0.000000e+00 : f32
    %20 = vector.broadcast %cst_13 : f32 to vector<64x64xf32>
    %21 = vector.broadcast %cst_14 : f32 to vector<64x64xf32>
    %22 = arith.select %19, %20, %21 : vector<64x64xi1>, vector<64x64xf32>
    %23 = arith.addf %22, %16 : vector<64x64xf32>
    %cst_15 = arith.constant dense<0.000000e+00> : vector<64xf32>
    %24 = vector.multi_reduction <add>, %16, %cst_15 [1] : vector<64x64xf32> to vector<64xf32>
    %25 = vector.shape_cast %24 : vector<64xf32> to vector<64x1xf32>
    %cst_16 = arith.constant 6.400000e+01 : f32
    %26 = vector.broadcast %cst_16 : f32 to vector<64x1xf32>
    %27 = arith.divf %25, %26 : vector<64x1xf32>
    %28 = vector.broadcast %27 : vector<64x1xf32> to vector<64x64xf32>
    %29 = arith.subf %16, %28 : vector<64x64xf32>
    %cst_17 = arith.constant dense<0.000000e+00> : vector<64x64xf32>
    %30 = tpu.matmul %29, %29, %cst_17 {dimension_numbers = #tpu.dot_dimension_numbers<[1], [1], [0], [0], [0, 0, 1, 0], [], []>} : vector<64x64xf32>, vector<64x64xf32>, vector<64x64xf32> -> vector<64x64xf32>
    %cst_18 = arith.constant 6.400000e+01 : f32
    %31 = vector.broadcast %cst_18 : f32 to vector<64x64xf32>
    %32 = arith.mulf %31, %23 : vector<64x64xf32>
    %33 = arith.addf %30, %32 : vector<64x64xf32>
    %cst_19 = arith.constant 0.000000e+00 : f32
    %34 = vector.broadcast %cst_19 : f32 to vector<64x64xf32>
    %35 = tpu.concatenate %23, %34 in 1 : vector<64x64xf32>, vector<64x64xf32> -> vector<64x128xf32>
    %36 = tpu.concatenate %34, %33 in 1 : vector<64x64xf32>, vector<64x64xf32> -> vector<64x128xf32>
    %37 = tpu.concatenate %35, %36 in 0 : vector<64x128xf32>, vector<64x128xf32> -> vector<128x128xf32>
    %38 = math.absf %23 : vector<64x64xf32>
    %cst_20 = arith.constant dense<0.000000e+00> : vector<64xf32>
    %39 = vector.multi_reduction <add>, %38, %cst_20 [1] : vector<64x64xf32> to vector<64xf32>
    %40 = vector.shape_cast %39 : vector<64xf32> to vector<64x1xf32>
    %cst_21 = arith.constant dense<0xFF800000> : vector<1xf32>
    %41 = vector.multi_reduction <maximumf>, %40, %cst_21 [0] : vector<64x1xf32> to vector<1xf32>
    %42 = vector.shape_cast %41 : vector<1xf32> to vector<1x1xf32>
    %43 = math.absf %33 : vector<64x64xf32>
    %cst_22 = arith.constant dense<0.000000e+00> : vector<64xf32>
    %44 = vector.multi_reduction <add>, %43, %cst_22 [1] : vector<64x64xf32> to vector<64xf32>
    %45 = vector.shape_cast %44 : vector<64xf32> to vector<64x1xf32>
    %cst_23 = arith.constant dense<0xFF800000> : vector<1xf32>
    %46 = vector.multi_reduction <maximumf>, %45, %cst_23 [0] : vector<64x1xf32> to vector<1xf32>
    %47 = vector.shape_cast %46 : vector<1xf32> to vector<1x1xf32>
    %48 = tpu.iota {dimensions = array<i32: 0>} : vector<128x128xi32>
    %49 = tpu.iota {dimensions = array<i32: 1>} : vector<128x128xi32>
    %50 = arith.cmpi eq, %48, %49 : vector<128x128xi32>
    %cst_24 = arith.constant 1.000000e+00 : f32
    %cst_25 = arith.constant 0.000000e+00 : f32
    %51 = vector.broadcast %cst_24 : f32 to vector<128x128xf32>
    %52 = vector.broadcast %cst_25 : f32 to vector<128x128xf32>
    %53 = arith.select %50, %51, %52 : vector<128x128xi1>, vector<128x128xf32>
    %54 = arith.addf %53, %53 : vector<128x128xf32>
    %c64_i32 = arith.constant 64 : i32
    %55 = vector.broadcast %c64_i32 : i32 to vector<128x128xi32>
    %56 = arith.cmpi slt, %48, %55 : vector<128x128xi32>
    %cst_26 = arith.constant 1.000000e+00 : f32
    %57 = vector.broadcast %cst_26 : f32 to vector<1x1xf32>
    %58 = arith.divf %57, %42 : vector<1x1xf32>
    %cst_27 = arith.constant 1.000000e+00 : f32
    %59 = vector.broadcast %cst_27 : f32 to vector<1x1xf32>
    %60 = arith.divf %59, %47 : vector<1x1xf32>
    %61 = vector.shape_cast %58 : vector<1x1xf32> to vector<1x1xf32>
    %62 = vector.broadcast %61 : vector<1x1xf32> to vector<128x128xf32>
    %63 = vector.shape_cast %60 : vector<1x1xf32> to vector<1x1xf32>
    %64 = vector.broadcast %63 : vector<1x1xf32> to vector<128x128xf32>
    %65 = arith.select %56, %62, %64 : vector<128x128xi1>, vector<128x128xf32>
    %66 = arith.cmpi eq, %48, %49 : vector<128x128xi32>
    %cst_28 = arith.constant 0.000000e+00 : f32
    %67 = vector.broadcast %cst_28 : f32 to vector<128x128xf32>
    %68 = arith.select %66, %65, %67 : vector<128x128xi1>, vector<128x128xf32>
    %69 = arith.truncf %37 : vector<128x128xf32> to vector<128x128xbf16>
    %c0_i32 = arith.constant 0 : i32
    %70 = arith.truncf %68 : vector<128x128xf32> to vector<128x128xbf16>
    %cst_29 = arith.constant dense<0.000000e+00> : vector<128x128xf32>
    %71 = tpu.matmul %69, %70, %cst_29 {dimension_numbers = #tpu.dot_dimension_numbers<[1], [0], [0], [1], [0, 0, 1, 1], [], []>} : vector<128x128xbf16>, vector<128x128xbf16>, vector<128x128xf32> -> vector<128x128xf32>
    %72 = arith.truncf %68 : vector<128x128xf32> to vector<128x128xbf16>
    %73 = arith.subf %54, %71 : vector<128x128xf32>
    %74 = arith.truncf %73 : vector<128x128xf32> to vector<128x128xbf16>
    %cst_30 = arith.constant dense<0.000000e+00> : vector<128x128xf32>
    %75 = tpu.matmul %72, %74, %cst_30 {dimension_numbers = #tpu.dot_dimension_numbers<[1], [0], [0], [1], [0, 0, 1, 1], [], []>} : vector<128x128xbf16>, vector<128x128xbf16>, vector<128x128xf32> -> vector<128x128xf32>
    %c1_i32 = arith.constant 1 : i32
    %76 = arith.truncf %75 : vector<128x128xf32> to vector<128x128xbf16>
    %cst_31 = arith.constant dense<0.000000e+00> : vector<128x128xf32>
    %77 = tpu.matmul %69, %76, %cst_31 {dimension_numbers = #tpu.dot_dimension_numbers<[1], [0], [0], [1], [0, 0, 1, 1], [], []>} : vector<128x128xbf16>, vector<128x128xbf16>, vector<128x128xf32> -> vector<128x128xf32>
    %78 = arith.truncf %75 : vector<128x128xf32> to vector<128x128xbf16>
    %79 = arith.subf %54, %77 : vector<128x128xf32>
    %80 = arith.truncf %79 : vector<128x128xf32> to vector<128x128xbf16>
    %cst_32 = arith.constant dense<0.000000e+00> : vector<128x128xf32>
    %81 = tpu.matmul %78, %80, %cst_32 {dimension_numbers = #tpu.dot_dimension_numbers<[1], [0], [0], [1], [0, 0, 1, 1], [], []>} : vector<128x128xbf16>, vector<128x128xbf16>, vector<128x128xf32> -> vector<128x128xf32>
    %c2_i32 = arith.constant 2 : i32
    %82 = arith.truncf %81 : vector<128x128xf32> to vector<128x128xbf16>
    %cst_33 = arith.constant dense<0.000000e+00> : vector<128x128xf32>
    %83 = tpu.matmul %69, %82, %cst_33 {dimension_numbers = #tpu.dot_dimension_numbers<[1], [0], [0], [1], [0, 0, 1, 1], [], []>} : vector<128x128xbf16>, vector<128x128xbf16>, vector<128x128xf32> -> vector<128x128xf32>
    %84 = arith.truncf %81 : vector<128x128xf32> to vector<128x128xbf16>
    %85 = arith.subf %54, %83 : vector<128x128xf32>
    %86 = arith.truncf %85 : vector<128x128xf32> to vector<128x128xbf16>
    %cst_34 = arith.constant dense<0.000000e+00> : vector<128x128xf32>
    %87 = tpu.matmul %84, %86, %cst_34 {dimension_numbers = #tpu.dot_dimension_numbers<[1], [0], [0], [1], [0, 0, 1, 1], [], []>} : vector<128x128xbf16>, vector<128x128xbf16>, vector<128x128xf32> -> vector<128x128xf32>
    %c3_i32 = arith.constant 3 : i32
    %88 = arith.truncf %87 : vector<128x128xf32> to vector<128x128xbf16>
    %cst_35 = arith.constant dense<0.000000e+00> : vector<128x128xf32>
    %89 = tpu.matmul %69, %88, %cst_35 {dimension_numbers = #tpu.dot_dimension_numbers<[1], [0], [0], [1], [0, 0, 1, 1], [], []>} : vector<128x128xbf16>, vector<128x128xbf16>, vector<128x128xf32> -> vector<128x128xf32>
    %90 = arith.truncf %87 : vector<128x128xf32> to vector<128x128xbf16>
    %91 = arith.subf %54, %89 : vector<128x128xf32>
    %92 = arith.truncf %91 : vector<128x128xf32> to vector<128x128xbf16>
    %cst_36 = arith.constant dense<0.000000e+00> : vector<128x128xf32>
    %93 = tpu.matmul %90, %92, %cst_36 {dimension_numbers = #tpu.dot_dimension_numbers<[1], [0], [0], [1], [0, 0, 1, 1], [], []>} : vector<128x128xbf16>, vector<128x128xbf16>, vector<128x128xf32> -> vector<128x128xf32>
    %c4_i32 = arith.constant 4 : i32
    %94 = arith.truncf %93 : vector<128x128xf32> to vector<128x128xbf16>
    %cst_37 = arith.constant dense<0.000000e+00> : vector<128x128xf32>
    %95 = tpu.matmul %69, %94, %cst_37 {dimension_numbers = #tpu.dot_dimension_numbers<[1], [0], [0], [1], [0, 0, 1, 1], [], []>} : vector<128x128xbf16>, vector<128x128xbf16>, vector<128x128xf32> -> vector<128x128xf32>
    %96 = arith.truncf %93 : vector<128x128xf32> to vector<128x128xbf16>
    %97 = arith.subf %54, %95 : vector<128x128xf32>
    %98 = arith.truncf %97 : vector<128x128xf32> to vector<128x128xbf16>
    %cst_38 = arith.constant dense<0.000000e+00> : vector<128x128xf32>
    %99 = tpu.matmul %96, %98, %cst_38 {dimension_numbers = #tpu.dot_dimension_numbers<[1], [0], [0], [1], [0, 0, 1, 1], [], []>} : vector<128x128xbf16>, vector<128x128xbf16>, vector<128x128xf32> -> vector<128x128xf32>
    %c5_i32 = arith.constant 5 : i32
    %100 = arith.truncf %99 : vector<128x128xf32> to vector<128x128xbf16>
    %cst_39 = arith.constant dense<0.000000e+00> : vector<128x128xf32>
    %101 = tpu.matmul %69, %100, %cst_39 {dimension_numbers = #tpu.dot_dimension_numbers<[1], [0], [0], [1], [0, 0, 1, 1], [], []>} : vector<128x128xbf16>, vector<128x128xbf16>, vector<128x128xf32> -> vector<128x128xf32>
    %102 = arith.truncf %99 : vector<128x128xf32> to vector<128x128xbf16>
    %103 = arith.subf %54, %101 : vector<128x128xf32>
    %104 = arith.truncf %103 : vector<128x128xf32> to vector<128x128xbf16>
    %cst_40 = arith.constant dense<0.000000e+00> : vector<128x128xf32>
    %105 = tpu.matmul %102, %104, %cst_40 {dimension_numbers = #tpu.dot_dimension_numbers<[1], [0], [0], [1], [0, 0, 1, 1], [], []>} : vector<128x128xbf16>, vector<128x128xbf16>, vector<128x128xf32> -> vector<128x128xf32>
    %c6_i32 = arith.constant 6 : i32
    %106 = arith.truncf %105 : vector<128x128xf32> to vector<128x128xbf16>
    %cst_41 = arith.constant dense<0.000000e+00> : vector<128x128xf32>
    %107 = tpu.matmul %69, %106, %cst_41 {dimension_numbers = #tpu.dot_dimension_numbers<[1], [0], [0], [1], [0, 0, 1, 1], [], []>} : vector<128x128xbf16>, vector<128x128xbf16>, vector<128x128xf32> -> vector<128x128xf32>
    %108 = arith.truncf %105 : vector<128x128xf32> to vector<128x128xbf16>
    %109 = arith.subf %54, %107 : vector<128x128xf32>
    %110 = arith.truncf %109 : vector<128x128xf32> to vector<128x128xbf16>
    %cst_42 = arith.constant dense<0.000000e+00> : vector<128x128xf32>
    %111 = tpu.matmul %108, %110, %cst_42 {dimension_numbers = #tpu.dot_dimension_numbers<[1], [0], [0], [1], [0, 0, 1, 1], [], []>} : vector<128x128xbf16>, vector<128x128xbf16>, vector<128x128xf32> -> vector<128x128xf32>
    %c7_i32 = arith.constant 7 : i32
    %112 = arith.truncf %111 : vector<128x128xf32> to vector<128x128xbf16>
    %cst_43 = arith.constant dense<0.000000e+00> : vector<128x128xf32>
    %113 = tpu.matmul %69, %112, %cst_43 {dimension_numbers = #tpu.dot_dimension_numbers<[1], [0], [0], [1], [0, 0, 1, 1], [], []>} : vector<128x128xbf16>, vector<128x128xbf16>, vector<128x128xf32> -> vector<128x128xf32>
    %114 = arith.truncf %111 : vector<128x128xf32> to vector<128x128xbf16>
    %115 = arith.subf %54, %113 : vector<128x128xf32>
    %116 = arith.truncf %115 : vector<128x128xf32> to vector<128x128xbf16>
    %cst_44 = arith.constant dense<0.000000e+00> : vector<128x128xf32>
    %117 = tpu.matmul %114, %116, %cst_44 {dimension_numbers = #tpu.dot_dimension_numbers<[1], [0], [0], [1], [0, 0, 1, 1], [], []>} : vector<128x128xbf16>, vector<128x128xbf16>, vector<128x128xf32> -> vector<128x128xf32>
    %c0_i32_45 = arith.constant 0 : i32
    %cst_46 = arith.constant dense<0.000000e+00> : vector<128x128xf32>
    %118 = tpu.matmul %37, %117, %cst_46 {dimension_numbers = #tpu.dot_dimension_numbers<[1], [0], [0], [1], [0, 0, 1, 1], [], []>} : vector<128x128xf32>, vector<128x128xf32>, vector<128x128xf32> -> vector<128x128xf32>
    %119 = arith.subf %54, %118 : vector<128x128xf32>
    %cst_47 = arith.constant dense<0.000000e+00> : vector<128x128xf32>
    %120 = tpu.matmul %117, %119, %cst_47 {dimension_numbers = #tpu.dot_dimension_numbers<[1], [0], [0], [1], [0, 0, 1, 1], [], []>} : vector<128x128xf32>, vector<128x128xf32>, vector<128x128xf32> -> vector<128x128xf32>
    %c1_i32_48 = arith.constant 1 : i32
    %cst_49 = arith.constant dense<0.000000e+00> : vector<128x128xf32>
    %121 = tpu.matmul %37, %120, %cst_49 {dimension_numbers = #tpu.dot_dimension_numbers<[1], [0], [0], [1], [0, 0, 1, 1], [], []>} : vector<128x128xf32>, vector<128x128xf32>, vector<128x128xf32> -> vector<128x128xf32>
    %122 = arith.subf %54, %121 : vector<128x128xf32>
    %cst_50 = arith.constant dense<0.000000e+00> : vector<128x128xf32>
    %123 = tpu.matmul %120, %122, %cst_50 {dimension_numbers = #tpu.dot_dimension_numbers<[1], [0], [0], [1], [0, 0, 1, 1], [], []>} : vector<128x128xf32>, vector<128x128xf32>, vector<128x128xf32> -> vector<128x128xf32>
    %c2_i32_51 = arith.constant 2 : i32
    %cst_52 = arith.constant dense<0.000000e+00> : vector<128x128xf32>
    %124 = tpu.matmul %37, %123, %cst_52 {dimension_numbers = #tpu.dot_dimension_numbers<[1], [0], [0], [1], [0, 0, 1, 1], [], []>} : vector<128x128xf32>, vector<128x128xf32>, vector<128x128xf32> -> vector<128x128xf32>
    %125 = arith.subf %54, %124 : vector<128x128xf32>
    %cst_53 = arith.constant dense<0.000000e+00> : vector<128x128xf32>
    %126 = tpu.matmul %123, %125, %cst_53 {dimension_numbers = #tpu.dot_dimension_numbers<[1], [0], [0], [1], [0, 0, 1, 1], [], []>} : vector<128x128xf32>, vector<128x128xf32>, vector<128x128xf32> -> vector<128x128xf32>
    %c3_i32_54 = arith.constant 3 : i32
    %cst_55 = arith.constant dense<0.000000e+00> : vector<128x128xf32>
    %127 = tpu.matmul %37, %126, %cst_55 {dimension_numbers = #tpu.dot_dimension_numbers<[1], [0], [0], [1], [0, 0, 1, 1], [], []>} : vector<128x128xf32>, vector<128x128xf32>, vector<128x128xf32> -> vector<128x128xf32>
    %128 = arith.subf %54, %127 : vector<128x128xf32>
    %cst_56 = arith.constant dense<0.000000e+00> : vector<128x128xf32>
    %129 = tpu.matmul %126, %128, %cst_56 {dimension_numbers = #tpu.dot_dimension_numbers<[1], [0], [0], [1], [0, 0, 1, 1], [], []>} : vector<128x128xf32>, vector<128x128xf32>, vector<128x128xf32> -> vector<128x128xf32>
    %c4_i32_57 = arith.constant 4 : i32
    %cst_58 = arith.constant dense<0.000000e+00> : vector<128x128xf32>
    %130 = tpu.matmul %37, %129, %cst_58 {dimension_numbers = #tpu.dot_dimension_numbers<[1], [0], [0], [1], [0, 0, 1, 1], [], []>} : vector<128x128xf32>, vector<128x128xf32>, vector<128x128xf32> -> vector<128x128xf32>
    %131 = arith.subf %54, %130 : vector<128x128xf32>
    %cst_59 = arith.constant dense<0.000000e+00> : vector<128x128xf32>
    %132 = tpu.matmul %129, %131, %cst_59 {dimension_numbers = #tpu.dot_dimension_numbers<[1], [0], [0], [1], [0, 0, 1, 1], [], []>} : vector<128x128xf32>, vector<128x128xf32>, vector<128x128xf32> -> vector<128x128xf32>
    %c5_i32_60 = arith.constant 5 : i32
    %cst_61 = arith.constant dense<0.000000e+00> : vector<128x128xf32>
    %133 = tpu.matmul %37, %132, %cst_61 {dimension_numbers = #tpu.dot_dimension_numbers<[1], [0], [0], [1], [0, 0, 1, 1], [], []>} : vector<128x128xf32>, vector<128x128xf32>, vector<128x128xf32> -> vector<128x128xf32>
    %134 = arith.subf %54, %133 : vector<128x128xf32>
    %cst_62 = arith.constant dense<0.000000e+00> : vector<128x128xf32>
    %135 = tpu.matmul %132, %134, %cst_62 {dimension_numbers = #tpu.dot_dimension_numbers<[1], [0], [0], [1], [0, 0, 1, 1], [], []>} : vector<128x128xf32>, vector<128x128xf32>, vector<128x128xf32> -> vector<128x128xf32>
    %136 = vector.extract_strided_slice %135 {offsets = [0, 0], sizes = [64, 64], strides = [1, 1]} : vector<128x128xf32> to vector<64x64xf32>
    %137 = vector.extract_strided_slice %135 {offsets = [64, 64], sizes = [64, 64], strides = [1, 1]} : vector<128x128xf32> to vector<64x64xf32>
    %cst_63 = arith.constant dense<0.000000e+00> : vector<512xf32>
    %138 = vector.multi_reduction <add>, %0, %cst_63 [0] : vector<64x512xf32> to vector<512xf32>
    %139 = vector.shape_cast %138 : vector<512xf32> to vector<1x512xf32>
    %cst_64 = arith.constant 6.400000e+01 : f32
    %140 = vector.broadcast %cst_64 : f32 to vector<1x512xf32>
    %141 = arith.divf %139, %140 : vector<1x512xf32>
    %cst_65 = arith.constant dense<0.000000e+00> : vector<512xf32>
    %142 = vector.multi_reduction <add>, %1, %cst_65 [0] : vector<64x512xf32> to vector<512xf32>
    %143 = vector.shape_cast %142 : vector<512xf32> to vector<1x512xf32>
    %cst_66 = arith.constant 6.400000e+01 : f32
    %144 = vector.broadcast %cst_66 : f32 to vector<1x512xf32>
    %145 = arith.divf %143, %144 : vector<1x512xf32>
    %146 = vector.broadcast %141 : vector<1x512xf32> to vector<64x512xf32>
    %147 = arith.subf %0, %146 : vector<64x512xf32>
    %148 = vector.broadcast %145 : vector<1x512xf32> to vector<64x512xf32>
    %149 = arith.subf %1, %148 : vector<64x512xf32>
    %150 = arith.mulf %147, %147 : vector<64x512xf32>
    %cst_67 = arith.constant dense<0.000000e+00> : vector<512xf32>
    %151 = vector.multi_reduction <add>, %150, %cst_67 [0] : vector<64x512xf32> to vector<512xf32>
    %152 = vector.shape_cast %151 : vector<512xf32> to vector<1x512xf32>
    %cst_68 = arith.constant 6.400000e+01 : f32
    %153 = vector.broadcast %cst_68 : f32 to vector<1x512xf32>
    %154 = arith.divf %152, %153 : vector<1x512xf32>
    %155 = arith.mulf %149, %149 : vector<64x512xf32>
    %cst_69 = arith.constant dense<0.000000e+00> : vector<512xf32>
    %156 = vector.multi_reduction <add>, %155, %cst_69 [0] : vector<64x512xf32> to vector<512xf32>
    %157 = vector.shape_cast %156 : vector<512xf32> to vector<1x512xf32>
    %cst_70 = arith.constant 6.400000e+01 : f32
    %158 = vector.broadcast %cst_70 : f32 to vector<1x512xf32>
    %159 = arith.divf %157, %158 : vector<1x512xf32>
    %cst_71 = arith.constant dense<0.000000e+00> : vector<64x64xf32>
    %160 = tpu.matmul %136, %29, %cst_71 {dimension_numbers = #tpu.dot_dimension_numbers<[1], [0], [0], [1], [0, 0, 1, 1], [], []>} : vector<64x64xf32>, vector<64x64xf32>, vector<64x64xf32> -> vector<64x64xf32>
    %cst_72 = arith.constant dense<0.000000e+00> : vector<64x64xf32>
    %161 = tpu.matmul %160, %160, %cst_72 {dimension_numbers = #tpu.dot_dimension_numbers<[1], [1], [0], [0], [0, 0, 1, 0], [], []>} : vector<64x64xf32>, vector<64x64xf32>, vector<64x64xf32> -> vector<64x64xf32>
    %cst_73 = arith.constant 6.400000e+01 : f32
    %162 = vector.broadcast %cst_73 : f32 to vector<64x64xf32>
    %163 = arith.mulf %162, %136 : vector<64x64xf32>
    %164 = arith.addf %161, %163 : vector<64x64xf32>
    %cst_74 = arith.constant dense<0.000000e+00> : vector<64x64xf32>
    %165 = tpu.matmul %137, %29, %cst_74 {dimension_numbers = #tpu.dot_dimension_numbers<[1], [0], [0], [1], [0, 0, 1, 1], [], []>} : vector<64x64xf32>, vector<64x64xf32>, vector<64x64xf32> -> vector<64x64xf32>
    %cst_75 = arith.constant dense<0.000000e+00> : vector<64x64xf32>
    %166 = tpu.matmul %23, %165, %cst_75 {dimension_numbers = #tpu.dot_dimension_numbers<[1], [0], [0], [1], [0, 0, 1, 1], [], []>} : vector<64x64xf32>, vector<64x64xf32>, vector<64x64xf32> -> vector<64x64xf32>
    %cst_76 = arith.constant dense<0.000000e+00> : vector<64x512xf32>
    %167 = tpu.matmul %166, %147, %cst_76 {dimension_numbers = #tpu.dot_dimension_numbers<[1], [0], [0], [1], [0, 0, 1, 1], [], []>} : vector<64x64xf32>, vector<64x512xf32>, vector<64x512xf32> -> vector<64x512xf32>
    %cst_77 = arith.constant dense<0.000000e+00> : vector<64x512xf32>
    %168 = tpu.matmul %166, %149, %cst_77 {dimension_numbers = #tpu.dot_dimension_numbers<[1], [0], [0], [1], [0, 0, 1, 1], [], []>} : vector<64x64xf32>, vector<64x512xf32>, vector<64x512xf32> -> vector<64x512xf32>
    %cst_78 = arith.constant dense<0.000000e+00> : vector<64x512xf32>
    %169 = tpu.matmul %164, %167, %cst_78 {dimension_numbers = #tpu.dot_dimension_numbers<[1], [0], [0], [1], [0, 0, 1, 1], [], []>} : vector<64x64xf32>, vector<64x512xf32>, vector<64x512xf32> -> vector<64x512xf32>
    %cst_79 = arith.constant dense<0.000000e+00> : vector<64x512xf32>
    %170 = tpu.matmul %164, %168, %cst_79 {dimension_numbers = #tpu.dot_dimension_numbers<[1], [0], [0], [1], [0, 0, 1, 1], [], []>} : vector<64x64xf32>, vector<64x512xf32>, vector<64x512xf32> -> vector<64x512xf32>
    %171 = arith.mulf %167, %169 : vector<64x512xf32>
    %cst_80 = arith.constant dense<0.000000e+00> : vector<512xf32>
    %172 = vector.multi_reduction <add>, %171, %cst_80 [0] : vector<64x512xf32> to vector<512xf32>
    %173 = vector.shape_cast %172 : vector<512xf32> to vector<1x512xf32>
    %cst_81 = arith.constant 6.400000e+01 : f32
    %174 = vector.broadcast %cst_81 : f32 to vector<1x512xf32>
    %175 = arith.divf %173, %174 : vector<1x512xf32>
    %176 = arith.subf %154, %175 : vector<1x512xf32>
    %177 = arith.mulf %168, %170 : vector<64x512xf32>
    %cst_82 = arith.constant dense<0.000000e+00> : vector<512xf32>
    %178 = vector.multi_reduction <add>, %177, %cst_82 [0] : vector<64x512xf32> to vector<512xf32>
    %179 = vector.shape_cast %178 : vector<512xf32> to vector<1x512xf32>
    %cst_83 = arith.constant 6.400000e+01 : f32
    %180 = vector.broadcast %cst_83 : f32 to vector<1x512xf32>
    %181 = arith.divf %179, %180 : vector<1x512xf32>
    %182 = arith.subf %159, %181 : vector<1x512xf32>
    %c0_84 = arith.constant 0 : index
    %c0_85 = arith.constant 0 : index
    %183 = vector.load %arg7[%c0_84, %c0_85] : memref<2x1024xf32, #tpu.memory_space<vmem>>, vector<1x512xf32>
    tpu.vector_store %arg7[%c0_84, %c0_85], %141 {strides = array<i32>} : memref<2x1024xf32, #tpu.memory_space<vmem>>, vector<1x512xf32>,
    %c0_86 = arith.constant 0 : index
    %c512_87 = arith.constant 512 : index
    %184 = vector.load %arg7[%c0_86, %c512_87] : memref<2x1024xf32, #tpu.memory_space<vmem>>, vector<1x512xf32>
    tpu.vector_store %arg7[%c0_86, %c512_87], %145 {strides = array<i32>} : memref<2x1024xf32, #tpu.memory_space<vmem>>, vector<1x512xf32>,
    %c1 = arith.constant 1 : index
    %c0_88 = arith.constant 0 : index
    %185 = vector.load %arg7[%c1, %c0_88] : memref<2x1024xf32, #tpu.memory_space<vmem>>, vector<1x512xf32>
    tpu.vector_store %arg7[%c1, %c0_88], %176 {strides = array<i32>} : memref<2x1024xf32, #tpu.memory_space<vmem>>, vector<1x512xf32>,
    %c1_89 = arith.constant 1 : index
    %c512_90 = arith.constant 512 : index
    %186 = vector.load %arg7[%c1_89, %c512_90] : memref<2x1024xf32, #tpu.memory_space<vmem>>, vector<1x512xf32>
    tpu.vector_store %arg7[%c1_89, %c512_90], %182 {strides = array<i32>} : memref<2x1024xf32, #tpu.memory_space<vmem>>, vector<1x512xf32>,
    %187 = tpu.transpose %160, [1, 0] : vector<64x64xf32> -> vector<64x64xf32>
    %c0_91 = arith.constant 0 : index
    %c0_92 = arith.constant 0 : index
    %188 = vector.load %arg5[%c0_91, %c0_92] : memref<64x128xf32, #tpu.memory_space<vmem>>, vector<64x128xf32>
    %cst_93 = arith.constant dense<0.000000e+00> : vector<64x128xf32>
    %189 = tpu.matmul %187, %188, %cst_93 {dimension_numbers = #tpu.dot_dimension_numbers<[1], [0], [0], [1], [0, 0, 1, 1], [], []>} : vector<64x64xf32>, vector<64x128xf32>, vector<64x128xf32> -> vector<64x128xf32>
    %c0_94 = arith.constant 0 : index
    %c0_95 = arith.constant 0 : index
    %190 = vector.load %arg6[%c0_94, %c0_95] : memref<1x128xf32, #tpu.memory_space<vmem>>, vector<1x128xf32>
    %191 = vector.broadcast %190 : vector<1x128xf32> to vector<64x128xf32>
    %192 = arith.addf %189, %191 : vector<64x128xf32>
    %c0_96 = arith.constant 0 : index
    %c0_97 = arith.constant 0 : index
    %193 = vector.load %arg8[%c0_96, %c0_97] : memref<64x128xf32, #tpu.memory_space<vmem>>, vector<64x128xf32>
    tpu.vector_store %arg8[%c0_96, %c0_97], %192 {strides = array<i32>} : memref<64x128xf32, #tpu.memory_space<vmem>>, vector<64x128xf32>,
    return
  }
}

</mosaic_0001>

<llo_original>
// kernel: cqt_mgd_forward.1
$region0: #{cqt_mgd_forward.1}
  #allocation0 [shape = 'u32[]', space=smem, size = 0x4, offset = 0x4, fixed_abs, tag = 'smem constant byte address 0x4 - core index']
  #allocation1 [shape = 'u32[72,128]{1,0:T(1,128)}', space=vmem, size = 0x9000, scoped, tag = 'internal scratch']
  %s0 = inlined_call_operand.vmem [shape: f32[1024,64], index: 0, kind: input, shape index: {}]
  %s1 = inlined_call_operand.vmem [shape: f32[64,512], index: 1, kind: input, shape index: {}]
  %s2 = inlined_call_operand.vmem [shape: f32[64,512], index: 2, kind: input, shape index: {}]
  %s3 = inlined_call_operand.vmem [shape: f32[1,512], index: 3, kind: input, shape index: {}]
  %s4 = inlined_call_operand.vmem [shape: f32[1,512], index: 4, kind: input, shape index: {}]
  %s5 = inlined_call_operand.vmem [shape: f32[64,128], index: 5, kind: input, shape index: {}]
  %s6 = inlined_call_operand.vmem [shape: f32[1,128], index: 6, kind: input, shape index: {}]
  %s7 = inlined_call_operand.vmem [shape: f32[2,1024], index: 7, kind: output, shape index: {0}]
  %s8 = inlined_call_operand.vmem [shape: f32[64,128], index: 8, kind: output, shape index: {1}]
  %9 = xla_tuple %s7, %s8
  %s10 = sld [smem:[#allocation0]]
  $region46: #{cqt_mgd_forward.1} parent=0
    _
  %s12 = ssub.s32 1, %s10
  %s13 = scalar_select 0, %s12, %s10
  // Predicated region
  $region2: #{cqt_mgd_forward.1} parent=0 // pred_check
    _
  $region3: #{cqt_mgd_forward.1} parent=0 // pred_check_branch
    %15 = sbr.rel (0) target = $region5
  $region4: #{cqt_mgd_forward.1} parent=0 // pred_region
    _
  $region5: #{cqt_mgd_forward.1} parent=0 // pred_fallthru
    _
  // Predicated region
  $region6: #{cqt_mgd_forward.1} parent=0 // pred_check
    _
  $region7: #{cqt_mgd_forward.1} parent=0 // pred_check_branch
    %17 = sbr.rel (0) target = $region9
  $region8: #{cqt_mgd_forward.1} parent=0 // pred_region
    _
  $region9: #{cqt_mgd_forward.1} parent=0 // pred_fallthru
    _
  // Predicated region
  $region10: #{cqt_mgd_forward.1} parent=0 // pred_check
    _
  $region11: #{cqt_mgd_forward.1} parent=0 // pred_check_branch
    %19 = sbr.rel (0) target = $region13
  $region12: #{cqt_mgd_forward.1} parent=0 // pred_region
    _
  $region13: #{cqt_mgd_forward.1} parent=0 // pred_fallthru
    _
  // Predicated region
  $region14: #{cqt_mgd_forward.1} parent=0 // pred_check
    _
  $region15: #{cqt_mgd_forward.1} parent=0 // pred_check_branch
    %21 = sbr.rel (0) target = $region17
  $region16: #{cqt_mgd_forward.1} parent=0 // pred_region
    _
  $region17: #{cqt_mgd_forward.1} parent=0 // pred_fallthru
    _
  // Predicated region
  $region18: #{cqt_mgd_forward.1} parent=0 // pred_check
    _
  $region19: #{cqt_mgd_forward.1} parent=0 // pred_check_branch
    %23 = sbr.rel (0) target = $region21
  $region20: #{cqt_mgd_forward.1} parent=0 // pred_region
    _
  $region21: #{cqt_mgd_forward.1} parent=0 // pred_fallthru
    _
  // Predicated region
  $region22: #{cqt_mgd_forward.1} parent=0 // pred_check
    _
  $region23: #{cqt_mgd_forward.1} parent=0 // pred_check_branch
    %25 = sbr.rel (0) target = $region25
  $region24: #{cqt_mgd_forward.1} parent=0 // pred_region
    _
  $region25: #{cqt_mgd_forward.1} parent=0 // pred_fallthru
    _
  // Predicated region
  $region26: #{cqt_mgd_forward.1} parent=0 // pred_check
    _
  $region27: #{cqt_mgd_forward.1} parent=0 // pred_check_branch
    %27 = sbr.rel (0) target = $region29
  $region28: #{cqt_mgd_forward.1} parent=0 // pred_region
    _
  $region29: #{cqt_mgd_forward.1} parent=0 // pred_fallthru
    _
  %v28 = vld [vmem:[%s1] sm:$0xff]
  %v29 = vld [vmem:[%s1 + $0x8] sm:$0xff]
  %v30 = vld [vmem:[%s1 + $0x10] sm:$0xff]
  %v31 = vld [vmem:[%s1 + $0x18] sm:$0xff]
  %v32 = vld [vmem:[%s1 + $0x20] sm:$0xff]
  %v33 = vld [vmem:[%s1 + $0x28] sm:$0xff]
  %v34 = vld [vmem:[%s1 + $0x30] sm:$0xff]
  %v35 = vld [vmem:[%s1 + $0x38] sm:$0xff]
  %v36 = vld [vmem:[%s1 + $0x40] sm:$0xff]
  %v37 = vld [vmem:[%s1 + $0x48] sm:$0xff]
  %v38 = vld [vmem:[%s1 + $0x50] sm:$0xff]
  %v39 = vld [vmem:[%s1 + $0x58] sm:$0xff]
  %v40 = vld [vmem:[%s1 + $0x60] sm:$0xff]
  %v41 = vld [vmem:[%s1 + $0x68] sm:$0xff]
  %v42 = vld [vmem:[%s1 + $0x70] sm:$0xff]
  %v43 = vld [vmem:[%s1 + $0x78] sm:$0xff]
  %v44 = vld [vmem:[%s1 + $0x80] sm:$0xff]
  %v45 = vld [vmem:[%s1 + $0x88] sm:$0xff]
  %v46 = vld [vmem:[%s1 + $0x90] sm:$0xff]
  %v47 = vld [vmem:[%s1 + $0x98] sm:$0xff]
  %v48 = vld [vmem:[%s1 + $0xa0] sm:$0xff]
  %v49 = vld [vmem:[%s1 + $0xa8] sm:$0xff]
  %v50 = vld [vmem:[%s1 + $0xb0] sm:$0xff]
  %v51 = vld [vmem:[%s1 + $0xb8] sm:$0xff]
  %v52 = vld [vmem:[%s1 + $0xc0] sm:$0xff]
  %v53 = vld [vmem:[%s1 + $0xc8] sm:$0xff]
  %v54 = vld [vmem:[%s1 + $0xd0] sm:$0xff]
  %v55 = vld [vmem:[%s1 + $0xd8] sm:$0xff]
  %v56 = vld [vmem:[%s1 + $0xe0] sm:$0xff]
  %v57 = vld [vmem:[%s1 + $0xe8] sm:$0xff]
  %v58 = vld [vmem:[%s1 + $0xf0] sm:$0xff]
  %v59 = vld [vmem:[%s1 + $0xf8] sm:$0xff]
  %v60 = vld [vmem:[%s2] sm:$0xff]
  %v61 = vld [vmem:[%s2 + $0x8] sm:$0xff]
  %v62 = vld [vmem:[%s2 + $0x10] sm:$0xff]
  %v63 = vld [vmem:[%s2 + $0x18] sm:$0xff]
  %v64 = vld [vmem:[%s2 + $0x20] sm:$0xff]
  %v65 = vld [vmem:[%s2 + $0x28] sm:$0xff]
  %v66 = vld [vmem:[%s2 + $0x30] sm:$0xff]
  %v67 = vld [vmem:[%s2 + $0x38] sm:$0xff]
  %v68 = vld [vmem:[%s2 + $0x40] sm:$0xff]
  %v69 = vld [vmem:[%s2 + $0x48] sm:$0xff]
  %v70 = vld [vmem:[%s2 + $0x50] sm:$0xff]
  %v71 = vld [vmem:[%s2 + $0x58] sm:$0xff]
  %v72 = vld [vmem:[%s2 + $0x60] sm:$0xff]
  %v73 = vld [vmem:[%s2 + $0x68] sm:$0xff]
  %v74 = vld [vmem:[%s2 + $0x70] sm:$0xff]
  %v75 = vld [vmem:[%s2 + $0x78] sm:$0xff]
  %v76 = vld [vmem:[%s2 + $0x80] sm:$0xff]
  %v77 = vld [vmem:[%s2 + $0x88] sm:$0xff]
  %v78 = vld [vmem:[%s2 + $0x90] sm:$0xff]
  %v79 = vld [vmem:[%s2 + $0x98] sm:$0xff]
  %v80 = vld [vmem:[%s2 + $0xa0] sm:$0xff]
  %v81 = vld [vmem:[%s2 + $0xa8] sm:$0xff]
  %v82 = vld [vmem:[%s2 + $0xb0] sm:$0xff]
  %v83 = vld [vmem:[%s2 + $0xb8] sm:$0xff]
  %v84 = vld [vmem:[%s2 + $0xc0] sm:$0xff]
  %v85 = vld [vmem:[%s2 + $0xc8] sm:$0xff]
  %v86 = vld [vmem:[%s2 + $0xd0] sm:$0xff]
  %v87 = vld [vmem:[%s2 + $0xd8] sm:$0xff]
  %v88 = vld [vmem:[%s2 + $0xe0] sm:$0xff]
  %v89 = vld [vmem:[%s2 + $0xe8] sm:$0xff]
  %v90 = vld [vmem:[%s2 + $0xf0] sm:$0xff]
  %v91 = vld [vmem:[%s2 + $0xf8] sm:$0xff]
  %v92 = vld [vmem:[%s3] sm:$0xf]
  %v93 = vrcp.pop %v92
  %v94 = vmul.f32 %v92, %v93
  %v95 = vsub.f32 1.0, %v94
  %v96 = vmul.f32 %v93, %v95
  %v97 = vadd.f32 %v93, %v96
  %vm98 = vweird.f32 %v92
  %vm99 = vweird.f32 %v93
  %vm100 = vmor %vm98, %vm99
  %v101 = vsel %vm100, %v93, %v97
  %v102 = vand.u32 2147483647, %v92
  %vm103 = vcmp.eq.f32.partialorder %v102, 8.507059e+37
  %v104 = vand.u32 %v92, 2147483648
  %v105 = vor.u32 1.1754944e-38, %v104
  %v106 = vsel %vm103, %v105, %v101
  %v107 = vmul.f32 1.0, %v106
  %v109 = vperm.slane %v107, 0
  %v110 = vperm.slane %v107, 1
  %v111 = vperm.slane %v107, 2
  %v112 = vperm.slane %v107, 3
  %v117 = vmul.f32 %v28, %v109
  %v118 = vmul.f32 %v29, %v110
  %v119 = vmul.f32 %v30, %v111
  %v120 = vmul.f32 %v31, %v112
  %v121 = vmul.f32 %v32, %v109
  %v122 = vmul.f32 %v33, %v110
  %v123 = vmul.f32 %v34, %v111
  %v124 = vmul.f32 %v35, %v112
  %v125 = vmul.f32 %v36, %v109
  %v126 = vmul.f32 %v37, %v110
  %v127 = vmul.f32 %v38, %v111
  %v128 = vmul.f32 %v39, %v112
  %v129 = vmul.f32 %v40, %v109
  %v130 = vmul.f32 %v41, %v110
  %v131 = vmul.f32 %v42, %v111
  %v132 = vmul.f32 %v43, %v112
  %v133 = vmul.f32 %v44, %v109
  %v134 = vmul.f32 %v45, %v110
  %v135 = vmul.f32 %v46, %v111
  %v136 = vmul.f32 %v47, %v112
  %v137 = vmul.f32 %v48, %v109
  %v138 = vmul.f32 %v49, %v110
  %v139 = vmul.f32 %v50, %v111
  %v140 = vmul.f32 %v51, %v112
  %v141 = vmul.f32 %v52, %v109
  %v142 = vmul.f32 %v53, %v110
  %v143 = vmul.f32 %v54, %v111
  %v144 = vmul.f32 %v55, %v112
  %v145 = vmul.f32 %v56, %v109
  %v146 = vmul.f32 %v57, %v110
  %v147 = vmul.f32 %v58, %v111
  %v148 = vmul.f32 %v59, %v112
  %v149 = vld [vmem:[%s4] sm:$0xf]
  %v150 = vrcp.pop %v149
  %v151 = vmul.f32 %v149, %v150
  %v152 = vsub.f32 1.0, %v151
  %v153 = vmul.f32 %v150, %v152
  %v154 = vadd.f32 %v150, %v153
  %vm155 = vweird.f32 %v149
  %vm156 = vweird.f32 %v150
  %vm157 = vmor %vm155, %vm156
  %v158 = vsel %vm157, %v150, %v154
  %v159 = vand.u32 2147483647, %v149
  %vm160 = vcmp.eq.f32.partialorder %v159, 8.507059e+37
  %v161 = vand.u32 %v149, 2147483648
  %v162 = vor.u32 1.1754944e-38, %v161
  %v163 = vsel %vm160, %v162, %v158
  %v164 = vmul.f32 1.0, %v163
  %v166 = vperm.slane %v164, 0
  %v167 = vperm.slane %v164, 1
  %v168 = vperm.slane %v164, 2
  %v169 = vperm.slane %v164, 3
  %v174 = vmul.f32 %v60, %v166
  %v175 = vmul.f32 %v61, %v167
  %v176 = vmul.f32 %v62, %v168
  %v177 = vmul.f32 %v63, %v169
  %v178 = vmul.f32 %v64, %v166
  %v179 = vmul.f32 %v65, %v167
  %v180 = vmul.f32 %v66, %v168
  %v181 = vmul.f32 %v67, %v169
  %v182 = vmul.f32 %v68, %v166
  %v183 = vmul.f32 %v69, %v167
  %v184 = vmul.f32 %v70, %v168
  %v185 = vmul.f32 %v71, %v169
  %v186 = vmul.f32 %v72, %v166
  %v187 = vmul.f32 %v73, %v167
  %v188 = vmul.f32 %v74, %v168
  %v189 = vmul.f32 %v75, %v169
  %v190 = vmul.f32 %v76, %v166
  %v191 = vmul.f32 %v77, %v167
  %v192 = vmul.f32 %v78, %v168
  %v193 = vmul.f32 %v79, %v169
  %v194 = vmul.f32 %v80, %v166
  %v195 = vmul.f32 %v81, %v167
  %v196 = vmul.f32 %v82, %v168
  %v197 = vmul.f32 %v83, %v169
  %v198 = vmul.f32 %v84, %v166
  %v199 = vmul.f32 %v85, %v167
  %v200 = vmul.f32 %v86, %v168
  %v201 = vmul.f32 %v87, %v169
  %v202 = vmul.f32 %v88, %v166
  %v203 = vmul.f32 %v89, %v167
  %v204 = vmul.f32 %v90, %v168
  %v205 = vmul.f32 %v91, %v169
  %v206 = vld [vmem:[%s0] sm:$0xff]
  %v207 = vld [vmem:[%s0 + $0x8] sm:$0xff]
  %v208 = vld [vmem:[%s0 + $0x10] sm:$0xff]
  %v209 = vld [vmem:[%s0 + $0x18] sm:$0xff]
  %v210 = vld [vmem:[%s0 + $0x20] sm:$0xff]
  %v211 = vld [vmem:[%s0 + $0x28] sm:$0xff]
  %v212 = vld [vmem:[%s0 + $0x30] sm:$0xff]
  %v213 = vld [vmem:[%s0 + $0x38] sm:$0xff]
  %v214 = vld [vmem:[%s0 + $0x40] sm:$0xff]
  %v215 = vld [vmem:[%s0 + $0x48] sm:$0xff]
  %v216 = vld [vmem:[%s0 + $0x50] sm:$0xff]
  %v217 = vld [vmem:[%s0 + $0x58] sm:$0xff]
  %v218 = vld [vmem:[%s0 + $0x60] sm:$0xff]
  %v219 = vld [vmem:[%s0 + $0x68] sm:$0xff]
  %v220 = vld [vmem:[%s0 + $0x70] sm:$0xff]
  %v221 = vld [vmem:[%s0 + $0x78] sm:$0xff]
  %v222 = vld [vmem:[%s0 + $0x80] sm:$0xff]
  %v223 = vld [vmem:[%s0 + $0x88] sm:$0xff]
  %v224 = vld [vmem:[%s0 + $0x90] sm:$0xff]
  %v225 = vld [vmem:[%s0 + $0x98] sm:$0xff]
  %v226 = vld [vmem:[%s0 + $0xa0] sm:$0xff]
  %v227 = vld [vmem:[%s0 + $0xa8] sm:$0xff]
  %v228 = vld [vmem:[%s0 + $0xb0] sm:$0xff]
  %v229 = vld [vmem:[%s0 + $0xb8] sm:$0xff]
  %v230 = vld [vmem:[%s0 + $0xc0] sm:$0xff]
  %v231 = vld [vmem:[%s0 + $0xc8] sm:$0xff]
  %v232 = vld [vmem:[%s0 + $0xd0] sm:$0xff]
  %v233 = vld [vmem:[%s0 + $0xd8] sm:$0xff]
  %v234 = vld [vmem:[%s0 + $0xe0] sm:$0xff]
  %v235 = vld [vmem:[%s0 + $0xe8] sm:$0xff]
  %v236 = vld [vmem:[%s0 + $0xf0] sm:$0xff]
  %v237 = vld [vmem:[%s0 + $0xf8] sm:$0xff]
  %v238 = vld [vmem:[%s0 + $0x100] sm:$0xff]
  %v239 = vld [vmem:[%s0 + $0x108] sm:$0xff]
  %v240 = vld [vmem:[%s0 + $0x110] sm:$0xff]
  %v241 = vld [vmem:[%s0 + $0x118] sm:$0xff]
  %v242 = vld [vmem:[%s0 + $0x120] sm:$0xff]
  %v243 = vld [vmem:[%s0 + $0x128] sm:$0xff]
  %v244 = vld [vmem:[%s0 + $0x130] sm:$0xff]
  %v245 = vld [vmem:[%s0 + $0x138] sm:$0xff]
  %v246 = vld [vmem:[%s0 + $0x140] sm:$0xff]
  %v247 = vld [vmem:[%s0 + $0x148] sm:$0xff]
  %v248 = vld [vmem:[%s0 + $0x150] sm:$0xff]
  %v249 = vld [vmem:[%s0 + $0x158] sm:$0xff]
  %v250 = vld [vmem:[%s0 + $0x160] sm:$0xff]
  %v251 = vld [vmem:[%s0 + $0x168] sm:$0xff]
  %v252 = vld [vmem:[%s0 + $0x170] sm:$0xff]
  %v253 = vld [vmem:[%s0 + $0x178] sm:$0xff]
  %v254 = vld [vmem:[%s0 + $0x180] sm:$0xff]
  %v255 = vld [vmem:[%s0 + $0x188] sm:$0xff]
  %v256 = vld [vmem:[%s0 + $0x190] sm:$0xff]
  %v257 = vld [vmem:[%s0 + $0x198] sm:$0xff]
  %v258 = vld [vmem:[%s0 + $0x1a0] sm:$0xff]
  %v259 = vld [vmem:[%s0 + $0x1a8] sm:$0xff]
  %v260 = vld [vmem:[%s0 + $0x1b0] sm:$0xff]
  %v261 = vld [vmem:[%s0 + $0x1b8] sm:$0xff]
  %v262 = vld [vmem:[%s0 + $0x1c0] sm:$0xff]
  %v263 = vld [vmem:[%s0 + $0x1c8] sm:$0xff]
  %v264 = vld [vmem:[%s0 + $0x1d0] sm:$0xff]
  %v265 = vld [vmem:[%s0 + $0x1d8] sm:$0xff]
  %v266 = vld [vmem:[%s0 + $0x1e0] sm:$0xff]
  %v267 = vld [vmem:[%s0 + $0x1e8] sm:$0xff]
  %v268 = vld [vmem:[%s0 + $0x1f0] sm:$0xff]
  %v269 = vld [vmem:[%s0 + $0x1f8] sm:$0xff]
  %v270 = vld [vmem:[%s0 + $0x200] sm:$0xff]
  %v271 = vld [vmem:[%s0 + $0x208] sm:$0xff]
  %v272 = vld [vmem:[%s0 + $0x210] sm:$0xff]
  %v273 = vld [vmem:[%s0 + $0x218] sm:$0xff]
  %v274 = vld [vmem:[%s0 + $0x220] sm:$0xff]
  %v275 = vld [vmem:[%s0 + $0x228] sm:$0xff]
  %v276 = vld [vmem:[%s0 + $0x230] sm:$0xff]
  %v277 = vld [vmem:[%s0 + $0x238] sm:$0xff]
  %v278 = vld [vmem:[%s0 + $0x240] sm:$0xff]
  %v279 = vld [vmem:[%s0 + $0x248] sm:$0xff]
  %v280 = vld [vmem:[%s0 + $0x250] sm:$0xff]
  %v281 = vld [vmem:[%s0 + $0x258] sm:$0xff]
  %v282 = vld [vmem:[%s0 + $0x260] sm:$0xff]
  %v283 = vld [vmem:[%s0 + $0x268] sm:$0xff]
  %v284 = vld [vmem:[%s0 + $0x270] sm:$0xff]
  %v285 = vld [vmem:[%s0 + $0x278] sm:$0xff]
  %v286 = vld [vmem:[%s0 + $0x280] sm:$0xff]
  %v287 = vld [vmem:[%s0 + $0x288] sm:$0xff]
  %v288 = vld [vmem:[%s0 + $0x290] sm:$0xff]
  %v289 = vld [vmem:[%s0 + $0x298] sm:$0xff]
  %v290 = vld [vmem:[%s0 + $0x2a0] sm:$0xff]
  %v291 = vld [vmem:[%s0 + $0x2a8] sm:$0xff]
  %v292 = vld [vmem:[%s0 + $0x2b0] sm:$0xff]
  %v293 = vld [vmem:[%s0 + $0x2b8] sm:$0xff]
  %v294 = vld [vmem:[%s0 + $0x2c0] sm:$0xff]
  %v295 = vld [vmem:[%s0 + $0x2c8] sm:$0xff]
  %v296 = vld [vmem:[%s0 + $0x2d0] sm:$0xff]
  %v297 = vld [vmem:[%s0 + $0x2d8] sm:$0xff]
  %v298 = vld [vmem:[%s0 + $0x2e0] sm:$0xff]
  %v299 = vld [vmem:[%s0 + $0x2e8] sm:$0xff]
  %v300 = vld [vmem:[%s0 + $0x2f0] sm:$0xff]
  %v301 = vld [vmem:[%s0 + $0x2f8] sm:$0xff]
  %v302 = vld [vmem:[%s0 + $0x300] sm:$0xff]
  %v303 = vld [vmem:[%s0 + $0x308] sm:$0xff]
  %v304 = vld [vmem:[%s0 + $0x310] sm:$0xff]
  %v305 = vld [vmem:[%s0 + $0x318] sm:$0xff]
  %v306 = vld [vmem:[%s0 + $0x320] sm:$0xff]
  %v307 = vld [vmem:[%s0 + $0x328] sm:$0xff]
  %v308 = vld [vmem:[%s0 + $0x330] sm:$0xff]
  %v309 = vld [vmem:[%s0 + $0x338] sm:$0xff]
  %v310 = vld [vmem:[%s0 + $0x340] sm:$0xff]
  %v311 = vld [vmem:[%s0 + $0x348] sm:$0xff]
  %v312 = vld [vmem:[%s0 + $0x350] sm:$0xff]
  %v313 = vld [vmem:[%s0 + $0x358] sm:$0xff]
  %v314 = vld [vmem:[%s0 + $0x360] sm:$0xff]
  %v315 = vld [vmem:[%s0 + $0x368] sm:$0xff]
  %v316 = vld [vmem:[%s0 + $0x370] sm:$0xff]
  %v317 = vld [vmem:[%s0 + $0x378] sm:$0xff]
  %v318 = vld [vmem:[%s0 + $0x380] sm:$0xff]
  %v319 = vld [vmem:[%s0 + $0x388] sm:$0xff]
  %v320 = vld [vmem:[%s0 + $0x390] sm:$0xff]
  %v321 = vld [vmem:[%s0 + $0x398] sm:$0xff]
  %v322 = vld [vmem:[%s0 + $0x3a0] sm:$0xff]
  %v323 = vld [vmem:[%s0 + $0x3a8] sm:$0xff]
  %v324 = vld [vmem:[%s0 + $0x3b0] sm:$0xff]
  %v325 = vld [vmem:[%s0 + $0x3b8] sm:$0xff]
  %v326 = vld [vmem:[%s0 + $0x3c0] sm:$0xff]
  %v327 = vld [vmem:[%s0 + $0x3c8] sm:$0xff]
  %v328 = vld [vmem:[%s0 + $0x3d0] sm:$0xff]
  %v329 = vld [vmem:[%s0 + $0x3d8] sm:$0xff]
  %v330 = vld [vmem:[%s0 + $0x3e0] sm:$0xff]
  %v331 = vld [vmem:[%s0 + $0x3e8] sm:$0xff]
  %v332 = vld [vmem:[%s0 + $0x3f0] sm:$0xff]
  %v333 = vld [vmem:[%s0 + $0x3f8] sm:$0xff]
  %334 = vmatpush.msra.mxu0 %v285
  %335 = vmatpush.msra.mxu0 %v284
  %336 = vmatpush.msra.mxu0 %v283
  %337 = vmatpush.msra.mxu0 %v282
  %338 = vmatpush.msra.mxu0 %v281
  %339 = vmatpush.msra.mxu0 %v280
  %340 = vmatpush.msra.mxu0 %v279
  %341 = vmatpush.msra.mxu0 %v278
  %342 = vmatpush.msra.mxu0 %v277
  %343 = vmatpush.msra.mxu0 %v276
  %344 = vmatpush.msra.mxu0 %v275
  %345 = vmatpush.msra.mxu0 %v274
  %346 = vmatpush.msra.mxu0 %v273
  %347 = vmatpush.msra.mxu0 %v272
  %348 = vmatpush.msra.mxu0 %v271
  %349 = vmatpush.msra.mxu0 %v270
  %350 = vmatmul.f32.gmra.mxu0 %v174
  %v351 = vpop.f32.mrf.mxu0
  %v352 = vadd.f32 0.0, %v351
  %353 = vmatmul.f32.gmra.mxu0 %v178
  %v354 = vpop.f32.mrf.mxu0
  %v355 = vadd.f32 0.0, %v354
  %356 = vmatmul.f32.gmra.mxu0 %v182
  %v357 = vpop.f32.mrf.mxu0
  %v358 = vadd.f32 0.0, %v357
  %359 = vmatmul.f32.gmra.mxu0 %v186
  %v360 = vpop.f32.mrf.mxu0
  %v361 = vadd.f32 0.0, %v360
  %362 = vmatmul.f32.gmra.mxu0 %v190
  %v363 = vpop.f32.mrf.mxu0
  %v364 = vadd.f32 0.0, %v363
  %365 = vmatmul.f32.gmra.mxu0 %v194
  %v366 = vpop.f32.mrf.mxu0
  %v367 = vadd.f32 0.0, %v366
  %368 = vmatmul.f32.gmra.mxu0 %v198
  %v369 = vpop.f32.mrf.mxu0
  %v370 = vadd.f32 0.0, %v369
  %371 = vmatmul.f32.gmra.mxu0 %v202
  %v372 = vpop.f32.mrf.mxu0
  %v373 = vadd.f32 0.0, %v372
  %374 = vdwg.mxu0
  %375 = vmatpush.msra.mxu0 %v301
  %376 = vmatpush.msra.mxu0 %v300
  %377 = vmatpush.msra.mxu0 %v299
  %378 = vmatpush.msra.mxu0 %v298
  %379 = vmatpush.msra.mxu0 %v297
  %380 = vmatpush.msra.mxu0 %v296
  %381 = vmatpush.msra.mxu0 %v295
  %382 = vmatpush.msra.mxu0 %v294
  %383 = vmatpush.msra.mxu0 %v293
  %384 = vmatpush.msra.mxu0 %v292
  %385 = vmatpush.msra.mxu0 %v291
  %386 = vmatpush.msra.mxu0 %v290
  %387 = vmatpush.msra.mxu0 %v289
  %388 = vmatpush.msra.mxu0 %v288
  %389 = vmatpush.msra.mxu0 %v287
  %390 = vmatpush.msra.mxu0 %v286
  %391 = vmatmul.f32.gmra.mxu0 %v175
  %v392 = vpop.f32.mrf.mxu0
  %v393 = vadd.f32 %v352, %v392
  %394 = vmatmul.f32.gmra.mxu0 %v179
  %v395 = vpop.f32.mrf.mxu0
  %v396 = vadd.f32 %v355, %v395
  %397 = vmatmul.f32.gmra.mxu0 %v183
  %v398 = vpop.f32.mrf.mxu0
  %v399 = vadd.f32 %v358, %v398
  %400 = vmatmul.f32.gmra.mxu0 %v187
  %v401 = vpop.f32.mrf.mxu0
  %v402 = vadd.f32 %v361, %v401
  %403 = vmatmul.f32.gmra.mxu0 %v191
  %v404 = vpop.f32.mrf.mxu0
  %v405 = vadd.f32 %v364, %v404
  %406 = vmatmul.f32.gmra.mxu0 %v195
  %v407 = vpop.f32.mrf.mxu0
  %v408 = vadd.f32 %v367, %v407
  %409 = vmatmul.f32.gmra.mxu0 %v199
  %v410 = vpop.f32.mrf.mxu0
  %v411 = vadd.f32 %v370, %v410
  %412 = vmatmul.f32.gmra.mxu0 %v203
  %v413 = vpop.f32.mrf.mxu0
  %v414 = vadd.f32 %v373, %v413
  %415 = vdwg.mxu0
  %416 = vmatpush.msra.mxu0 %v317
  %417 = vmatpush.msra.mxu0 %v316
  %418 = vmatpush.msra.mxu0 %v315
  %419 = vmatpush.msra.mxu0 %v314
  %420 = vmatpush.msra.mxu0 %v313
  %421 = vmatpush.msra.mxu0 %v312
  %422 = vmatpush.msra.mxu0 %v311
  %423 = vmatpush.msra.mxu0 %v310
  %424 = vmatpush.msra.mxu0 %v309
  %425 = vmatpush.msra.mxu0 %v308
  %426 = vmatpush.msra.mxu0 %v307
  %427 = vmatpush.msra.mxu0 %v306
  %428 = vmatpush.msra.mxu0 %v305
  %429 = vmatpush.msra.mxu0 %v304
  %430 = vmatpush.msra.mxu0 %v303
  %431 = vmatpush.msra.mxu0 %v302
  %432 = vmatmul.f32.gmra.mxu0 %v176
  %v433 = vpop.f32.mrf.mxu0
  %v434 = vadd.f32 %v393, %v433
  %435 = vmatmul.f32.gmra.mxu0 %v180
  %v436 = vpop.f32.mrf.mxu0
  %v437 = vadd.f32 %v396, %v436
  %438 = vmatmul.f32.gmra.mxu0 %v184
  %v439 = vpop.f32.mrf.mxu0
  %v440 = vadd.f32 %v399, %v439
  %441 = vmatmul.f32.gmra.mxu0 %v188
  %v442 = vpop.f32.mrf.mxu0
  %v443 = vadd.f32 %v402, %v442
  %444 = vmatmul.f32.gmra.mxu0 %v192
  %v445 = vpop.f32.mrf.mxu0
  %v446 = vadd.f32 %v405, %v445
  %447 = vmatmul.f32.gmra.mxu0 %v196
  %v448 = vpop.f32.mrf.mxu0
  %v449 = vadd.f32 %v408, %v448
  %450 = vmatmul.f32.gmra.mxu0 %v200
  %v451 = vpop.f32.mrf.mxu0
  %v452 = vadd.f32 %v411, %v451
  %453 = vmatmul.f32.gmra.mxu0 %v204
  %v454 = vpop.f32.mrf.mxu0
  %v455 = vadd.f32 %v414, %v454
  %456 = vdwg.mxu0
  %457 = vmatpush.msra.mxu0 %v333
  %458 = vmatpush.msra.mxu0 %v332
  %459 = vmatpush.msra.mxu0 %v331
  %460 = vmatpush.msra.mxu0 %v330
  %461 = vmatpush.msra.mxu0 %v329
  %462 = vmatpush.msra.mxu0 %v328
  %463 = vmatpush.msra.mxu0 %v327
  %464 = vmatpush.msra.mxu0 %v326
  %465 = vmatpush.msra.mxu0 %v325
  %466 = vmatpush.msra.mxu0 %v324
  %467 = vmatpush.msra.mxu0 %v323
  %468 = vmatpush.msra.mxu0 %v322
  %469 = vmatpush.msra.mxu0 %v321
  %470 = vmatpush.msra.mxu0 %v320
  %471 = vmatpush.msra.mxu0 %v319
  %472 = vmatpush.msra.mxu0 %v318
  %473 = vmatmul.f32.gmra.mxu0 %v177
  %v474 = vpop.f32.mrf.mxu0
  %v475 = vadd.f32 %v434, %v474
  %476 = vmatmul.f32.gmra.mxu0 %v181
  %v477 = vpop.f32.mrf.mxu0
  %v478 = vadd.f32 %v437, %v477
  %479 = vmatmul.f32.gmra.mxu0 %v185
  %v480 = vpop.f32.mrf.mxu0
  %v481 = vadd.f32 %v440, %v480
  %482 = vmatmul.f32.gmra.mxu0 %v189
  %v483 = vpop.f32.mrf.mxu0
  %v484 = vadd.f32 %v443, %v483
  %485 = vmatmul.f32.gmra.mxu0 %v193
  %v486 = vpop.f32.mrf.mxu0
  %v487 = vadd.f32 %v446, %v486
  %488 = vmatmul.f32.gmra.mxu0 %v197
  %v489 = vpop.f32.mrf.mxu0
  %v490 = vadd.f32 %v449, %v489
  %491 = vmatmul.f32.gmra.mxu0 %v201
  %v492 = vpop.f32.mrf.mxu0
  %v493 = vadd.f32 %v452, %v492
  %494 = vmatmul.f32.gmra.mxu0 %v205
  %v495 = vpop.f32.mrf.mxu0
  %v496 = vadd.f32 %v455, %v495
  %497 = vdwg.mxu0
  %498 = vmatpush.msra.mxu0 %v221
  %499 = vmatpush.msra.mxu0 %v220
  %500 = vmatpush.msra.mxu0 %v219
  %501 = vmatpush.msra.mxu0 %v218
  %502 = vmatpush.msra.mxu0 %v217
  %503 = vmatpush.msra.mxu0 %v216
  %504 = vmatpush.msra.mxu0 %v215
  %505 = vmatpush.msra.mxu0 %v214
  %506 = vmatpush.msra.mxu0 %v213
  %507 = vmatpush.msra.mxu0 %v212
  %508 = vmatpush.msra.mxu0 %v211
  %509 = vmatpush.msra.mxu0 %v210
  %510 = vmatpush.msra.mxu0 %v209
  %511 = vmatpush.msra.mxu0 %v208
  %512 = vmatpush.msra.mxu0 %v207
  %513 = vmatpush.msra.mxu0 %v206
  %514 = vmatmul.f32.gmra.mxu0 %v117
  %v515 = vpop.f32.mrf.mxu0
  %v516 = vadd.f32 %v475, %v515
  %517 = vmatmul.f32.gmra.mxu0 %v121
  %v518 = vpop.f32.mrf.mxu0
  %v519 = vadd.f32 %v478, %v518
  %520 = vmatmul.f32.gmra.mxu0 %v125
  %v521 = vpop.f32.mrf.mxu0
  %v522 = vadd.f32 %v481, %v521
  %523 = vmatmul.f32.gmra.mxu0 %v129
  %v524 = vpop.f32.mrf.mxu0
  %v525 = vadd.f32 %v484, %v524
  %526 = vmatmul.f32.gmra.mxu0 %v133
  %v527 = vpop.f32.mrf.mxu0
  %v528 = vadd.f32 %v487, %v527
  %529 = vmatmul.f32.gmra.mxu0 %v137
  %v530 = vpop.f32.mrf.mxu0
  %v531 = vadd.f32 %v490, %v530
  %532 = vmatmul.f32.gmra.mxu0 %v141
  %v533 = vpop.f32.mrf.mxu0
  %v534 = vadd.f32 %v493, %v533
  %535 = vmatmul.f32.gmra.mxu0 %v145
  %v536 = vpop.f32.mrf.mxu0
  %v537 = vadd.f32 %v496, %v536
  %538 = vdwg.mxu0
  %539 = vmatpush.msra.mxu0 %v237
  %540 = vmatpush.msra.mxu0 %v236
  %541 = vmatpush.msra.mxu0 %v235
  %542 = vmatpush.msra.mxu0 %v234
  %543 = vmatpush.msra.mxu0 %v233
  %544 = vmatpush.msra.mxu0 %v232
  %545 = vmatpush.msra.mxu0 %v231
  %546 = vmatpush.msra.mxu0 %v230
  %547 = vmatpush.msra.mxu0 %v229
  %548 = vmatpush.msra.mxu0 %v228
  %549 = vmatpush.msra.mxu0 %v227
  %550 = vmatpush.msra.mxu0 %v226
  %551 = vmatpush.msra.mxu0 %v225
  %552 = vmatpush.msra.mxu0 %v224
  %553 = vmatpush.msra.mxu0 %v223
  %554 = vmatpush.msra.mxu0 %v222
  %555 = vmatmul.f32.gmra.mxu0 %v118
  %v556 = vpop.f32.mrf.mxu0
  %v557 = vadd.f32 %v516, %v556
  %558 = vmatmul.f32.gmra.mxu0 %v122
  %v559 = vpop.f32.mrf.mxu0
  %v560 = vadd.f32 %v519, %v559
  %561 = vmatmul.f32.gmra.mxu0 %v126
  %v562 = vpop.f32.mrf.mxu0
  %v563 = vadd.f32 %v522, %v562
  %564 = vmatmul.f32.gmra.mxu0 %v130
  %v565 = vpop.f32.mrf.mxu0
  %v566 = vadd.f32 %v525, %v565
  %567 = vmatmul.f32.gmra.mxu0 %v134
  %v568 = vpop.f32.mrf.mxu0
  %v569 = vadd.f32 %v528, %v568
  %570 = vmatmul.f32.gmra.mxu0 %v138
  %v571 = vpop.f32.mrf.mxu0
  %v572 = vadd.f32 %v531, %v571
  %573 = vmatmul.f32.gmra.mxu0 %v142
  %v574 = vpop.f32.mrf.mxu0
  %v575 = vadd.f32 %v534, %v574
  %576 = vmatmul.f32.gmra.mxu0 %v146
  %v577 = vpop.f32.mrf.mxu0
  %v578 = vadd.f32 %v537, %v577
  %579 = vdwg.mxu0
  %580 = vmatpush.msra.mxu0 %v253
  %581 = vmatpush.msra.mxu0 %v252
  %582 = vmatpush.msra.mxu0 %v251
  %583 = vmatpush.msra.mxu0 %v250
  %584 = vmatpush.msra.mxu0 %v249
  %585 = vmatpush.msra.mxu0 %v248
  %586 = vmatpush.msra.mxu0 %v247
  %587 = vmatpush.msra.mxu0 %v246
  %588 = vmatpush.msra.mxu0 %v245
  %589 = vmatpush.msra.mxu0 %v244
  %590 = vmatpush.msra.mxu0 %v243
  %591 = vmatpush.msra.mxu0 %v242
  %592 = vmatpush.msra.mxu0 %v241
  %593 = vmatpush.msra.mxu0 %v240
  %594 = vmatpush.msra.mxu0 %v239
  %595 = vmatpush.msra.mxu0 %v238
  %596 = vmatmul.f32.gmra.mxu0 %v119
  %v597 = vpop.f32.mrf.mxu0
  %v598 = vadd.f32 %v557, %v597
  %599 = vmatmul.f32.gmra.mxu0 %v123
  %v600 = vpop.f32.mrf.mxu0
  %v601 = vadd.f32 %v560, %v600
  %602 = vmatmul.f32.gmra.mxu0 %v127
  %v603 = vpop.f32.mrf.mxu0
  %v604 = vadd.f32 %v563, %v603
  %605 = vmatmul.f32.gmra.mxu0 %v131
  %v606 = vpop.f32.mrf.mxu0
  %v607 = vadd.f32 %v566, %v606
  %608 = vmatmul.f32.gmra.mxu0 %v135
  %v609 = vpop.f32.mrf.mxu0
  %v610 = vadd.f32 %v569, %v609
  %611 = vmatmul.f32.gmra.mxu0 %v139
  %v612 = vpop.f32.mrf.mxu0
  %v613 = vadd.f32 %v572, %v612
  %614 = vmatmul.f32.gmra.mxu0 %v143
  %v615 = vpop.f32.mrf.mxu0
  %v616 = vadd.f32 %v575, %v615
  %617 = vmatmul.f32.gmra.mxu0 %v147
  %v618 = vpop.f32.mrf.mxu0
  %v619 = vadd.f32 %v578, %v618
  %620 = vdwg.mxu0
  %621 = vmatpush.msra.mxu0 %v269
  %622 = vmatpush.msra.mxu0 %v268
  %623 = vmatpush.msra.mxu0 %v267
  %624 = vmatpush.msra.mxu0 %v266
  %625 = vmatpush.msra.mxu0 %v265
  %626 = vmatpush.msra.mxu0 %v264
  %627 = vmatpush.msra.mxu0 %v263
  %628 = vmatpush.msra.mxu0 %v262
  %629 = vmatpush.msra.mxu0 %v261
  %630 = vmatpush.msra.mxu0 %v260
  %631 = vmatpush.msra.mxu0 %v259
  %632 = vmatpush.msra.mxu0 %v258
  %633 = vmatpush.msra.mxu0 %v257
  %634 = vmatpush.msra.mxu0 %v256
  %635 = vmatpush.msra.mxu0 %v255
  %636 = vmatpush.msra.mxu0 %v254
  %637 = vmatmul.f32.gmra.mxu0 %v120
  %v638 = vpop.f32.mrf.mxu0
  %v639 = vadd.f32 %v598, %v638
  %640 = vmatmul.f32.gmra.mxu0 %v124
  %v641 = vpop.f32.mrf.mxu0
  %v642 = vadd.f32 %v601, %v641
  %643 = vmatmul.f32.gmra.mxu0 %v128
  %v644 = vpop.f32.mrf.mxu0
  %v645 = vadd.f32 %v604, %v644
  %646 = vmatmul.f32.gmra.mxu0 %v132
  %v647 = vpop.f32.mrf.mxu0
  %v648 = vadd.f32 %v607, %v647
  %649 = vmatmul.f32.gmra.mxu0 %v136
  %v650 = vpop.f32.mrf.mxu0
  %v651 = vadd.f32 %v610, %v650
  %652 = vmatmul.f32.gmra.mxu0 %v140
  %v653 = vpop.f32.mrf.mxu0
  %v654 = vadd.f32 %v613, %v653
  %655 = vmatmul.f32.gmra.mxu0 %v144
  %v656 = vpop.f32.mrf.mxu0
  %v657 = vadd.f32 %v616, %v656
  %658 = vmatmul.f32.gmra.mxu0 %v148
  %v659 = vpop.f32.mrf.mxu0
  %v660 = vadd.f32 %v619, %v659
  %661 = vdwg.mxu0
  %v662 = vlaneseq
  %v663 = vshrl.u32 %v662, 7
  %v664 = vadd.s32 %v663, 8
  %v665 = vadd.s32 %v663, 16
  %v666 = vadd.s32 %v663, 24
  %v667 = vadd.s32 %v663, 32
  %v668 = vadd.s32 %v663, 40
  %v669 = vadd.s32 %v663, 48
  %v670 = vadd.s32 %v663, 56
  %v671 = vlaneseq
  %v672 = vand.u32 %v671, 127
  %vm673 = vcmp.eq.s32.totalorder %v663, %v672
  %vm674 = vcmp.eq.s32.totalorder %v664, %v672
  %vm675 = vcmp.eq.s32.totalorder %v665, %v672
  %vm676 = vcmp.eq.s32.totalorder %v666, %v672
  %vm677 = vcmp.eq.s32.totalorder %v667, %v672
  %vm678 = vcmp.eq.s32.totalorder %v668, %v672
  %vm679 = vcmp.eq.s32.totalorder %v669, %v672
  %vm680 = vcmp.eq.s32.totalorder %v670, %v672
  %v681 = vsel %vm673, 1.0, 0.0
  %v682 = vsel %vm674, 1.0, 0.0
  %v683 = vsel %vm675, 1.0, 0.0
  %v684 = vsel %vm676, 1.0, 0.0
  %v685 = vsel %vm677, 1.0, 0.0
  %v686 = vsel %vm678, 1.0, 0.0
  %v687 = vsel %vm679, 1.0, 0.0
  %v688 = vsel %vm680, 1.0, 0.0
  %v689 = vadd.f32 %v681, %v639
  %v690 = vadd.f32 %v682, %v642
  %v691 = vadd.f32 %v683, %v645
  %v692 = vadd.f32 %v684, %v648
  %v693 = vadd.f32 %v685, %v651
  %v694 = vadd.f32 %v686, %v654
  %v695 = vadd.f32 %v687, %v657
  %v696 = vadd.f32 %v688, %v660
  %vm697 = vcmask 523264
  %v698 = vsel %vm697, %v639, 0.0
  %699 = vadd.xlane.f32.xlu0 %v698
  %v700 = vpop.xlane.xlu0 %699
  %v701 = vsel %vm697, %v642, 0.0
  %702 = vadd.xlane.f32.xlu0 %v701
  %v703 = vpop.xlane.xlu0 %702
  %v704 = vsel %vm697, %v645, 0.0
  %705 = vadd.xlane.f32.xlu0 %v704
  %v706 = vpop.xlane.xlu0 %705
  %v707 = vsel %vm697, %v648, 0.0
  %708 = vadd.xlane.f32.xlu0 %v707
  %v709 = vpop.xlane.xlu0 %708
  %v710 = vsel %vm697, %v651, 0.0
  %711 = vadd.xlane.f32.xlu0 %v710
  %v712 = vpop.xlane.xlu0 %711
  %v713 = vsel %vm697, %v654, 0.0
  %714 = vadd.xlane.f32.xlu0 %v713
  %v715 = vpop.xlane.xlu0 %714
  %v716 = vsel %vm697, %v657, 0.0
  %717 = vadd.xlane.f32.xlu0 %v716
  %v718 = vpop.xlane.xlu0 %717
  %v719 = vsel %vm697, %v660, 0.0
  %720 = vadd.xlane.f32.xlu0 %v719
  %v721 = vpop.xlane.xlu0 %720
  %v722 = vrcp.pop 64.0
  %v723 = vmul.f32 64.0, %v722
  %v724 = vsub.f32 1.0, %v723
  %v725 = vmul.f32 %v722, %v724
  %v726 = vadd.f32 %v722, %v725
  %vm727 = vweird.f32 %v722
  %v728 = vsel %vm727, %v722, %v726
  %v729 = vmul.f32 %v700, %v728
  %v730 = vmul.f32 %v703, %v728
  %v731 = vmul.f32 %v706, %v728
  %v732 = vmul.f32 %v709, %v728
  %v733 = vmul.f32 %v712, %v728
  %v734 = vmul.f32 %v715, %v728
  %v735 = vmul.f32 %v718, %v728
  %v736 = vmul.f32 %v721, %v728
  %v737 = vsub.f32 %v639, %v729
  %v738 = vsub.f32 %v642, %v730
  %v739 = vsub.f32 %v645, %v731
  %v740 = vsub.f32 %v648, %v732
  %v741 = vsub.f32 %v651, %v733
  %v742 = vsub.f32 %v654, %v734
  %v743 = vsub.f32 %v657, %v735
  %v744 = vsub.f32 %v660, %v736
  %v745 = vmul.f32 %v689, 64.0
  %v746 = vmul.f32 %v690, 64.0
  %v747 = vmul.f32 %v691, 64.0
  %v748 = vmul.f32 %v692, 64.0
  %v749 = vmul.f32 %v693, 64.0
  %v750 = vmul.f32 %v694, 64.0
  %v751 = vmul.f32 %v695, 64.0
  %v752 = vmul.f32 %v696, 64.0
  %v754 = vsel %vm697, %v737, 0
  %v757 = vsel %vm697, %v738, 0
  %v760 = vsel %vm697, %v739, 0
  %v763 = vsel %vm697, %v740, 0
  %v766 = vsel %vm697, %v741, 0
  %v769 = vsel %vm697, %v742, 0
  %v772 = vsel %vm697, %v743, 0
  %v775 = vsel %vm697, %v744, 0
  %777 = vmatpush.xpose.msra.mxu0 0.0
  %778 = vmatpush.xpose.msra.mxu0 0.0
  %779 = vmatpush.xpose.msra.mxu0 0.0
  %780 = vmatpush.xpose.msra.mxu0 0.0
  %781 = vmatpush.xpose.msra.mxu0 0.0
  %782 = vmatpush.xpose.msra.mxu0 0.0
  %783 = vmatpush.xpose.msra.mxu0 0.0
  %784 = vmatpush.xpose.msra.mxu0 0.0
  %785 = vmatpush.xpose.msra.mxu0 %v775
  %786 = vmatpush.xpose.msra.mxu0 %v772
  %787 = vmatpush.xpose.msra.mxu0 %v769
  %788 = vmatpush.xpose.msra.mxu0 %v766
  %789 = vmatpush.xpose.msra.mxu0 %v763
  %790 = vmatpush.xpose.msra.mxu0 %v760
  %791 = vmatpush.xpose.msra.mxu0 %v757
  %792 = vmatpush.xpose.msra.mxu0 %v754
  %793 = vmatmul.f32.gmra.mxu0 %v754
  %v794 = vpop.f32.mrf.mxu0
  %v795 = vadd.f32 %v745, %v794
  %796 = vmatmul.f32.gmra.mxu0 %v757
  %v797 = vpop.f32.mrf.mxu0
  %v798 = vadd.f32 %v746, %v797
  %799 = vmatmul.f32.gmra.mxu0 %v760
  %v800 = vpop.f32.mrf.mxu0
  %v801 = vadd.f32 %v747, %v800
  %802 = vmatmul.f32.gmra.mxu0 %v763
  %v803 = vpop.f32.mrf.mxu0
  %v804 = vadd.f32 %v748, %v803
  %805 = vmatmul.f32.gmra.mxu0 %v766
  %v806 = vpop.f32.mrf.mxu0
  %v807 = vadd.f32 %v749, %v806
  %808 = vmatmul.f32.gmra.mxu0 %v769
  %v809 = vpop.f32.mrf.mxu0
  %v810 = vadd.f32 %v750, %v809
  %811 = vmatmul.f32.gmra.mxu0 %v772
  %v812 = vpop.f32.mrf.mxu0
  %v813 = vadd.f32 %v751, %v812
  %814 = vmatmul.f32.gmra.mxu0 %v775
  %v815 = vpop.f32.mrf.mxu0
  %v816 = vadd.f32 %v752, %v815
  %817 = vdwg.mxu0
  %v818 = vsel %vm697, %v689, 0.0
  %v819 = vsel %vm697, %v690, 0.0
  %v820 = vsel %vm697, %v691, 0.0
  %v821 = vsel %vm697, %v692, 0.0
  %v822 = vsel %vm697, %v693, 0.0
  %v823 = vsel %vm697, %v694, 0.0
  %v824 = vsel %vm697, %v695, 0.0
  %v825 = vsel %vm697, %v696, 0.0
  %834 = vrot.lane.b32.xlu0 %v795, 64
  %v835 = vpop.permute.xlu0 %834
  %836 = vrot.lane.b32.xlu0 %v798, 64
  %v837 = vpop.permute.xlu0 %836
  %838 = vrot.lane.b32.xlu0 %v801, 64
  %v839 = vpop.permute.xlu0 %838
  %840 = vrot.lane.b32.xlu0 %v804, 64
  %v841 = vpop.permute.xlu0 %840
  %842 = vrot.lane.b32.xlu0 %v807, 64
  %v843 = vpop.permute.xlu0 %842
  %844 = vrot.lane.b32.xlu0 %v810, 64
  %v845 = vpop.permute.xlu0 %844
  %846 = vrot.lane.b32.xlu0 %v813, 64
  %v847 = vpop.permute.xlu0 %846
  %848 = vrot.lane.b32.xlu0 %v816, 64
  %v849 = vpop.permute.xlu0 %848
  %v858 = vsel %vm697, 0.0, %v835
  %v859 = vsel %vm697, 0.0, %v837
  %v860 = vsel %vm697, 0.0, %v839
  %v861 = vsel %vm697, 0.0, %v841
  %v862 = vsel %vm697, 0.0, %v843
  %v863 = vsel %vm697, 0.0, %v845
  %v864 = vsel %vm697, 0.0, %v847
  %v865 = vsel %vm697, 0.0, %v849
  %v866 = vand.u32 2147483647, %v689
  %v867 = vand.u32 2147483647, %v690
  %v868 = vand.u32 2147483647, %v691
  %v869 = vand.u32 2147483647, %v692
  %v870 = vand.u32 2147483647, %v693
  %v871 = vand.u32 2147483647, %v694
  %v872 = vand.u32 2147483647, %v695
  %v873 = vand.u32 2147483647, %v696
  %v874 = vsel %vm697, %v866, 0.0
  %875 = vadd.xlane.f32.xlu0 %v874
  %v876 = vpop.xlane.xlu0 %875
  %v877 = vsel %vm697, %v867, 0.0
  %878 = vadd.xlane.f32.xlu0 %v877
  %v879 = vpop.xlane.xlu0 %878
  %v880 = vsel %vm697, %v868, 0.0
  %881 = vadd.xlane.f32.xlu0 %v880
  %v882 = vpop.xlane.xlu0 %881
  %v883 = vsel %vm697, %v869, 0.0
  %884 = vadd.xlane.f32.xlu0 %v883
  %v885 = vpop.xlane.xlu0 %884
  %v886 = vsel %vm697, %v870, 0.0
  %887 = vadd.xlane.f32.xlu0 %v886
  %v888 = vpop.xlane.xlu0 %887
  %v889 = vsel %vm697, %v871, 0.0
  %890 = vadd.xlane.f32.xlu0 %v889
  %v891 = vpop.xlane.xlu0 %890
  %v892 = vsel %vm697, %v872, 0.0
  %893 = vadd.xlane.f32.xlu0 %v892
  %v894 = vpop.xlane.xlu0 %893
  %v895 = vsel %vm697, %v873, 0.0
  %896 = vadd.xlane.f32.xlu0 %v895
  %v897 = vpop.xlane.xlu0 %896
  %v898 = vmax.f32 %v876, %v888
  %v899 = vmax.f32 %v879, %v891
  %v900 = vmax.f32 %v882, %v894
  %v901 = vmax.f32 %v885, %v897
  %v902 = vmax.f32 %v898, %v899
  %v903 = vmax.f32 %v900, %v901
  %v904 = vmax.f32 %v902, %v903
  %v905 = vrot.slane %v904, 4
  %v906 = vmax.f32 %v904, %v905
  %v907 = vrot.slane %v906, 2
  %v908 = vmax.f32 %v906, %v907
  %v909 = vrot.slane %v908, 1
  %v910 = vmax.f32 %v908, %v909
  %v911 = vand.u32 2147483647, %v795
  %v912 = vand.u32 2147483647, %v798
  %v913 = vand.u32 2147483647, %v801
  %v914 = vand.u32 2147483647, %v804
  %v915 = vand.u32 2147483647, %v807
  %v916 = vand.u32 2147483647, %v810
  %v917 = vand.u32 2147483647, %v813
  %v918 = vand.u32 2147483647, %v816
  %v919 = vsel %vm697, %v911, 0.0
  %920 = vadd.xlane.f32.xlu0 %v919
  %v921 = vpop.xlane.xlu0 %920
  %v922 = vsel %vm697, %v912, 0.0
  %923 = vadd.xlane.f32.xlu0 %v922
  %v924 = vpop.xlane.xlu0 %923
  %v925 = vsel %vm697, %v913, 0.0
  %926 = vadd.xlane.f32.xlu0 %v925
  %v927 = vpop.xlane.xlu0 %926
  %v928 = vsel %vm697, %v914, 0.0
  %929 = vadd.xlane.f32.xlu0 %v928
  %v930 = vpop.xlane.xlu0 %929
  %v931 = vsel %vm697, %v915, 0.0
  %932 = vadd.xlane.f32.xlu0 %v931
  %v933 = vpop.xlane.xlu0 %932
  %v934 = vsel %vm697, %v916, 0.0
  %935 = vadd.xlane.f32.xlu0 %v934
  %v936 = vpop.xlane.xlu0 %935
  %v937 = vsel %vm697, %v917, 0.0
  %938 = vadd.xlane.f32.xlu0 %v937
  %v939 = vpop.xlane.xlu0 %938
  %v940 = vsel %vm697, %v918, 0.0
  %941 = vadd.xlane.f32.xlu0 %v940
  %v942 = vpop.xlane.xlu0 %941
  %v943 = vmax.f32 %v921, %v933
  %v944 = vmax.f32 %v924, %v936
  %v945 = vmax.f32 %v927, %v939
  %v946 = vmax.f32 %v930, %v942
  %v947 = vmax.f32 %v943, %v944
  %v948 = vmax.f32 %v945, %v946
  %v949 = vmax.f32 %v947, %v948
  %v950 = vrot.slane %v949, 4
  %v951 = vmax.f32 %v949, %v950
  %v952 = vrot.slane %v951, 2
  %v953 = vmax.f32 %v951, %v952
  %v954 = vrot.slane %v953, 1
  %v955 = vmax.f32 %v953, %v954
  %v956 = vadd.s32 %v663, 64
  %v957 = vadd.s32 %v663, 72
  %v958 = vadd.s32 %v663, 80
  %v959 = vadd.s32 %v663, 88
  %v960 = vadd.s32 %v663, 96
  %v961 = vadd.s32 %v663, 104
  %v962 = vadd.s32 %v663, 112
  %v963 = vadd.s32 %v663, 120
  %vm964 = vcmp.eq.s32.totalorder %v956, %v672
  %vm965 = vcmp.eq.s32.totalorder %v957, %v672
  %vm966 = vcmp.eq.s32.totalorder %v958, %v672
  %vm967 = vcmp.eq.s32.totalorder %v959, %v672
  %vm968 = vcmp.eq.s32.totalorder %v960, %v672
  %vm969 = vcmp.eq.s32.totalorder %v961, %v672
  %vm970 = vcmp.eq.s32.totalorder %v962, %v672
  %vm971 = vcmp.eq.s32.totalorder %v963, %v672
  %v972 = vsel %vm964, 1.0, 0.0
  %v973 = vsel %vm965, 1.0, 0.0
  %v974 = vsel %vm966, 1.0, 0.0
  %v975 = vsel %vm967, 1.0, 0.0
  %v976 = vsel %vm968, 1.0, 0.0
  %v977 = vsel %vm969, 1.0, 0.0
  %v978 = vsel %vm970, 1.0, 0.0
  %v979 = vsel %vm971, 1.0, 0.0
  %v980 = vadd.f32 %v681, %v681
  %v981 = vadd.f32 %v682, %v682
  %v982 = vadd.f32 %v683, %v683
  %v983 = vadd.f32 %v684, %v684
  %v984 = vadd.f32 %v685, %v685
  %v985 = vadd.f32 %v686, %v686
  %v986 = vadd.f32 %v687, %v687
  %v987 = vadd.f32 %v688, %v688
  %v988 = vadd.f32 %v972, %v972
  %v989 = vadd.f32 %v973, %v973
  %v990 = vadd.f32 %v974, %v974
  %v991 = vadd.f32 %v975, %v975
  %v992 = vadd.f32 %v976, %v976
  %v993 = vadd.f32 %v977, %v977
  %v994 = vadd.f32 %v978, %v978
  %v995 = vadd.f32 %v979, %v979
  %vm996 = vcmp.lt.s32.totalorder %v663, 64
  %vm997 = vcmp.lt.s32.totalorder %v664, 64
  %vm998 = vcmp.lt.s32.totalorder %v665, 64
  %vm999 = vcmp.lt.s32.totalorder %v666, 64
  %vm1000 = vcmp.lt.s32.totalorder %v667, 64
  %vm1001 = vcmp.lt.s32.totalorder %v668, 64
  %vm1002 = vcmp.lt.s32.totalorder %v669, 64
  %vm1003 = vcmp.lt.s32.totalorder %v670, 64
  %vm1004 = vcmp.lt.s32.totalorder %v956, 64
  %vm1005 = vcmp.lt.s32.totalorder %v957, 64
  %vm1006 = vcmp.lt.s32.totalorder %v958, 64
  %vm1007 = vcmp.lt.s32.totalorder %v959, 64
  %vm1008 = vcmp.lt.s32.totalorder %v960, 64
  %vm1009 = vcmp.lt.s32.totalorder %v961, 64
  %vm1010 = vcmp.lt.s32.totalorder %v962, 64
  %vm1011 = vcmp.lt.s32.totalorder %v963, 64
  %v1012 = vrcp.pop %v910
  %v1013 = vmul.f32 %v910, %v1012
  %v1014 = vsub.f32 1.0, %v1013
  %v1015 = vmul.f32 %v1012, %v1014
  %v1016 = vadd.f32 %v1012, %v1015
  %vm1017 = vweird.f32 %v910
  %vm1018 = vweird.f32 %v1012
  %vm1019 = vmor %vm1017, %vm1018
  %v1020 = vsel %vm1019, %v1012, %v1016
  %v1021 = vand.u32 2147483647, %v910
  %vm1022 = vcmp.eq.f32.partialorder %v1021, 8.507059e+37
  %v1023 = vand.u32 %v910, 2147483648
  %v1024 = vor.u32 1.1754944e-38, %v1023
  %v1025 = vsel %vm1022, %v1024, %v1020
  %v1026 = vmul.f32 1.0, %v1025
  %v1027 = vrcp.pop %v955
  %v1028 = vmul.f32 %v955, %v1027
  %v1029 = vsub.f32 1.0, %v1028
  %v1030 = vmul.f32 %v1027, %v1029
  %v1031 = vadd.f32 %v1027, %v1030
  %vm1032 = vweird.f32 %v955
  %vm1033 = vweird.f32 %v1027
  %vm1034 = vmor %vm1032, %vm1033
  %v1035 = vsel %vm1034, %v1027, %v1031
  %v1036 = vand.u32 2147483647, %v955
  %vm1037 = vcmp.eq.f32.partialorder %v1036, 8.507059e+37
  %v1038 = vand.u32 %v955, 2147483648
  %v1039 = vor.u32 1.1754944e-38, %v1038
  %v1040 = vsel %vm1037, %v1039, %v1035
  %v1041 = vmul.f32 1.0, %v1040
  %v1042 = vsel %vm996, %v1026, %v1041
  %v1043 = vsel %vm997, %v1026, %v1041
  %v1044 = vsel %vm998, %v1026, %v1041
  %v1045 = vsel %vm999, %v1026, %v1041
  %v1046 = vsel %vm1000, %v1026, %v1041
  %v1047 = vsel %vm1001, %v1026, %v1041
  %v1048 = vsel %vm1002, %v1026, %v1041
  %v1049 = vsel %vm1003, %v1026, %v1041
  %v1050 = vsel %vm1004, %v1026, %v1041
  %v1051 = vsel %vm1005, %v1026, %v1041
  %v1052 = vsel %vm1006, %v1026, %v1041
  %v1053 = vsel %vm1007, %v1026, %v1041
  %v1054 = vsel %vm1008, %v1026, %v1041
  %v1055 = vsel %vm1009, %v1026, %v1041
  %v1056 = vsel %vm1010, %v1026, %v1041
  %v1057 = vsel %vm1011, %v1026, %v1041
  %v1058 = vsel %vm673, %v1042, 0.0
  %v1059 = vsel %vm674, %v1043, 0.0
  %v1060 = vsel %vm675, %v1044, 0.0
  %v1061 = vsel %vm676, %v1045, 0.0
  %v1062 = vsel %vm677, %v1046, 0.0
  %v1063 = vsel %vm678, %v1047, 0.0
  %v1064 = vsel %vm679, %v1048, 0.0
  %v1065 = vsel %vm680, %v1049, 0.0
  %v1066 = vsel %vm964, %v1050, 0.0
  %v1067 = vsel %vm965, %v1051, 0.0
  %v1068 = vsel %vm966, %v1052, 0.0
  %v1069 = vsel %vm967, %v1053, 0.0
  %v1070 = vsel %vm968, %v1054, 0.0
  %v1071 = vsel %vm969, %v1055, 0.0
  %v1072 = vsel %vm970, %v1056, 0.0
  %v1073 = vsel %vm971, %v1057, 0.0
  %v1074 = vpack.c.bf16 %v819, %v818
  %v1075 = vpack.c.bf16 %v821, %v820
  %v1076 = vpack.c.bf16 %v823, %v822
  %v1077 = vpack.c.bf16 %v825, %v824
  %v1078 = vpack.c.bf16 %v859, %v858
  %v1079 = vpack.c.bf16 %v861, %v860
  %v1080 = vpack.c.bf16 %v863, %v862
  %v1081 = vpack.c.bf16 %v865, %v864
  %v1082 = vpack.c.bf16 %v1059, %v1058
  %v1083 = vpack.c.bf16 %v1061, %v1060
  %v1084 = vpack.c.bf16 %v1063, %v1062
  %v1085 = vpack.c.bf16 %v1065, %v1064
  %v1086 = vpack.c.bf16 %v1067, %v1066
  %v1087 = vpack.c.bf16 %v1069, %v1068
  %v1088 = vpack.c.bf16 %v1071, %v1070
  %v1089 = vpack.c.bf16 %v1073, %v1072
  %1090 = vmatpush.bf16.msra.mxu0 %v1089
  %1091 = vmatpush.bf16.msra.mxu0 %v1088
  %1092 = vmatpush.bf16.msra.mxu0 %v1087
  %1093 = vmatpush.bf16.msra.mxu0 %v1086
  %1094 = vmatpush.bf16.msra.mxu0 %v1085
  %1095 = vmatpush.bf16.msra.mxu0 %v1084
  %1096 = vmatpush.bf16.msra.mxu0 %v1083
  %1097 = vmatpush.bf16.msra.mxu0 %v1082
  %1098 = vmatmul.bf16.gmra.mxu0 %v1074
  %v1099 = vpop.f32.mrf.mxu0
  %v1100 = vadd.f32 0.0, %v1099
  %v1101 = vpop.f32.mrf.mxu0
  %v1102 = vadd.f32 0.0, %v1101
  %1103 = vmatmul.bf16.gmra.mxu0 %v1075
  %v1104 = vpop.f32.mrf.mxu0
  %v1105 = vadd.f32 0.0, %v1104
  %v1106 = vpop.f32.mrf.mxu0
  %v1107 = vadd.f32 0.0, %v1106
  %1108 = vmatmul.bf16.gmra.mxu0 %v1076
  %v1109 = vpop.f32.mrf.mxu0
  %v1110 = vadd.f32 0.0, %v1109
  %v1111 = vpop.f32.mrf.mxu0
  %v1112 = vadd.f32 0.0, %v1111
  %1113 = vmatmul.bf16.gmra.mxu0 %v1077
  %v1114 = vpop.f32.mrf.mxu0
  %v1115 = vadd.f32 0.0, %v1114
  %v1116 = vpop.f32.mrf.mxu0
  %v1117 = vadd.f32 0.0, %v1116
  %1118 = vmatmul.bf16.gmra.mxu0 %v1078
  %v1119 = vpop.f32.mrf.mxu0
  %v1120 = vadd.f32 0.0, %v1119
  %v1121 = vpop.f32.mrf.mxu0
  %v1122 = vadd.f32 0.0, %v1121
  %1123 = vmatmul.bf16.gmra.mxu0 %v1079
  %v1124 = vpop.f32.mrf.mxu0
  %v1125 = vadd.f32 0.0, %v1124
  %v1126 = vpop.f32.mrf.mxu0
  %v1127 = vadd.f32 0.0, %v1126
  %1128 = vmatmul.bf16.gmra.mxu0 %v1080
  %v1129 = vpop.f32.mrf.mxu0
  %v1130 = vadd.f32 0.0, %v1129
  %v1131 = vpop.f32.mrf.mxu0
  %v1132 = vadd.f32 0.0, %v1131
  %1133 = vmatmul.bf16.gmra.mxu0 %v1081
  %v1134 = vpop.f32.mrf.mxu0
  %v1135 = vadd.f32 0.0, %v1134
  %v1136 = vpop.f32.mrf.mxu0
  %v1137 = vadd.f32 0.0, %v1136
  %1138 = vdwg.mxu0
  %v1139 = vsub.f32 %v980, %v1100
  %v1140 = vsub.f32 %v981, %v1102
  %v1141 = vsub.f32 %v982, %v1105
  %v1142 = vsub.f32 %v983, %v1107
  %v1143 = vsub.f32 %v984, %v1110
  %v1144 = vsub.f32 %v985, %v1112
  %v1145 = vsub.f32 %v986, %v1115
  %v1146 = vsub.f32 %v987, %v1117
  %v1147 = vsub.f32 %v988, %v1120
  %v1148 = vsub.f32 %v989, %v1122
  %v1149 = vsub.f32 %v990, %v1125
  %v1150 = vsub.f32 %v991, %v1127
  %v1151 = vsub.f32 %v992, %v1130
  %v1152 = vsub.f32 %v993, %v1132
  %v1153 = vsub.f32 %v994, %v1135
  %v1154 = vsub.f32 %v995, %v1137
  %v1155 = vpack.c.bf16 %v1140, %v1139
  %v1156 = vpack.c.bf16 %v1142, %v1141
  %v1157 = vpack.c.bf16 %v1144, %v1143
  %v1158 = vpack.c.bf16 %v1146, %v1145
  %v1159 = vpack.c.bf16 %v1148, %v1147
  %v1160 = vpack.c.bf16 %v1150, %v1149
  %v1161 = vpack.c.bf16 %v1152, %v1151
  %v1162 = vpack.c.bf16 %v1154, %v1153
  %1163 = vmatpush.bf16.msra.mxu0 %v1162
  %1164 = vmatpush.bf16.msra.mxu0 %v1161
  %1165 = vmatpush.bf16.msra.mxu0 %v1160
  %1166 = vmatpush.bf16.msra.mxu0 %v1159
  %1167 = vmatpush.bf16.msra.mxu0 %v1158
  %1168 = vmatpush.bf16.msra.mxu0 %v1157
  %1169 = vmatpush.bf16.msra.mxu0 %v1156
  %1170 = vmatpush.bf16.msra.mxu0 %v1155
  %1171 = vmatmul.bf16.gmra.mxu0 %v1082
  %v1172 = vpop.f32.mrf.mxu0
  %v1173 = vadd.f32 0.0, %v1172
  %v1174 = vpop.f32.mrf.mxu0
  %v1175 = vadd.f32 0.0, %v1174
  %1176 = vmatmul.bf16.gmra.mxu0 %v1083
  %v1177 = vpop.f32.mrf.mxu0
  %v1178 = vadd.f32 0.0, %v1177
  %v1179 = vpop.f32.mrf.mxu0
  %v1180 = vadd.f32 0.0, %v1179
  %1181 = vmatmul.bf16.gmra.mxu0 %v1084
  %v1182 = vpop.f32.mrf.mxu0
  %v1183 = vadd.f32 0.0, %v1182
  %v1184 = vpop.f32.mrf.mxu0
  %v1185 = vadd.f32 0.0, %v1184
  %1186 = vmatmul.bf16.gmra.mxu0 %v1085
  %v1187 = vpop.f32.mrf.mxu0
  %v1188 = vadd.f32 0.0, %v1187
  %v1189 = vpop.f32.mrf.mxu0
  %v1190 = vadd.f32 0.0, %v1189
  %1191 = vmatmul.bf16.gmra.mxu0 %v1086
  %v1192 = vpop.f32.mrf.mxu0
  %v1193 = vadd.f32 0.0, %v1192
  %v1194 = vpop.f32.mrf.mxu0
  %v1195 = vadd.f32 0.0, %v1194
  %1196 = vmatmul.bf16.gmra.mxu0 %v1087
  %v1197 = vpop.f32.mrf.mxu0
  %v1198 = vadd.f32 0.0, %v1197
  %v1199 = vpop.f32.mrf.mxu0
  %v1200 = vadd.f32 0.0, %v1199
  %1201 = vmatmul.bf16.gmra.mxu0 %v1088
  %v1202 = vpop.f32.mrf.mxu0
  %v1203 = vadd.f32 0.0, %v1202
  %v1204 = vpop.f32.mrf.mxu0
  %v1205 = vadd.f32 0.0, %v1204
  %1206 = vmatmul.bf16.gmra.mxu0 %v1089
  %v1207 = vpop.f32.mrf.mxu0
  %v1208 = vadd.f32 0.0, %v1207
  %v1209 = vpop.f32.mrf.mxu0
  %v1210 = vadd.f32 0.0, %v1209
  %1211 = vdwg.mxu0
  %v1212 = vpack.c.bf16 %v1175, %v1173
  %v1213 = vpack.c.bf16 %v1180, %v1178
  %v1214 = vpack.c.bf16 %v1185, %v1183
  %v1215 = vpack.c.bf16 %v1190, %v1188
  %v1216 = vpack.c.bf16 %v1195, %v1193
  %v1217 = vpack.c.bf16 %v1200, %v1198
  %v1218 = vpack.c.bf16 %v1205, %v1203
  %v1219 = vpack.c.bf16 %v1210, %v1208
  %1220 = vmatpush.bf16.msra.mxu0 %v1219
  %1221 = vmatpush.bf16.msra.mxu0 %v1218
  %1222 = vmatpush.bf16.msra.mxu0 %v1217
  %1223 = vmatpush.bf16.msra.mxu0 %v1216
  %1224 = vmatpush.bf16.msra.mxu0 %v1215
  %1225 = vmatpush.bf16.msra.mxu0 %v1214
  %1226 = vmatpush.bf16.msra.mxu0 %v1213
  %1227 = vmatpush.bf16.msra.mxu0 %v1212
  %1228 = vmatmul.bf16.gmra.mxu0 %v1074
  %v1229 = vpop.f32.mrf.mxu0
  %v1230 = vadd.f32 0.0, %v1229
  %v1231 = vpop.f32.mrf.mxu0
  %v1232 = vadd.f32 0.0, %v1231
  %1233 = vmatmul.bf16.gmra.mxu0 %v1075
  %v1234 = vpop.f32.mrf.mxu0
  %v1235 = vadd.f32 0.0, %v1234
  %v1236 = vpop.f32.mrf.mxu0
  %v1237 = vadd.f32 0.0, %v1236
  %1238 = vmatmul.bf16.gmra.mxu0 %v1076
  %v1239 = vpop.f32.mrf.mxu0
  %v1240 = vadd.f32 0.0, %v1239
  %v1241 = vpop.f32.mrf.mxu0
  %v1242 = vadd.f32 0.0, %v1241
  %1243 = vmatmul.bf16.gmra.mxu0 %v1077
  %v1244 = vpop.f32.mrf.mxu0
  %v1245 = vadd.f32 0.0, %v1244
  %v1246 = vpop.f32.mrf.mxu0
  %v1247 = vadd.f32 0.0, %v1246
  %1248 = vmatmul.bf16.gmra.mxu0 %v1078
  %v1249 = vpop.f32.mrf.mxu0
  %v1250 = vadd.f32 0.0, %v1249
  %v1251 = vpop.f32.mrf.mxu0
  %v1252 = vadd.f32 0.0, %v1251
  %1253 = vmatmul.bf16.gmra.mxu0 %v1079
  %v1254 = vpop.f32.mrf.mxu0
  %v1255 = vadd.f32 0.0, %v1254
  %v1256 = vpop.f32.mrf.mxu0
  %v1257 = vadd.f32 0.0, %v1256
  %1258 = vmatmul.bf16.gmra.mxu0 %v1080
  %v1259 = vpop.f32.mrf.mxu0
  %v1260 = vadd.f32 0.0, %v1259
  %v1261 = vpop.f32.mrf.mxu0
  %v1262 = vadd.f32 0.0, %v1261
  %1263 = vmatmul.bf16.gmra.mxu0 %v1081
  %v1264 = vpop.f32.mrf.mxu0
  %v1265 = vadd.f32 0.0, %v1264
  %v1266 = vpop.f32.mrf.mxu0
  %v1267 = vadd.f32 0.0, %v1266
  %1268 = vdwg.mxu0
  %v1269 = vsub.f32 %v980, %v1230
  %v1270 = vsub.f32 %v981, %v1232
  %v1271 = vsub.f32 %v982, %v1235
  %v1272 = vsub.f32 %v983, %v1237
  %v1273 = vsub.f32 %v984, %v1240
  %v1274 = vsub.f32 %v985, %v1242
  %v1275 = vsub.f32 %v986, %v1245
  %v1276 = vsub.f32 %v987, %v1247
  %v1277 = vsub.f32 %v988, %v1250
  %v1278 = vsub.f32 %v989, %v1252
  %v1279 = vsub.f32 %v990, %v1255
  %v1280 = vsub.f32 %v991, %v1257
  %v1281 = vsub.f32 %v992, %v1260
  %v1282 = vsub.f32 %v993, %v1262
  %v1283 = vsub.f32 %v994, %v1265
  %v1284 = vsub.f32 %v995, %v1267
  %v1285 = vpack.c.bf16 %v1270, %v1269
  %v1286 = vpack.c.bf16 %v1272, %v1271
  %v1287 = vpack.c.bf16 %v1274, %v1273
  %v1288 = vpack.c.bf16 %v1276, %v1275
  %v1289 = vpack.c.bf16 %v1278, %v1277
  %v1290 = vpack.c.bf16 %v1280, %v1279
  %v1291 = vpack.c.bf16 %v1282, %v1281
  %v1292 = vpack.c.bf16 %v1284, %v1283
  %1293 = vmatpush.bf16.msra.mxu0 %v1292
  %1294 = vmatpush.bf16.msra.mxu0 %v1291
  %1295 = vmatpush.bf16.msra.mxu0 %v1290
  %1296 = vmatpush.bf16.msra.mxu0 %v1289
  %1297 = vmatpush.bf16.msra.mxu0 %v1288
  %1298 = vmatpush.bf16.msra.mxu0 %v1287
  %1299 = vmatpush.bf16.msra.mxu0 %v1286
  %1300 = vmatpush.bf16.msra.mxu0 %v1285
  %1301 = vmatmul.bf16.gmra.mxu0 %v1212
  %v1302 = vpop.f32.mrf.mxu0
  %v1303 = vadd.f32 0.0, %v1302
  %v1304 = vpop.f32.mrf.mxu0
  %v1305 = vadd.f32 0.0, %v1304
  %1306 = vmatmul.bf16.gmra.mxu0 %v1213
  %v1307 = vpop.f32.mrf.mxu0
  %v1308 = vadd.f32 0.0, %v1307
  %v1309 = vpop.f32.mrf.mxu0
  %v1310 = vadd.f32 0.0, %v1309
  %1311 = vmatmul.bf16.gmra.mxu0 %v1214
  %v1312 = vpop.f32.mrf.mxu0
  %v1313 = vadd.f32 0.0, %v1312
  %v1314 = vpop.f32.mrf.mxu0
  %v1315 = vadd.f32 0.0, %v1314
  %1316 = vmatmul.bf16.gmra.mxu0 %v1215
  %v1317 = vpop.f32.mrf.mxu0
  %v1318 = vadd.f32 0.0, %v1317
  %v1319 = vpop.f32.mrf.mxu0
  %v1320 = vadd.f32 0.0, %v1319
  %1321 = vmatmul.bf16.gmra.mxu0 %v1216
  %v1322 = vpop.f32.mrf.mxu0
  %v1323 = vadd.f32 0.0, %v1322
  %v1324 = vpop.f32.mrf.mxu0
  %v1325 = vadd.f32 0.0, %v1324
  %1326 = vmatmul.bf16.gmra.mxu0 %v1217
  %v1327 = vpop.f32.mrf.mxu0
  %v1328 = vadd.f32 0.0, %v1327
  %v1329 = vpop.f32.mrf.mxu0
  %v1330 = vadd.f32 0.0, %v1329
  %1331 = vmatmul.bf16.gmra.mxu0 %v1218
  %v1332 = vpop.f32.mrf.mxu0
  %v1333 = vadd.f32 0.0, %v1332
  %v1334 = vpop.f32.mrf.mxu0
  %v1335 = vadd.f32 0.0, %v1334
  %1336 = vmatmul.bf16.gmra.mxu0 %v1219
  %v1337 = vpop.f32.mrf.mxu0
  %v1338 = vadd.f32 0.0, %v1337
  %v1339 = vpop.f32.mrf.mxu0
  %v1340 = vadd.f32 0.0, %v1339
  %1341 = vdwg.mxu0
  %v1342 = vpack.c.bf16 %v1305, %v1303
  %v1343 = vpack.c.bf16 %v1310, %v1308
  %v1344 = vpack.c.bf16 %v1315, %v1313
  %v1345 = vpack.c.bf16 %v1320, %v1318
  %v1346 = vpack.c.bf16 %v1325, %v1323
  %v1347 = vpack.c.bf16 %v1330, %v1328
  %v1348 = vpack.c.bf16 %v1335, %v1333
  %v1349 = vpack.c.bf16 %v1340, %v1338
  %1350 = vmatpush.bf16.msra.mxu0 %v1349
  %1351 = vmatpush.bf16.msra.mxu0 %v1348
  %1352 = vmatpush.bf16.msra.mxu0 %v1347
  %1353 = vmatpush.bf16.msra.mxu0 %v1346
  %1354 = vmatpush.bf16.msra.mxu0 %v1345
  %1355 = vmatpush.bf16.msra.mxu0 %v1344
  %1356 = vmatpush.bf16.msra.mxu0 %v1343
  %1357 = vmatpush.bf16.msra.mxu0 %v1342
  %1358 = vmatmul.bf16.gmra.mxu0 %v1074
  %v1359 = vpop.f32.mrf.mxu0
  %v1360 = vadd.f32 0.0, %v1359
  %v1361 = vpop.f32.mrf.mxu0
  %v1362 = vadd.f32 0.0, %v1361
  %1363 = vmatmul.bf16.gmra.mxu0 %v1075
  %v1364 = vpop.f32.mrf.mxu0
  %v1365 = vadd.f32 0.0, %v1364
  %v1366 = vpop.f32.mrf.mxu0
  %v1367 = vadd.f32 0.0, %v1366
  %1368 = vmatmul.bf16.gmra.mxu0 %v1076
  %v1369 = vpop.f32.mrf.mxu0
  %v1370 = vadd.f32 0.0, %v1369
  %v1371 = vpop.f32.mrf.mxu0
  %v1372 = vadd.f32 0.0, %v1371
  %1373 = vmatmul.bf16.gmra.mxu0 %v1077
  %v1374 = vpop.f32.mrf.mxu0
  %v1375 = vadd.f32 0.0, %v1374
  %v1376 = vpop.f32.mrf.mxu0
  %v1377 = vadd.f32 0.0, %v1376
  %1378 = vmatmul.bf16.gmra.mxu0 %v1078
  %v1379 = vpop.f32.mrf.mxu0
  %v1380 = vadd.f32 0.0, %v1379
  %v1381 = vpop.f32.mrf.mxu0
  %v1382 = vadd.f32 0.0, %v1381
  %1383 = vmatmul.bf16.gmra.mxu0 %v1079
  %v1384 = vpop.f32.mrf.mxu0
  %v1385 = vadd.f32 0.0, %v1384
  %v1386 = vpop.f32.mrf.mxu0
  %v1387 = vadd.f32 0.0, %v1386
  %1388 = vmatmul.bf16.gmra.mxu0 %v1080
  %v1389 = vpop.f32.mrf.mxu0
  %v1390 = vadd.f32 0.0, %v1389
  %v1391 = vpop.f32.mrf.mxu0
  %v1392 = vadd.f32 0.0, %v1391
  %1393 = vmatmul.bf16.gmra.mxu0 %v1081
  %v1394 = vpop.f32.mrf.mxu0
  %v1395 = vadd.f32 0.0, %v1394
  %v1396 = vpop.f32.mrf.mxu0
  %v1397 = vadd.f32 0.0, %v1396
  %1398 = vdwg.mxu0
  %v1399 = vsub.f32 %v980, %v1360
  %v1400 = vsub.f32 %v981, %v1362
  %v1401 = vsub.f32 %v982, %v1365
  %v1402 = vsub.f32 %v983, %v1367
  %v1403 = vsub.f32 %v984, %v1370
  %v1404 = vsub.f32 %v985, %v1372
  %v1405 = vsub.f32 %v986, %v1375
  %v1406 = vsub.f32 %v987, %v1377
  %v1407 = vsub.f32 %v988, %v1380
  %v1408 = vsub.f32 %v989, %v1382
  %v1409 = vsub.f32 %v990, %v1385
  %v1410 = vsub.f32 %v991, %v1387
  %v1411 = vsub.f32 %v992, %v1390
  %v1412 = vsub.f32 %v993, %v1392
  %v1413 = vsub.f32 %v994, %v1395
  %v1414 = vsub.f32 %v995, %v1397
  %v1415 = vpack.c.bf16 %v1400, %v1399
  %v1416 = vpack.c.bf16 %v1402, %v1401
  %v1417 = vpack.c.bf16 %v1404, %v1403
  %v1418 = vpack.c.bf16 %v1406, %v1405
  %v1419 = vpack.c.bf16 %v1408, %v1407
  %v1420 = vpack.c.bf16 %v1410, %v1409
  %v1421 = vpack.c.bf16 %v1412, %v1411
  %v1422 = vpack.c.bf16 %v1414, %v1413
  %1423 = vmatpush.bf16.msra.mxu0 %v1422
  %1424 = vmatpush.bf16.msra.mxu0 %v1421
  %1425 = vmatpush.bf16.msra.mxu0 %v1420
  %1426 = vmatpush.bf16.msra.mxu0 %v1419
  %1427 = vmatpush.bf16.msra.mxu0 %v1418
  %1428 = vmatpush.bf16.msra.mxu0 %v1417
  %1429 = vmatpush.bf16.msra.mxu0 %v1416
  %1430 = vmatpush.bf16.msra.mxu0 %v1415
  %1431 = vmatmul.bf16.gmra.mxu0 %v1342
  %v1432 = vpop.f32.mrf.mxu0
  %v1433 = vadd.f32 0.0, %v1432
  %v1434 = vpop.f32.mrf.mxu0
  %v1435 = vadd.f32 0.0, %v1434
  %1436 = vmatmul.bf16.gmra.mxu0 %v1343
  %v1437 = vpop.f32.mrf.mxu0
  %v1438 = vadd.f32 0.0, %v1437
  %v1439 = vpop.f32.mrf.mxu0
  %v1440 = vadd.f32 0.0, %v1439
  %1441 = vmatmul.bf16.gmra.mxu0 %v1344
  %v1442 = vpop.f32.mrf.mxu0
  %v1443 = vadd.f32 0.0, %v1442
  %v1444 = vpop.f32.mrf.mxu0
  %v1445 = vadd.f32 0.0, %v1444
  %1446 = vmatmul.bf16.gmra.mxu0 %v1345
  %v1447 = vpop.f32.mrf.mxu0
  %v1448 = vadd.f32 0.0, %v1447
  %v1449 = vpop.f32.mrf.mxu0
  %v1450 = vadd.f32 0.0, %v1449
  %1451 = vmatmul.bf16.gmra.mxu0 %v1346
  %v1452 = vpop.f32.mrf.mxu0
  %v1453 = vadd.f32 0.0, %v1452
  %v1454 = vpop.f32.mrf.mxu0
  %v1455 = vadd.f32 0.0, %v1454
  %1456 = vmatmul.bf16.gmra.mxu0 %v1347
  %v1457 = vpop.f32.mrf.mxu0
  %v1458 = vadd.f32 0.0, %v1457
  %v1459 = vpop.f32.mrf.mxu0
  %v1460 = vadd.f32 0.0, %v1459
  %1461 = vmatmul.bf16.gmra.mxu0 %v1348
  %v1462 = vpop.f32.mrf.mxu0
  %v1463 = vadd.f32 0.0, %v1462
  %v1464 = vpop.f32.mrf.mxu0
  %v1465 = vadd.f32 0.0, %v1464
  %1466 = vmatmul.bf16.gmra.mxu0 %v1349
  %v1467 = vpop.f32.mrf.mxu0
  %v1468 = vadd.f32 0.0, %v1467
  %v1469 = vpop.f32.mrf.mxu0
  %v1470 = vadd.f32 0.0, %v1469
  %1471 = vdwg.mxu0
  %v1472 = vpack.c.bf16 %v1435, %v1433
  %v1473 = vpack.c.bf16 %v1440, %v1438
  %v1474 = vpack.c.bf16 %v1445, %v1443
  %v1475 = vpack.c.bf16 %v1450, %v1448
  %v1476 = vpack.c.bf16 %v1455, %v1453
  %v1477 = vpack.c.bf16 %v1460, %v1458
  %v1478 = vpack.c.bf16 %v1465, %v1463
  %v1479 = vpack.c.bf16 %v1470, %v1468
  %1480 = vmatpush.bf16.msra.mxu0 %v1479
  %1481 = vmatpush.bf16.msra.mxu0 %v1478
  %1482 = vmatpush.bf16.msra.mxu0 %v1477
  %1483 = vmatpush.bf16.msra.mxu0 %v1476
  %1484 = vmatpush.bf16.msra.mxu0 %v1475
  %1485 = vmatpush.bf16.msra.mxu0 %v1474
  %1486 = vmatpush.bf16.msra.mxu0 %v1473
  %1487 = vmatpush.bf16.msra.mxu0 %v1472
  %1488 = vmatmul.bf16.gmra.mxu0 %v1074
  %v1489 = vpop.f32.mrf.mxu0
  %v1490 = vadd.f32 0.0, %v1489
  %v1491 = vpop.f32.mrf.mxu0
  %v1492 = vadd.f32 0.0, %v1491
  %1493 = vmatmul.bf16.gmra.mxu0 %v1075
  %v1494 = vpop.f32.mrf.mxu0
  %v1495 = vadd.f32 0.0, %v1494
  %v1496 = vpop.f32.mrf.mxu0
  %v1497 = vadd.f32 0.0, %v1496
  %1498 = vmatmul.bf16.gmra.mxu0 %v1076
  %v1499 = vpop.f32.mrf.mxu0
  %v1500 = vadd.f32 0.0, %v1499
  %v1501 = vpop.f32.mrf.mxu0
  %v1502 = vadd.f32 0.0, %v1501
  %1503 = vmatmul.bf16.gmra.mxu0 %v1077
  %v1504 = vpop.f32.mrf.mxu0
  %v1505 = vadd.f32 0.0, %v1504
  %v1506 = vpop.f32.mrf.mxu0
  %v1507 = vadd.f32 0.0, %v1506
  %1508 = vmatmul.bf16.gmra.mxu0 %v1078
  %v1509 = vpop.f32.mrf.mxu0
  %v1510 = vadd.f32 0.0, %v1509
  %v1511 = vpop.f32.mrf.mxu0
  %v1512 = vadd.f32 0.0, %v1511
  %1513 = vmatmul.bf16.gmra.mxu0 %v1079
  %v1514 = vpop.f32.mrf.mxu0
  %v1515 = vadd.f32 0.0, %v1514
  %v1516 = vpop.f32.mrf.mxu0
  %v1517 = vadd.f32 0.0, %v1516
  %1518 = vmatmul.bf16.gmra.mxu0 %v1080
  %v1519 = vpop.f32.mrf.mxu0
  %v1520 = vadd.f32 0.0, %v1519
  %v1521 = vpop.f32.mrf.mxu0
  %v1522 = vadd.f32 0.0, %v1521
  %1523 = vmatmul.bf16.gmra.mxu0 %v1081
  %v1524 = vpop.f32.mrf.mxu0
  %v1525 = vadd.f32 0.0, %v1524
  %v1526 = vpop.f32.mrf.mxu0
  %v1527 = vadd.f32 0.0, %v1526
  %1528 = vdwg.mxu0
  %v1529 = vsub.f32 %v980, %v1490
  %v1530 = vsub.f32 %v981, %v1492
  %v1531 = vsub.f32 %v982, %v1495
  %v1532 = vsub.f32 %v983, %v1497
  %v1533 = vsub.f32 %v984, %v1500
  %v1534 = vsub.f32 %v985, %v1502
  %v1535 = vsub.f32 %v986, %v1505
  %v1536 = vsub.f32 %v987, %v1507
  %v1537 = vsub.f32 %v988, %v1510
  %v1538 = vsub.f32 %v989, %v1512
  %v1539 = vsub.f32 %v990, %v1515
  %v1540 = vsub.f32 %v991, %v1517
  %v1541 = vsub.f32 %v992, %v1520
  %v1542 = vsub.f32 %v993, %v1522
  %v1543 = vsub.f32 %v994, %v1525
  %v1544 = vsub.f32 %v995, %v1527
  %v1545 = vpack.c.bf16 %v1530, %v1529
  %v1546 = vpack.c.bf16 %v1532, %v1531
  %v1547 = vpack.c.bf16 %v1534, %v1533
  %v1548 = vpack.c.bf16 %v1536, %v1535
  %v1549 = vpack.c.bf16 %v1538, %v1537
  %v1550 = vpack.c.bf16 %v1540, %v1539
  %v1551 = vpack.c.bf16 %v1542, %v1541
  %v1552 = vpack.c.bf16 %v1544, %v1543
  %1553 = vmatpush.bf16.msra.mxu0 %v1552
  %1554 = vmatpush.bf16.msra.mxu0 %v1551
  %1555 = vmatpush.bf16.msra.mxu0 %v1550
  %1556 = vmatpush.bf16.msra.mxu0 %v1549
  %1557 = vmatpush.bf16.msra.mxu0 %v1548
  %1558 = vmatpush.bf16.msra.mxu0 %v1547
  %1559 = vmatpush.bf16.msra.mxu0 %v1546
  %1560 = vmatpush.bf16.msra.mxu0 %v1545
  %1561 = vmatmul.bf16.gmra.mxu0 %v1472
  %v1562 = vpop.f32.mrf.mxu0
  %v1563 = vadd.f32 0.0, %v1562
  %v1564 = vpop.f32.mrf.mxu0
  %v1565 = vadd.f32 0.0, %v1564
  %1566 = vmatmul.bf16.gmra.mxu0 %v1473
  %v1567 = vpop.f32.mrf.mxu0
  %v1568 = vadd.f32 0.0, %v1567
  %v1569 = vpop.f32.mrf.mxu0
  %v1570 = vadd.f32 0.0, %v1569
  %1571 = vmatmul.bf16.gmra.mxu0 %v1474
  %v1572 = vpop.f32.mrf.mxu0
  %v1573 = vadd.f32 0.0, %v1572
  %v1574 = vpop.f32.mrf.mxu0
  %v1575 = vadd.f32 0.0, %v1574
  %1576 = vmatmul.bf16.gmra.mxu0 %v1475
  %v1577 = vpop.f32.mrf.mxu0
  %v1578 = vadd.f32 0.0, %v1577
  %v1579 = vpop.f32.mrf.mxu0
  %v1580 = vadd.f32 0.0, %v1579
  %1581 = vmatmul.bf16.gmra.mxu0 %v1476
  %v1582 = vpop.f32.mrf.mxu0
  %v1583 = vadd.f32 0.0, %v1582
  %v1584 = vpop.f32.mrf.mxu0
  %v1585 = vadd.f32 0.0, %v1584
  %1586 = vmatmul.bf16.gmra.mxu0 %v1477
  %v1587 = vpop.f32.mrf.mxu0
  %v1588 = vadd.f32 0.0, %v1587
  %v1589 = vpop.f32.mrf.mxu0
  %v1590 = vadd.f32 0.0, %v1589
  %1591 = vmatmul.bf16.gmra.mxu0 %v1478
  %v1592 = vpop.f32.mrf.mxu0
  %v1593 = vadd.f32 0.0, %v1592
  %v1594 = vpop.f32.mrf.mxu0
  %v1595 = vadd.f32 0.0, %v1594
  %1596 = vmatmul.bf16.gmra.mxu0 %v1479
  %v1597 = vpop.f32.mrf.mxu0
  %v1598 = vadd.f32 0.0, %v1597
  %v1599 = vpop.f32.mrf.mxu0
  %v1600 = vadd.f32 0.0, %v1599
  %1601 = vdwg.mxu0
  %v1602 = vpack.c.bf16 %v1565, %v1563
  %v1603 = vpack.c.bf16 %v1570, %v1568
  %v1604 = vpack.c.bf16 %v1575, %v1573
  %v1605 = vpack.c.bf16 %v1580, %v1578
  %v1606 = vpack.c.bf16 %v1585, %v1583
  %v1607 = vpack.c.bf16 %v1590, %v1588
  %v1608 = vpack.c.bf16 %v1595, %v1593
  %v1609 = vpack.c.bf16 %v1600, %v1598
  %1610 = vmatpush.bf16.msra.mxu0 %v1609
  %1611 = vmatpush.bf16.msra.mxu0 %v1608
  %1612 = vmatpush.bf16.msra.mxu0 %v1607
  %1613 = vmatpush.bf16.msra.mxu0 %v1606
  %1614 = vmatpush.bf16.msra.mxu0 %v1605
  %1615 = vmatpush.bf16.msra.mxu0 %v1604
  %1616 = vmatpush.bf16.msra.mxu0 %v1603
  %1617 = vmatpush.bf16.msra.mxu0 %v1602
  %1618 = vmatmul.bf16.gmra.mxu0 %v1074
  %v1619 = vpop.f32.mrf.mxu0
  %v1620 = vadd.f32 0.0, %v1619
  %v1621 = vpop.f32.mrf.mxu0
  %v1622 = vadd.f32 0.0, %v1621
  %1623 = vmatmul.bf16.gmra.mxu0 %v1075
  %v1624 = vpop.f32.mrf.mxu0
  %v1625 = vadd.f32 0.0, %v1624
  %v1626 = vpop.f32.mrf.mxu0
  %v1627 = vadd.f32 0.0, %v1626
  %1628 = vmatmul.bf16.gmra.mxu0 %v1076
  %v1629 = vpop.f32.mrf.mxu0
  %v1630 = vadd.f32 0.0, %v1629
  %v1631 = vpop.f32.mrf.mxu0
  %v1632 = vadd.f32 0.0, %v1631
  %1633 = vmatmul.bf16.gmra.mxu0 %v1077
  %v1634 = vpop.f32.mrf.mxu0
  %v1635 = vadd.f32 0.0, %v1634
  %v1636 = vpop.f32.mrf.mxu0
  %v1637 = vadd.f32 0.0, %v1636
  %1638 = vmatmul.bf16.gmra.mxu0 %v1078
  %v1639 = vpop.f32.mrf.mxu0
  %v1640 = vadd.f32 0.0, %v1639
  %v1641 = vpop.f32.mrf.mxu0
  %v1642 = vadd.f32 0.0, %v1641
  %1643 = vmatmul.bf16.gmra.mxu0 %v1079
  %v1644 = vpop.f32.mrf.mxu0
  %v1645 = vadd.f32 0.0, %v1644
  %v1646 = vpop.f32.mrf.mxu0
  %v1647 = vadd.f32 0.0, %v1646
  %1648 = vmatmul.bf16.gmra.mxu0 %v1080
  %v1649 = vpop.f32.mrf.mxu0
  %v1650 = vadd.f32 0.0, %v1649
  %v1651 = vpop.f32.mrf.mxu0
  %v1652 = vadd.f32 0.0, %v1651
  %1653 = vmatmul.bf16.gmra.mxu0 %v1081
  %v1654 = vpop.f32.mrf.mxu0
  %v1655 = vadd.f32 0.0, %v1654
  %v1656 = vpop.f32.mrf.mxu0
  %v1657 = vadd.f32 0.0, %v1656
  %1658 = vdwg.mxu0
  %v1659 = vsub.f32 %v980, %v1620
  %v1660 = vsub.f32 %v981, %v1622
  %v1661 = vsub.f32 %v982, %v1625
  %v1662 = vsub.f32 %v983, %v1627
  %v1663 = vsub.f32 %v984, %v1630
  %v1664 = vsub.f32 %v985, %v1632
  %v1665 = vsub.f32 %v986, %v1635
  %v1666 = vsub.f32 %v987, %v1637
  %v1667 = vsub.f32 %v988, %v1640
  %v1668 = vsub.f32 %v989, %v1642
  %v1669 = vsub.f32 %v990, %v1645
  %v1670 = vsub.f32 %v991, %v1647
  %v1671 = vsub.f32 %v992, %v1650
  %v1672 = vsub.f32 %v993, %v1652
  %v1673 = vsub.f32 %v994, %v1655
  %v1674 = vsub.f32 %v995, %v1657
  %v1675 = vpack.c.bf16 %v1660, %v1659
  %v1676 = vpack.c.bf16 %v1662, %v1661
  %v1677 = vpack.c.bf16 %v1664, %v1663
  %v1678 = vpack.c.bf16 %v1666, %v1665
  %v1679 = vpack.c.bf16 %v1668, %v1667
  %v1680 = vpack.c.bf16 %v1670, %v1669
  %v1681 = vpack.c.bf16 %v1672, %v1671
  %v1682 = vpack.c.bf16 %v1674, %v1673
  %1683 = vmatpush.bf16.msra.mxu0 %v1682
  %1684 = vmatpush.bf16.msra.mxu0 %v1681
  %1685 = vmatpush.bf16.msra.mxu0 %v1680
  %1686 = vmatpush.bf16.msra.mxu0 %v1679
  %1687 = vmatpush.bf16.msra.mxu0 %v1678
  %1688 = vmatpush.bf16.msra.mxu0 %v1677
  %1689 = vmatpush.bf16.msra.mxu0 %v1676
  %1690 = vmatpush.bf16.msra.mxu0 %v1675
  %1691 = vmatmul.bf16.gmra.mxu0 %v1602
  %v1692 = vpop.f32.mrf.mxu0
  %v1693 = vadd.f32 0.0, %v1692
  %v1694 = vpop.f32.mrf.mxu0
  %v1695 = vadd.f32 0.0, %v1694
  %1696 = vmatmul.bf16.gmra.mxu0 %v1603
  %v1697 = vpop.f32.mrf.mxu0
  %v1698 = vadd.f32 0.0, %v1697
  %v1699 = vpop.f32.mrf.mxu0
  %v1700 = vadd.f32 0.0, %v1699
  %1701 = vmatmul.bf16.gmra.mxu0 %v1604
  %v1702 = vpop.f32.mrf.mxu0
  %v1703 = vadd.f32 0.0, %v1702
  %v1704 = vpop.f32.mrf.mxu0
  %v1705 = vadd.f32 0.0, %v1704
  %1706 = vmatmul.bf16.gmra.mxu0 %v1605
  %v1707 = vpop.f32.mrf.mxu0
  %v1708 = vadd.f32 0.0, %v1707
  %v1709 = vpop.f32.mrf.mxu0
  %v1710 = vadd.f32 0.0, %v1709
  %1711 = vmatmul.bf16.gmra.mxu0 %v1606
  %v1712 = vpop.f32.mrf.mxu0
  %v1713 = vadd.f32 0.0, %v1712
  %v1714 = vpop.f32.mrf.mxu0
  %v1715 = vadd.f32 0.0, %v1714
  %1716 = vmatmul.bf16.gmra.mxu0 %v1607
  %v1717 = vpop.f32.mrf.mxu0
  %v1718 = vadd.f32 0.0, %v1717
  %v1719 = vpop.f32.mrf.mxu0
  %v1720 = vadd.f32 0.0, %v1719
  %1721 = vmatmul.bf16.gmra.mxu0 %v1608
  %v1722 = vpop.f32.mrf.mxu0
  %v1723 = vadd.f32 0.0, %v1722
  %v1724 = vpop.f32.mrf.mxu0
  %v1725 = vadd.f32 0.0, %v1724
  %1726 = vmatmul.bf16.gmra.mxu0 %v1609
  %v1727 = vpop.f32.mrf.mxu0
  %v1728 = vadd.f32 0.0, %v1727
  %v1729 = vpop.f32.mrf.mxu0
  %v1730 = vadd.f32 0.0, %v1729
  %1731 = vdwg.mxu0
  %v1732 = vpack.c.bf16 %v1695, %v1693
  %v1733 = vpack.c.bf16 %v1700, %v1698
  %v1734 = vpack.c.bf16 %v1705, %v1703
  %v1735 = vpack.c.bf16 %v1710, %v1708
  %v1736 = vpack.c.bf16 %v1715, %v1713
  %v1737 = vpack.c.bf16 %v1720, %v1718
  %v1738 = vpack.c.bf16 %v1725, %v1723
  %v1739 = vpack.c.bf16 %v1730, %v1728
  %1740 = vmatpush.bf16.msra.mxu0 %v1739
  %1741 = vmatpush.bf16.msra.mxu0 %v1738
  %1742 = vmatpush.bf16.msra.mxu0 %v1737
  %1743 = vmatpush.bf16.msra.mxu0 %v1736
  %1744 = vmatpush.bf16.msra.mxu0 %v1735
  %1745 = vmatpush.bf16.msra.mxu0 %v1734
  %1746 = vmatpush.bf16.msra.mxu0 %v1733
  %1747 = vmatpush.bf16.msra.mxu0 %v1732
  %1748 = vmatmul.bf16.gmra.mxu0 %v1074
  %v1749 = vpop.f32.mrf.mxu0
  %v1750 = vadd.f32 0.0, %v1749
  %v1751 = vpop.f32.mrf.mxu0
  %v1752 = vadd.f32 0.0, %v1751
  %1753 = vmatmul.bf16.gmra.mxu0 %v1075
  %v1754 = vpop.f32.mrf.mxu0
  %v1755 = vadd.f32 0.0, %v1754
  %v1756 = vpop.f32.mrf.mxu0
  %v1757 = vadd.f32 0.0, %v1756
  %1758 = vmatmul.bf16.gmra.mxu0 %v1076
  %v1759 = vpop.f32.mrf.mxu0
  %v1760 = vadd.f32 0.0, %v1759
  %v1761 = vpop.f32.mrf.mxu0
  %v1762 = vadd.f32 0.0, %v1761
  %1763 = vmatmul.bf16.gmra.mxu0 %v1077
  %v1764 = vpop.f32.mrf.mxu0
  %v1765 = vadd.f32 0.0, %v1764
  %v1766 = vpop.f32.mrf.mxu0
  %v1767 = vadd.f32 0.0, %v1766
  %1768 = vmatmul.bf16.gmra.mxu0 %v1078
  %v1769 = vpop.f32.mrf.mxu0
  %v1770 = vadd.f32 0.0, %v1769
  %v1771 = vpop.f32.mrf.mxu0
  %v1772 = vadd.f32 0.0, %v1771
  %1773 = vmatmul.bf16.gmra.mxu0 %v1079
  %v1774 = vpop.f32.mrf.mxu0
  %v1775 = vadd.f32 0.0, %v1774
  %v1776 = vpop.f32.mrf.mxu0
  %v1777 = vadd.f32 0.0, %v1776
  %1778 = vmatmul.bf16.gmra.mxu0 %v1080
  %v1779 = vpop.f32.mrf.mxu0
  %v1780 = vadd.f32 0.0, %v1779
  %v1781 = vpop.f32.mrf.mxu0
  %v1782 = vadd.f32 0.0, %v1781
  %1783 = vmatmul.bf16.gmra.mxu0 %v1081
  %v1784 = vpop.f32.mrf.mxu0
  %v1785 = vadd.f32 0.0, %v1784
  %v1786 = vpop.f32.mrf.mxu0
  %v1787 = vadd.f32 0.0, %v1786
  %1788 = vdwg.mxu0
  %v1789 = vsub.f32 %v980, %v1750
  %v1790 = vsub.f32 %v981, %v1752
  %v1791 = vsub.f32 %v982, %v1755
  %v1792 = vsub.f32 %v983, %v1757
  %v1793 = vsub.f32 %v984, %v1760
  %v1794 = vsub.f32 %v985, %v1762
  %v1795 = vsub.f32 %v986, %v1765
  %v1796 = vsub.f32 %v987, %v1767
  %v1797 = vsub.f32 %v988, %v1770
  %v1798 = vsub.f32 %v989, %v1772
  %v1799 = vsub.f32 %v990, %v1775
  %v1800 = vsub.f32 %v991, %v1777
  %v1801 = vsub.f32 %v992, %v1780
  %v1802 = vsub.f32 %v993, %v1782
  %v1803 = vsub.f32 %v994, %v1785
  %v1804 = vsub.f32 %v995, %v1787
  %v1805 = vpack.c.bf16 %v1790, %v1789
  %v1806 = vpack.c.bf16 %v1792, %v1791
  %v1807 = vpack.c.bf16 %v1794, %v1793
  %v1808 = vpack.c.bf16 %v1796, %v1795
  %v1809 = vpack.c.bf16 %v1798, %v1797
  %v1810 = vpack.c.bf16 %v1800, %v1799
  %v1811 = vpack.c.bf16 %v1802, %v1801
  %v1812 = vpack.c.bf16 %v1804, %v1803
  %1813 = vmatpush.bf16.msra.mxu0 %v1812
  %1814 = vmatpush.bf16.msra.mxu0 %v1811
  %1815 = vmatpush.bf16.msra.mxu0 %v1810
  %1816 = vmatpush.bf16.msra.mxu0 %v1809
  %1817 = vmatpush.bf16.msra.mxu0 %v1808
  %1818 = vmatpush.bf16.msra.mxu0 %v1807
  %1819 = vmatpush.bf16.msra.mxu0 %v1806
  %1820 = vmatpush.bf16.msra.mxu0 %v1805
  %1821 = vmatmul.bf16.gmra.mxu0 %v1732
  %v1822 = vpop.f32.mrf.mxu0
  %v1823 = vadd.f32 0.0, %v1822
  %v1824 = vpop.f32.mrf.mxu0
  %v1825 = vadd.f32 0.0, %v1824
  %1826 = vmatmul.bf16.gmra.mxu0 %v1733
  %v1827 = vpop.f32.mrf.mxu0
  %v1828 = vadd.f32 0.0, %v1827
  %v1829 = vpop.f32.mrf.mxu0
  %v1830 = vadd.f32 0.0, %v1829
  %1831 = vmatmul.bf16.gmra.mxu0 %v1734
  %v1832 = vpop.f32.mrf.mxu0
  %v1833 = vadd.f32 0.0, %v1832
  %v1834 = vpop.f32.mrf.mxu0
  %v1835 = vadd.f32 0.0, %v1834
  %1836 = vmatmul.bf16.gmra.mxu0 %v1735
  %v1837 = vpop.f32.mrf.mxu0
  %v1838 = vadd.f32 0.0, %v1837
  %v1839 = vpop.f32.mrf.mxu0
  %v1840 = vadd.f32 0.0, %v1839
  %1841 = vmatmul.bf16.gmra.mxu0 %v1736
  %v1842 = vpop.f32.mrf.mxu0
  %v1843 = vadd.f32 0.0, %v1842
  %v1844 = vpop.f32.mrf.mxu0
  %v1845 = vadd.f32 0.0, %v1844
  %1846 = vmatmul.bf16.gmra.mxu0 %v1737
  %v1847 = vpop.f32.mrf.mxu0
  %v1848 = vadd.f32 0.0, %v1847
  %v1849 = vpop.f32.mrf.mxu0
  %v1850 = vadd.f32 0.0, %v1849
  %1851 = vmatmul.bf16.gmra.mxu0 %v1738
  %v1852 = vpop.f32.mrf.mxu0
  %v1853 = vadd.f32 0.0, %v1852
  %v1854 = vpop.f32.mrf.mxu0
  %v1855 = vadd.f32 0.0, %v1854
  %1856 = vmatmul.bf16.gmra.mxu0 %v1739
  %v1857 = vpop.f32.mrf.mxu0
  %v1858 = vadd.f32 0.0, %v1857
  %v1859 = vpop.f32.mrf.mxu0
  %v1860 = vadd.f32 0.0, %v1859
  %1861 = vdwg.mxu0
  %v1862 = vpack.c.bf16 %v1825, %v1823
  %v1863 = vpack.c.bf16 %v1830, %v1828
  %v1864 = vpack.c.bf16 %v1835, %v1833
  %v1865 = vpack.c.bf16 %v1840, %v1838
  %v1866 = vpack.c.bf16 %v1845, %v1843
  %v1867 = vpack.c.bf16 %v1850, %v1848
  %v1868 = vpack.c.bf16 %v1855, %v1853
  %v1869 = vpack.c.bf16 %v1860, %v1858
  %1870 = vmatpush.bf16.msra.mxu0 %v1869
  %1871 = vmatpush.bf16.msra.mxu0 %v1868
  %1872 = vmatpush.bf16.msra.mxu0 %v1867
  %1873 = vmatpush.bf16.msra.mxu0 %v1866
  %1874 = vmatpush.bf16.msra.mxu0 %v1865
  %1875 = vmatpush.bf16.msra.mxu0 %v1864
  %1876 = vmatpush.bf16.msra.mxu0 %v1863
  %1877 = vmatpush.bf16.msra.mxu0 %v1862
  %1878 = vmatmul.bf16.gmra.mxu0 %v1074
  %v1879 = vpop.f32.mrf.mxu0
  %v1880 = vadd.f32 0.0, %v1879
  %v1881 = vpop.f32.mrf.mxu0
  %v1882 = vadd.f32 0.0, %v1881
  %1883 = vmatmul.bf16.gmra.mxu0 %v1075
  %v1884 = vpop.f32.mrf.mxu0
  %v1885 = vadd.f32 0.0, %v1884
  %v1886 = vpop.f32.mrf.mxu0
  %v1887 = vadd.f32 0.0, %v1886
  %1888 = vmatmul.bf16.gmra.mxu0 %v1076
  %v1889 = vpop.f32.mrf.mxu0
  %v1890 = vadd.f32 0.0, %v1889
  %v1891 = vpop.f32.mrf.mxu0
  %v1892 = vadd.f32 0.0, %v1891
  %1893 = vmatmul.bf16.gmra.mxu0 %v1077
  %v1894 = vpop.f32.mrf.mxu0
  %v1895 = vadd.f32 0.0, %v1894
  %v1896 = vpop.f32.mrf.mxu0
  %v1897 = vadd.f32 0.0, %v1896
  %1898 = vmatmul.bf16.gmra.mxu0 %v1078
  %v1899 = vpop.f32.mrf.mxu0
  %v1900 = vadd.f32 0.0, %v1899
  %v1901 = vpop.f32.mrf.mxu0
  %v1902 = vadd.f32 0.0, %v1901
  %1903 = vmatmul.bf16.gmra.mxu0 %v1079
  %v1904 = vpop.f32.mrf.mxu0
  %v1905 = vadd.f32 0.0, %v1904
  %v1906 = vpop.f32.mrf.mxu0
  %v1907 = vadd.f32 0.0, %v1906
  %1908 = vmatmul.bf16.gmra.mxu0 %v1080
  %v1909 = vpop.f32.mrf.mxu0
  %v1910 = vadd.f32 0.0, %v1909
  %v1911 = vpop.f32.mrf.mxu0
  %v1912 = vadd.f32 0.0, %v1911
  %1913 = vmatmul.bf16.gmra.mxu0 %v1081
  %v1914 = vpop.f32.mrf.mxu0
  %v1915 = vadd.f32 0.0, %v1914
  %v1916 = vpop.f32.mrf.mxu0
  %v1917 = vadd.f32 0.0, %v1916
  %1918 = vdwg.mxu0
  %v1919 = vsub.f32 %v980, %v1880
  %v1920 = vsub.f32 %v981, %v1882
  %v1921 = vsub.f32 %v982, %v1885
  %v1922 = vsub.f32 %v983, %v1887
  %v1923 = vsub.f32 %v984, %v1890
  %v1924 = vsub.f32 %v985, %v1892
  %v1925 = vsub.f32 %v986, %v1895
  %v1926 = vsub.f32 %v987, %v1897
  %v1927 = vsub.f32 %v988, %v1900
  %v1928 = vsub.f32 %v989, %v1902
  %v1929 = vsub.f32 %v990, %v1905
  %v1930 = vsub.f32 %v991, %v1907
  %v1931 = vsub.f32 %v992, %v1910
  %v1932 = vsub.f32 %v993, %v1912
  %v1933 = vsub.f32 %v994, %v1915
  %v1934 = vsub.f32 %v995, %v1917
  %v1935 = vpack.c.bf16 %v1920, %v1919
  %v1936 = vpack.c.bf16 %v1922, %v1921
  %v1937 = vpack.c.bf16 %v1924, %v1923
  %v1938 = vpack.c.bf16 %v1926, %v1925
  %v1939 = vpack.c.bf16 %v1928, %v1927
  %v1940 = vpack.c.bf16 %v1930, %v1929
  %v1941 = vpack.c.bf16 %v1932, %v1931
  %v1942 = vpack.c.bf16 %v1934, %v1933
  %1943 = vmatpush.bf16.msra.mxu0 %v1942
  %1944 = vmatpush.bf16.msra.mxu0 %v1941
  %1945 = vmatpush.bf16.msra.mxu0 %v1940
  %1946 = vmatpush.bf16.msra.mxu0 %v1939
  %1947 = vmatpush.bf16.msra.mxu0 %v1938
  %1948 = vmatpush.bf16.msra.mxu0 %v1937
  %1949 = vmatpush.bf16.msra.mxu0 %v1936
  %1950 = vmatpush.bf16.msra.mxu0 %v1935
  %1951 = vmatmul.bf16.gmra.mxu0 %v1862
  %v1952 = vpop.f32.mrf.mxu0
  %v1953 = vadd.f32 0.0, %v1952
  %v1954 = vpop.f32.mrf.mxu0
  %v1955 = vadd.f32 0.0, %v1954
  %1956 = vmatmul.bf16.gmra.mxu0 %v1863
  %v1957 = vpop.f32.mrf.mxu0
  %v1958 = vadd.f32 0.0, %v1957
  %v1959 = vpop.f32.mrf.mxu0
  %v1960 = vadd.f32 0.0, %v1959
  %1961 = vmatmul.bf16.gmra.mxu0 %v1864
  %v1962 = vpop.f32.mrf.mxu0
  %v1963 = vadd.f32 0.0, %v1962
  %v1964 = vpop.f32.mrf.mxu0
  %v1965 = vadd.f32 0.0, %v1964
  %1966 = vmatmul.bf16.gmra.mxu0 %v1865
  %v1967 = vpop.f32.mrf.mxu0
  %v1968 = vadd.f32 0.0, %v1967
  %v1969 = vpop.f32.mrf.mxu0
  %v1970 = vadd.f32 0.0, %v1969
  %1971 = vmatmul.bf16.gmra.mxu0 %v1866
  %v1972 = vpop.f32.mrf.mxu0
  %v1973 = vadd.f32 0.0, %v1972
  %v1974 = vpop.f32.mrf.mxu0
  %v1975 = vadd.f32 0.0, %v1974
  %1976 = vmatmul.bf16.gmra.mxu0 %v1867
  %v1977 = vpop.f32.mrf.mxu0
  %v1978 = vadd.f32 0.0, %v1977
  %v1979 = vpop.f32.mrf.mxu0
  %v1980 = vadd.f32 0.0, %v1979
  %1981 = vmatmul.bf16.gmra.mxu0 %v1868
  %v1982 = vpop.f32.mrf.mxu0
  %v1983 = vadd.f32 0.0, %v1982
  %v1984 = vpop.f32.mrf.mxu0
  %v1985 = vadd.f32 0.0, %v1984
  %1986 = vmatmul.bf16.gmra.mxu0 %v1869
  %v1987 = vpop.f32.mrf.mxu0
  %v1988 = vadd.f32 0.0, %v1987
  %v1989 = vpop.f32.mrf.mxu0
  %v1990 = vadd.f32 0.0, %v1989
  %1991 = vdwg.mxu0
  %v1992 = vpack.c.bf16 %v1955, %v1953
  %v1993 = vpack.c.bf16 %v1960, %v1958
  %v1994 = vpack.c.bf16 %v1965, %v1963
  %v1995 = vpack.c.bf16 %v1970, %v1968
  %v1996 = vpack.c.bf16 %v1975, %v1973
  %v1997 = vpack.c.bf16 %v1980, %v1978
  %v1998 = vpack.c.bf16 %v1985, %v1983
  %v1999 = vpack.c.bf16 %v1990, %v1988
  %2000 = vmatpush.bf16.msra.mxu0 %v1999
  %2001 = vmatpush.bf16.msra.mxu0 %v1998
  %2002 = vmatpush.bf16.msra.mxu0 %v1997
  %2003 = vmatpush.bf16.msra.mxu0 %v1996
  %2004 = vmatpush.bf16.msra.mxu0 %v1995
  %2005 = vmatpush.bf16.msra.mxu0 %v1994
  %2006 = vmatpush.bf16.msra.mxu0 %v1993
  %2007 = vmatpush.bf16.msra.mxu0 %v1992
  %2008 = vmatmul.bf16.gmra.mxu0 %v1074
  %v2009 = vpop.f32.mrf.mxu0
  %v2010 = vadd.f32 0.0, %v2009
  %v2011 = vpop.f32.mrf.mxu0
  %v2012 = vadd.f32 0.0, %v2011
  %2013 = vmatmul.bf16.gmra.mxu0 %v1075
  %v2014 = vpop.f32.mrf.mxu0
  %v2015 = vadd.f32 0.0, %v2014
  %v2016 = vpop.f32.mrf.mxu0
  %v2017 = vadd.f32 0.0, %v2016
  %2018 = vmatmul.bf16.gmra.mxu0 %v1076
  %v2019 = vpop.f32.mrf.mxu0
  %v2020 = vadd.f32 0.0, %v2019
  %v2021 = vpop.f32.mrf.mxu0
  %v2022 = vadd.f32 0.0, %v2021
  %2023 = vmatmul.bf16.gmra.mxu0 %v1077
  %v2024 = vpop.f32.mrf.mxu0
  %v2025 = vadd.f32 0.0, %v2024
  %v2026 = vpop.f32.mrf.mxu0
  %v2027 = vadd.f32 0.0, %v2026
  %2028 = vmatmul.bf16.gmra.mxu0 %v1078
  %v2029 = vpop.f32.mrf.mxu0
  %v2030 = vadd.f32 0.0, %v2029
  %v2031 = vpop.f32.mrf.mxu0
  %v2032 = vadd.f32 0.0, %v2031
  %2033 = vmatmul.bf16.gmra.mxu0 %v1079
  %v2034 = vpop.f32.mrf.mxu0
  %v2035 = vadd.f32 0.0, %v2034
  %v2036 = vpop.f32.mrf.mxu0
  %v2037 = vadd.f32 0.0, %v2036
  %2038 = vmatmul.bf16.gmra.mxu0 %v1080
  %v2039 = vpop.f32.mrf.mxu0
  %v2040 = vadd.f32 0.0, %v2039
  %v2041 = vpop.f32.mrf.mxu0
  %v2042 = vadd.f32 0.0, %v2041
  %2043 = vmatmul.bf16.gmra.mxu0 %v1081
  %v2044 = vpop.f32.mrf.mxu0
  %v2045 = vadd.f32 0.0, %v2044
  %v2046 = vpop.f32.mrf.mxu0
  %v2047 = vadd.f32 0.0, %v2046
  %2048 = vdwg.mxu0
  %v2049 = vsub.f32 %v980, %v2010
  %v2050 = vsub.f32 %v981, %v2012
  %v2051 = vsub.f32 %v982, %v2015
  %v2052 = vsub.f32 %v983, %v2017
  %v2053 = vsub.f32 %v984, %v2020
  %v2054 = vsub.f32 %v985, %v2022
  %v2055 = vsub.f32 %v986, %v2025
  %v2056 = vsub.f32 %v987, %v2027
  %v2057 = vsub.f32 %v988, %v2030
  %v2058 = vsub.f32 %v989, %v2032
  %v2059 = vsub.f32 %v990, %v2035
  %v2060 = vsub.f32 %v991, %v2037
  %v2061 = vsub.f32 %v992, %v2040
  %v2062 = vsub.f32 %v993, %v2042
  %v2063 = vsub.f32 %v994, %v2045
  %v2064 = vsub.f32 %v995, %v2047
  %v2065 = vpack.c.bf16 %v2050, %v2049
  %v2066 = vpack.c.bf16 %v2052, %v2051
  %v2067 = vpack.c.bf16 %v2054, %v2053
  %v2068 = vpack.c.bf16 %v2056, %v2055
  %v2069 = vpack.c.bf16 %v2058, %v2057
  %v2070 = vpack.c.bf16 %v2060, %v2059
  %v2071 = vpack.c.bf16 %v2062, %v2061
  %v2072 = vpack.c.bf16 %v2064, %v2063
  %2073 = vmatpush.bf16.msra.mxu0 %v2072
  %2074 = vmatpush.bf16.msra.mxu0 %v2071
  %2075 = vmatpush.bf16.msra.mxu0 %v2070
  %2076 = vmatpush.bf16.msra.mxu0 %v2069
  %2077 = vmatpush.bf16.msra.mxu0 %v2068
  %2078 = vmatpush.bf16.msra.mxu0 %v2067
  %2079 = vmatpush.bf16.msra.mxu0 %v2066
  %2080 = vmatpush.bf16.msra.mxu0 %v2065
  %2081 = vmatmul.bf16.gmra.mxu0 %v1992
  %v2082 = vpop.f32.mrf.mxu0
  %v2083 = vadd.f32 0.0, %v2082
  %v2084 = vpop.f32.mrf.mxu0
  %v2085 = vadd.f32 0.0, %v2084
  %2086 = vmatmul.bf16.gmra.mxu0 %v1993
  %v2087 = vpop.f32.mrf.mxu0
  %v2088 = vadd.f32 0.0, %v2087
  %v2089 = vpop.f32.mrf.mxu0
  %v2090 = vadd.f32 0.0, %v2089
  %2091 = vmatmul.bf16.gmra.mxu0 %v1994
  %v2092 = vpop.f32.mrf.mxu0
  %v2093 = vadd.f32 0.0, %v2092
  %v2094 = vpop.f32.mrf.mxu0
  %v2095 = vadd.f32 0.0, %v2094
  %2096 = vmatmul.bf16.gmra.mxu0 %v1995
  %v2097 = vpop.f32.mrf.mxu0
  %v2098 = vadd.f32 0.0, %v2097
  %v2099 = vpop.f32.mrf.mxu0
  %v2100 = vadd.f32 0.0, %v2099
  %2101 = vmatmul.bf16.gmra.mxu0 %v1996
  %v2102 = vpop.f32.mrf.mxu0
  %v2103 = vadd.f32 0.0, %v2102
  %v2104 = vpop.f32.mrf.mxu0
  %v2105 = vadd.f32 0.0, %v2104
  %2106 = vmatmul.bf16.gmra.mxu0 %v1997
  %v2107 = vpop.f32.mrf.mxu0
  %v2108 = vadd.f32 0.0, %v2107
  %v2109 = vpop.f32.mrf.mxu0
  %v2110 = vadd.f32 0.0, %v2109
  %2111 = vmatmul.bf16.gmra.mxu0 %v1998
  %v2112 = vpop.f32.mrf.mxu0
  %v2113 = vadd.f32 0.0, %v2112
  %v2114 = vpop.f32.mrf.mxu0
  %v2115 = vadd.f32 0.0, %v2114
  %2116 = vmatmul.bf16.gmra.mxu0 %v1999
  %v2117 = vpop.f32.mrf.mxu0
  %v2118 = vadd.f32 0.0, %v2117
  %v2119 = vpop.f32.mrf.mxu0
  %v2120 = vadd.f32 0.0, %v2119
  %2121 = vdwg.mxu0
  %2122 = vmatpush.msra.mxu0 %v2120
  %2123 = vmatpush.msra.mxu0 %v2118
  %2124 = vmatpush.msra.mxu0 %v2115
  %2125 = vmatpush.msra.mxu0 %v2113
  %2126 = vmatpush.msra.mxu0 %v2110
  %2127 = vmatpush.msra.mxu0 %v2108
  %2128 = vmatpush.msra.mxu0 %v2105
  %2129 = vmatpush.msra.mxu0 %v2103
  %2130 = vmatpush.msra.mxu0 %v2100
  %2131 = vmatpush.msra.mxu0 %v2098
  %2132 = vmatpush.msra.mxu0 %v2095
  %2133 = vmatpush.msra.mxu0 %v2093
  %2134 = vmatpush.msra.mxu0 %v2090
  %2135 = vmatpush.msra.mxu0 %v2088
  %2136 = vmatpush.msra.mxu0 %v2085
  %2137 = vmatpush.msra.mxu0 %v2083
  %2138 = vmatmul.f32.gmra.mxu0 %v818
  %v2139 = vpop.f32.mrf.mxu0
  %v2140 = vadd.f32 0.0, %v2139
  %2141 = vmatmul.f32.gmra.mxu0 %v819
  %v2142 = vpop.f32.mrf.mxu0
  %v2143 = vadd.f32 0.0, %v2142
  %2144 = vmatmul.f32.gmra.mxu0 %v820
  %v2145 = vpop.f32.mrf.mxu0
  %v2146 = vadd.f32 0.0, %v2145
  %2147 = vmatmul.f32.gmra.mxu0 %v821
  %v2148 = vpop.f32.mrf.mxu0
  %v2149 = vadd.f32 0.0, %v2148
  %2150 = vmatmul.f32.gmra.mxu0 %v822
  %v2151 = vpop.f32.mrf.mxu0
  %v2152 = vadd.f32 0.0, %v2151
  %2153 = vmatmul.f32.gmra.mxu0 %v823
  %v2154 = vpop.f32.mrf.mxu0
  %v2155 = vadd.f32 0.0, %v2154
  %2156 = vmatmul.f32.gmra.mxu0 %v824
  %v2157 = vpop.f32.mrf.mxu0
  %v2158 = vadd.f32 0.0, %v2157
  %2159 = vmatmul.f32.gmra.mxu0 %v825
  %v2160 = vpop.f32.mrf.mxu0
  %v2161 = vadd.f32 0.0, %v2160
  %2162 = vmatmul.f32.gmra.mxu0 %v858
  %v2163 = vpop.f32.mrf.mxu0
  %v2164 = vadd.f32 0.0, %v2163
  %2165 = vmatmul.f32.gmra.mxu0 %v859
  %v2166 = vpop.f32.mrf.mxu0
  %v2167 = vadd.f32 0.0, %v2166
  %2168 = vmatmul.f32.gmra.mxu0 %v860
  %v2169 = vpop.f32.mrf.mxu0
  %v2170 = vadd.f32 0.0, %v2169
  %2171 = vmatmul.f32.gmra.mxu0 %v861
  %v2172 = vpop.f32.mrf.mxu0
  %v2173 = vadd.f32 0.0, %v2172
  %2174 = vmatmul.f32.gmra.mxu0 %v862
  %v2175 = vpop.f32.mrf.mxu0
  %v2176 = vadd.f32 0.0, %v2175
  %2177 = vmatmul.f32.gmra.mxu0 %v863
  %v2178 = vpop.f32.mrf.mxu0
  %v2179 = vadd.f32 0.0, %v2178
  %2180 = vmatmul.f32.gmra.mxu0 %v864
  %v2181 = vpop.f32.mrf.mxu0
  %v2182 = vadd.f32 0.0, %v2181
  %2183 = vmatmul.f32.gmra.mxu0 %v865
  %v2184 = vpop.f32.mrf.mxu0
  %v2185 = vadd.f32 0.0, %v2184
  %2186 = vdwg.mxu0
  %v2187 = vsub.f32 %v980, %v2140
  %v2188 = vsub.f32 %v981, %v2143
  %v2189 = vsub.f32 %v982, %v2146
  %v2190 = vsub.f32 %v983, %v2149
  %v2191 = vsub.f32 %v984, %v2152
  %v2192 = vsub.f32 %v985, %v2155
  %v2193 = vsub.f32 %v986, %v2158
  %v2194 = vsub.f32 %v987, %v2161
  %v2195 = vsub.f32 %v988, %v2164
  %v2196 = vsub.f32 %v989, %v2167
  %v2197 = vsub.f32 %v990, %v2170
  %v2198 = vsub.f32 %v991, %v2173
  %v2199 = vsub.f32 %v992, %v2176
  %v2200 = vsub.f32 %v993, %v2179
  %v2201 = vsub.f32 %v994, %v2182
  %v2202 = vsub.f32 %v995, %v2185
  %2203 = vmatpush.msra.mxu0 %v2202
  %2204 = vmatpush.msra.mxu0 %v2201
  %2205 = vmatpush.msra.mxu0 %v2200
  %2206 = vmatpush.msra.mxu0 %v2199
  %2207 = vmatpush.msra.mxu0 %v2198
  %2208 = vmatpush.msra.mxu0 %v2197
  %2209 = vmatpush.msra.mxu0 %v2196
  %2210 = vmatpush.msra.mxu0 %v2195
  %2211 = vmatpush.msra.mxu0 %v2194
  %2212 = vmatpush.msra.mxu0 %v2193
  %2213 = vmatpush.msra.mxu0 %v2192
  %2214 = vmatpush.msra.mxu0 %v2191
  %2215 = vmatpush.msra.mxu0 %v2190
  %2216 = vmatpush.msra.mxu0 %v2189
  %2217 = vmatpush.msra.mxu0 %v2188
  %2218 = vmatpush.msra.mxu0 %v2187
  %2219 = vmatmul.f32.gmra.mxu0 %v2083
  %v2220 = vpop.f32.mrf.mxu0
  %v2221 = vadd.f32 0.0, %v2220
  %2222 = vmatmul.f32.gmra.mxu0 %v2085
  %v2223 = vpop.f32.mrf.mxu0
  %v2224 = vadd.f32 0.0, %v2223
  %2225 = vmatmul.f32.gmra.mxu0 %v2088
  %v2226 = vpop.f32.mrf.mxu0
  %v2227 = vadd.f32 0.0, %v2226
  %2228 = vmatmul.f32.gmra.mxu0 %v2090
  %v2229 = vpop.f32.mrf.mxu0
  %v2230 = vadd.f32 0.0, %v2229
  %2231 = vmatmul.f32.gmra.mxu0 %v2093
  %v2232 = vpop.f32.mrf.mxu0
  %v2233 = vadd.f32 0.0, %v2232
  %2234 = vmatmul.f32.gmra.mxu0 %v2095
  %v2235 = vpop.f32.mrf.mxu0
  %v2236 = vadd.f32 0.0, %v2235
  %2237 = vmatmul.f32.gmra.mxu0 %v2098
  %v2238 = vpop.f32.mrf.mxu0
  %v2239 = vadd.f32 0.0, %v2238
  %2240 = vmatmul.f32.gmra.mxu0 %v2100
  %v2241 = vpop.f32.mrf.mxu0
  %v2242 = vadd.f32 0.0, %v2241
  %2243 = vmatmul.f32.gmra.mxu0 %v2103
  %v2244 = vpop.f32.mrf.mxu0
  %v2245 = vadd.f32 0.0, %v2244
  %2246 = vmatmul.f32.gmra.mxu0 %v2105
  %v2247 = vpop.f32.mrf.mxu0
  %v2248 = vadd.f32 0.0, %v2247
  %2249 = vmatmul.f32.gmra.mxu0 %v2108
  %v2250 = vpop.f32.mrf.mxu0
  %v2251 = vadd.f32 0.0, %v2250
  %2252 = vmatmul.f32.gmra.mxu0 %v2110
  %v2253 = vpop.f32.mrf.mxu0
  %v2254 = vadd.f32 0.0, %v2253
  %2255 = vmatmul.f32.gmra.mxu0 %v2113
  %v2256 = vpop.f32.mrf.mxu0
  %v2257 = vadd.f32 0.0, %v2256
  %2258 = vmatmul.f32.gmra.mxu0 %v2115
  %v2259 = vpop.f32.mrf.mxu0
  %v2260 = vadd.f32 0.0, %v2259
  %2261 = vmatmul.f32.gmra.mxu0 %v2118
  %v2262 = vpop.f32.mrf.mxu0
  %v2263 = vadd.f32 0.0, %v2262
  %2264 = vmatmul.f32.gmra.mxu0 %v2120
  %v2265 = vpop.f32.mrf.mxu0
  %v2266 = vadd.f32 0.0, %v2265
  %2267 = vdwg.mxu0
  %2268 = vmatpush.msra.mxu0 %v2266
  %2269 = vmatpush.msra.mxu0 %v2263
  %2270 = vmatpush.msra.mxu0 %v2260
  %2271 = vmatpush.msra.mxu0 %v2257
  %2272 = vmatpush.msra.mxu0 %v2254
  %2273 = vmatpush.msra.mxu0 %v2251
  %2274 = vmatpush.msra.mxu0 %v2248
  %2275 = vmatpush.msra.mxu0 %v2245
  %2276 = vmatpush.msra.mxu0 %v2242
  %2277 = vmatpush.msra.mxu0 %v2239
  %2278 = vmatpush.msra.mxu0 %v2236
  %2279 = vmatpush.msra.mxu0 %v2233
  %2280 = vmatpush.msra.mxu0 %v2230
  %2281 = vmatpush.msra.mxu0 %v2227
  %2282 = vmatpush.msra.mxu0 %v2224
  %2283 = vmatpush.msra.mxu0 %v2221
  %2284 = vmatmul.f32.gmra.mxu0 %v818
  %v2285 = vpop.f32.mrf.mxu0
  %v2286 = vadd.f32 0.0, %v2285
  %2287 = vmatmul.f32.gmra.mxu0 %v819
  %v2288 = vpop.f32.mrf.mxu0
  %v2289 = vadd.f32 0.0, %v2288
  %2290 = vmatmul.f32.gmra.mxu0 %v820
  %v2291 = vpop.f32.mrf.mxu0
  %v2292 = vadd.f32 0.0, %v2291
  %2293 = vmatmul.f32.gmra.mxu0 %v821
  %v2294 = vpop.f32.mrf.mxu0
  %v2295 = vadd.f32 0.0, %v2294
  %2296 = vmatmul.f32.gmra.mxu0 %v822
  %v2297 = vpop.f32.mrf.mxu0
  %v2298 = vadd.f32 0.0, %v2297
  %2299 = vmatmul.f32.gmra.mxu0 %v823
  %v2300 = vpop.f32.mrf.mxu0
  %v2301 = vadd.f32 0.0, %v2300
  %2302 = vmatmul.f32.gmra.mxu0 %v824
  %v2303 = vpop.f32.mrf.mxu0
  %v2304 = vadd.f32 0.0, %v2303
  %2305 = vmatmul.f32.gmra.mxu0 %v825
  %v2306 = vpop.f32.mrf.mxu0
  %v2307 = vadd.f32 0.0, %v2306
  %2308 = vmatmul.f32.gmra.mxu0 %v858
  %v2309 = vpop.f32.mrf.mxu0
  %v2310 = vadd.f32 0.0, %v2309
  %2311 = vmatmul.f32.gmra.mxu0 %v859
  %v2312 = vpop.f32.mrf.mxu0
  %v2313 = vadd.f32 0.0, %v2312
  %2314 = vmatmul.f32.gmra.mxu0 %v860
  %v2315 = vpop.f32.mrf.mxu0
  %v2316 = vadd.f32 0.0, %v2315
  %2317 = vmatmul.f32.gmra.mxu0 %v861
  %v2318 = vpop.f32.mrf.mxu0
  %v2319 = vadd.f32 0.0, %v2318
  %2320 = vmatmul.f32.gmra.mxu0 %v862
  %v2321 = vpop.f32.mrf.mxu0
  %v2322 = vadd.f32 0.0, %v2321
  %2323 = vmatmul.f32.gmra.mxu0 %v863
  %v2324 = vpop.f32.mrf.mxu0
  %v2325 = vadd.f32 0.0, %v2324
  %2326 = vmatmul.f32.gmra.mxu0 %v864
  %v2327 = vpop.f32.mrf.mxu0
  %v2328 = vadd.f32 0.0, %v2327
  %2329 = vmatmul.f32.gmra.mxu0 %v865
  %v2330 = vpop.f32.mrf.mxu0
  %v2331 = vadd.f32 0.0, %v2330
  %2332 = vdwg.mxu0
  %v2333 = vsub.f32 %v980, %v2286
  %v2334 = vsub.f32 %v981, %v2289
  %v2335 = vsub.f32 %v982, %v2292
  %v2336 = vsub.f32 %v983, %v2295
  %v2337 = vsub.f32 %v984, %v2298
  %v2338 = vsub.f32 %v985, %v2301
  %v2339 = vsub.f32 %v986, %v2304
  %v2340 = vsub.f32 %v987, %v2307
  %v2341 = vsub.f32 %v988, %v2310
  %v2342 = vsub.f32 %v989, %v2313
  %v2343 = vsub.f32 %v990, %v2316
  %v2344 = vsub.f32 %v991, %v2319
  %v2345 = vsub.f32 %v992, %v2322
  %v2346 = vsub.f32 %v993, %v2325
  %v2347 = vsub.f32 %v994, %v2328
  %v2348 = vsub.f32 %v995, %v2331
  %2349 = vmatpush.msra.mxu0 %v2348
  %2350 = vmatpush.msra.mxu0 %v2347
  %2351 = vmatpush.msra.mxu0 %v2346
  %2352 = vmatpush.msra.mxu0 %v2345
  %2353 = vmatpush.msra.mxu0 %v2344
  %2354 = vmatpush.msra.mxu0 %v2343
  %2355 = vmatpush.msra.mxu0 %v2342
  %2356 = vmatpush.msra.mxu0 %v2341
  %2357 = vmatpush.msra.mxu0 %v2340
  %2358 = vmatpush.msra.mxu0 %v2339
  %2359 = vmatpush.msra.mxu0 %v2338
  %2360 = vmatpush.msra.mxu0 %v2337
  %2361 = vmatpush.msra.mxu0 %v2336
  %2362 = vmatpush.msra.mxu0 %v2335
  %2363 = vmatpush.msra.mxu0 %v2334
  %2364 = vmatpush.msra.mxu0 %v2333
  %2365 = vmatmul.f32.gmra.mxu0 %v2221
  %v2366 = vpop.f32.mrf.mxu0
  %v2367 = vadd.f32 0.0, %v2366
  %2368 = vmatmul.f32.gmra.mxu0 %v2224
  %v2369 = vpop.f32.mrf.mxu0
  %v2370 = vadd.f32 0.0, %v2369
  %2371 = vmatmul.f32.gmra.mxu0 %v2227
  %v2372 = vpop.f32.mrf.mxu0
  %v2373 = vadd.f32 0.0, %v2372
  %2374 = vmatmul.f32.gmra.mxu0 %v2230
  %v2375 = vpop.f32.mrf.mxu0
  %v2376 = vadd.f32 0.0, %v2375
  %2377 = vmatmul.f32.gmra.mxu0 %v2233
  %v2378 = vpop.f32.mrf.mxu0
  %v2379 = vadd.f32 0.0, %v2378
  %2380 = vmatmul.f32.gmra.mxu0 %v2236
  %v2381 = vpop.f32.mrf.mxu0
  %v2382 = vadd.f32 0.0, %v2381
  %2383 = vmatmul.f32.gmra.mxu0 %v2239
  %v2384 = vpop.f32.mrf.mxu0
  %v2385 = vadd.f32 0.0, %v2384
  %2386 = vmatmul.f32.gmra.mxu0 %v2242
  %v2387 = vpop.f32.mrf.mxu0
  %v2388 = vadd.f32 0.0, %v2387
  %2389 = vmatmul.f32.gmra.mxu0 %v2245
  %v2390 = vpop.f32.mrf.mxu0
  %v2391 = vadd.f32 0.0, %v2390
  %2392 = vmatmul.f32.gmra.mxu0 %v2248
  %v2393 = vpop.f32.mrf.mxu0
  %v2394 = vadd.f32 0.0, %v2393
  %2395 = vmatmul.f32.gmra.mxu0 %v2251
  %v2396 = vpop.f32.mrf.mxu0
  %v2397 = vadd.f32 0.0, %v2396
  %2398 = vmatmul.f32.gmra.mxu0 %v2254
  %v2399 = vpop.f32.mrf.mxu0
  %v2400 = vadd.f32 0.0, %v2399
  %2401 = vmatmul.f32.gmra.mxu0 %v2257
  %v2402 = vpop.f32.mrf.mxu0
  %v2403 = vadd.f32 0.0, %v2402
  %2404 = vmatmul.f32.gmra.mxu0 %v2260
  %v2405 = vpop.f32.mrf.mxu0
  %v2406 = vadd.f32 0.0, %v2405
  %2407 = vmatmul.f32.gmra.mxu0 %v2263
  %v2408 = vpop.f32.mrf.mxu0
  %v2409 = vadd.f32 0.0, %v2408
  %2410 = vmatmul.f32.gmra.mxu0 %v2266
  %v2411 = vpop.f32.mrf.mxu0
  %v2412 = vadd.f32 0.0, %v2411
  %2413 = vdwg.mxu0
  %2414 = vmatpush.msra.mxu0 %v2412
  %2415 = vmatpush.msra.mxu0 %v2409
  %2416 = vmatpush.msra.mxu0 %v2406
  %2417 = vmatpush.msra.mxu0 %v2403
  %2418 = vmatpush.msra.mxu0 %v2400
  %2419 = vmatpush.msra.mxu0 %v2397
  %2420 = vmatpush.msra.mxu0 %v2394
  %2421 = vmatpush.msra.mxu0 %v2391
  %2422 = vmatpush.msra.mxu0 %v2388
  %2423 = vmatpush.msra.mxu0 %v2385
  %2424 = vmatpush.msra.mxu0 %v2382
  %2425 = vmatpush.msra.mxu0 %v2379
  %2426 = vmatpush.msra.mxu0 %v2376
  %2427 = vmatpush.msra.mxu0 %v2373
  %2428 = vmatpush.msra.mxu0 %v2370
  %2429 = vmatpush.msra.mxu0 %v2367
  %2430 = vmatmul.f32.gmra.mxu0 %v818
  %v2431 = vpop.f32.mrf.mxu0
  %v2432 = vadd.f32 0.0, %v2431
  %2433 = vmatmul.f32.gmra.mxu0 %v819
  %v2434 = vpop.f32.mrf.mxu0
  %v2435 = vadd.f32 0.0, %v2434
  %2436 = vmatmul.f32.gmra.mxu0 %v820
  %v2437 = vpop.f32.mrf.mxu0
  %v2438 = vadd.f32 0.0, %v2437
  %2439 = vmatmul.f32.gmra.mxu0 %v821
  %v2440 = vpop.f32.mrf.mxu0
  %v2441 = vadd.f32 0.0, %v2440
  %2442 = vmatmul.f32.gmra.mxu0 %v822
  %v2443 = vpop.f32.mrf.mxu0
  %v2444 = vadd.f32 0.0, %v2443
  %2445 = vmatmul.f32.gmra.mxu0 %v823
  %v2446 = vpop.f32.mrf.mxu0
  %v2447 = vadd.f32 0.0, %v2446
  %2448 = vmatmul.f32.gmra.mxu0 %v824
  %v2449 = vpop.f32.mrf.mxu0
  %v2450 = vadd.f32 0.0, %v2449
  %2451 = vmatmul.f32.gmra.mxu0 %v825
  %v2452 = vpop.f32.mrf.mxu0
  %v2453 = vadd.f32 0.0, %v2452
  %2454 = vmatmul.f32.gmra.mxu0 %v858
  %v2455 = vpop.f32.mrf.mxu0
  %v2456 = vadd.f32 0.0, %v2455
  %2457 = vmatmul.f32.gmra.mxu0 %v859
  %v2458 = vpop.f32.mrf.mxu0
  %v2459 = vadd.f32 0.0, %v2458
  %2460 = vmatmul.f32.gmra.mxu0 %v860
  %v2461 = vpop.f32.mrf.mxu0
  %v2462 = vadd.f32 0.0, %v2461
  %2463 = vmatmul.f32.gmra.mxu0 %v861
  %v2464 = vpop.f32.mrf.mxu0
  %v2465 = vadd.f32 0.0, %v2464
  %2466 = vmatmul.f32.gmra.mxu0 %v862
  %v2467 = vpop.f32.mrf.mxu0
  %v2468 = vadd.f32 0.0, %v2467
  %2469 = vmatmul.f32.gmra.mxu0 %v863
  %v2470 = vpop.f32.mrf.mxu0
  %v2471 = vadd.f32 0.0, %v2470
  %2472 = vmatmul.f32.gmra.mxu0 %v864
  %v2473 = vpop.f32.mrf.mxu0
  %v2474 = vadd.f32 0.0, %v2473
  %2475 = vmatmul.f32.gmra.mxu0 %v865
  %v2476 = vpop.f32.mrf.mxu0
  %v2477 = vadd.f32 0.0, %v2476
  %2478 = vdwg.mxu0
  %v2479 = vsub.f32 %v980, %v2432
  %v2480 = vsub.f32 %v981, %v2435
  %v2481 = vsub.f32 %v982, %v2438
  %v2482 = vsub.f32 %v983, %v2441
  %v2483 = vsub.f32 %v984, %v2444
  %v2484 = vsub.f32 %v985, %v2447
  %v2485 = vsub.f32 %v986, %v2450
  %v2486 = vsub.f32 %v987, %v2453
  %v2487 = vsub.f32 %v988, %v2456
  %v2488 = vsub.f32 %v989, %v2459
  %v2489 = vsub.f32 %v990, %v2462
  %v2490 = vsub.f32 %v991, %v2465
  %v2491 = vsub.f32 %v992, %v2468
  %v2492 = vsub.f32 %v993, %v2471
  %v2493 = vsub.f32 %v994, %v2474
  %v2494 = vsub.f32 %v995, %v2477
  %2495 = vmatpush.msra.mxu0 %v2494
  %2496 = vmatpush.msra.mxu0 %v2493
  %2497 = vmatpush.msra.mxu0 %v2492
  %2498 = vmatpush.msra.mxu0 %v2491
  %2499 = vmatpush.msra.mxu0 %v2490
  %2500 = vmatpush.msra.mxu0 %v2489
  %2501 = vmatpush.msra.mxu0 %v2488
  %2502 = vmatpush.msra.mxu0 %v2487
  %2503 = vmatpush.msra.mxu0 %v2486
  %2504 = vmatpush.msra.mxu0 %v2485
  %2505 = vmatpush.msra.mxu0 %v2484
  %2506 = vmatpush.msra.mxu0 %v2483
  %2507 = vmatpush.msra.mxu0 %v2482
  %2508 = vmatpush.msra.mxu0 %v2481
  %2509 = vmatpush.msra.mxu0 %v2480
  %2510 = vmatpush.msra.mxu0 %v2479
  %2511 = vmatmul.f32.gmra.mxu0 %v2367
  %v2512 = vpop.f32.mrf.mxu0
  %v2513 = vadd.f32 0.0, %v2512
  %2514 = vmatmul.f32.gmra.mxu0 %v2370
  %v2515 = vpop.f32.mrf.mxu0
  %v2516 = vadd.f32 0.0, %v2515
  %2517 = vmatmul.f32.gmra.mxu0 %v2373
  %v2518 = vpop.f32.mrf.mxu0
  %v2519 = vadd.f32 0.0, %v2518
  %2520 = vmatmul.f32.gmra.mxu0 %v2376
  %v2521 = vpop.f32.mrf.mxu0
  %v2522 = vadd.f32 0.0, %v2521
  %2523 = vmatmul.f32.gmra.mxu0 %v2379
  %v2524 = vpop.f32.mrf.mxu0
  %v2525 = vadd.f32 0.0, %v2524
  %2526 = vmatmul.f32.gmra.mxu0 %v2382
  %v2527 = vpop.f32.mrf.mxu0
  %v2528 = vadd.f32 0.0, %v2527
  %2529 = vmatmul.f32.gmra.mxu0 %v2385
  %v2530 = vpop.f32.mrf.mxu0
  %v2531 = vadd.f32 0.0, %v2530
  %2532 = vmatmul.f32.gmra.mxu0 %v2388
  %v2533 = vpop.f32.mrf.mxu0
  %v2534 = vadd.f32 0.0, %v2533
  %2535 = vmatmul.f32.gmra.mxu0 %v2391
  %v2536 = vpop.f32.mrf.mxu0
  %v2537 = vadd.f32 0.0, %v2536
  %2538 = vmatmul.f32.gmra.mxu0 %v2394
  %v2539 = vpop.f32.mrf.mxu0
  %v2540 = vadd.f32 0.0, %v2539
  %2541 = vmatmul.f32.gmra.mxu0 %v2397
  %v2542 = vpop.f32.mrf.mxu0
  %v2543 = vadd.f32 0.0, %v2542
  %2544 = vmatmul.f32.gmra.mxu0 %v2400
  %v2545 = vpop.f32.mrf.mxu0
  %v2546 = vadd.f32 0.0, %v2545
  %2547 = vmatmul.f32.gmra.mxu0 %v2403
  %v2548 = vpop.f32.mrf.mxu0
  %v2549 = vadd.f32 0.0, %v2548
  %2550 = vmatmul.f32.gmra.mxu0 %v2406
  %v2551 = vpop.f32.mrf.mxu0
  %v2552 = vadd.f32 0.0, %v2551
  %2553 = vmatmul.f32.gmra.mxu0 %v2409
  %v2554 = vpop.f32.mrf.mxu0
  %v2555 = vadd.f32 0.0, %v2554
  %2556 = vmatmul.f32.gmra.mxu0 %v2412
  %v2557 = vpop.f32.mrf.mxu0
  %v2558 = vadd.f32 0.0, %v2557
  %2559 = vdwg.mxu0
  %2560 = vmatpush.msra.mxu0 %v2558
  %2561 = vmatpush.msra.mxu0 %v2555
  %2562 = vmatpush.msra.mxu0 %v2552
  %2563 = vmatpush.msra.mxu0 %v2549
  %2564 = vmatpush.msra.mxu0 %v2546
  %2565 = vmatpush.msra.mxu0 %v2543
  %2566 = vmatpush.msra.mxu0 %v2540
  %2567 = vmatpush.msra.mxu0 %v2537
  %2568 = vmatpush.msra.mxu0 %v2534
  %2569 = vmatpush.msra.mxu0 %v2531
  %2570 = vmatpush.msra.mxu0 %v2528
  %2571 = vmatpush.msra.mxu0 %v2525
  %2572 = vmatpush.msra.mxu0 %v2522
  %2573 = vmatpush.msra.mxu0 %v2519
  %2574 = vmatpush.msra.mxu0 %v2516
  %2575 = vmatpush.msra.mxu0 %v2513
  %2576 = vmatmul.f32.gmra.mxu0 %v818
  %v2577 = vpop.f32.mrf.mxu0
  %v2578 = vadd.f32 0.0, %v2577
  %2579 = vmatmul.f32.gmra.mxu0 %v819
  %v2580 = vpop.f32.mrf.mxu0
  %v2581 = vadd.f32 0.0, %v2580
  %2582 = vmatmul.f32.gmra.mxu0 %v820
  %v2583 = vpop.f32.mrf.mxu0
  %v2584 = vadd.f32 0.0, %v2583
  %2585 = vmatmul.f32.gmra.mxu0 %v821
  %v2586 = vpop.f32.mrf.mxu0
  %v2587 = vadd.f32 0.0, %v2586
  %2588 = vmatmul.f32.gmra.mxu0 %v822
  %v2589 = vpop.f32.mrf.mxu0
  %v2590 = vadd.f32 0.0, %v2589
  %2591 = vmatmul.f32.gmra.mxu0 %v823
  %v2592 = vpop.f32.mrf.mxu0
  %v2593 = vadd.f32 0.0, %v2592
  %2594 = vmatmul.f32.gmra.mxu0 %v824
  %v2595 = vpop.f32.mrf.mxu0
  %v2596 = vadd.f32 0.0, %v2595
  %2597 = vmatmul.f32.gmra.mxu0 %v825
  %v2598 = vpop.f32.mrf.mxu0
  %v2599 = vadd.f32 0.0, %v2598
  %2600 = vmatmul.f32.gmra.mxu0 %v858
  %v2601 = vpop.f32.mrf.mxu0
  %v2602 = vadd.f32 0.0, %v2601
  %2603 = vmatmul.f32.gmra.mxu0 %v859
  %v2604 = vpop.f32.mrf.mxu0
  %v2605 = vadd.f32 0.0, %v2604
  %2606 = vmatmul.f32.gmra.mxu0 %v860
  %v2607 = vpop.f32.mrf.mxu0
  %v2608 = vadd.f32 0.0, %v2607
  %2609 = vmatmul.f32.gmra.mxu0 %v861
  %v2610 = vpop.f32.mrf.mxu0
  %v2611 = vadd.f32 0.0, %v2610
  %2612 = vmatmul.f32.gmra.mxu0 %v862
  %v2613 = vpop.f32.mrf.mxu0
  %v2614 = vadd.f32 0.0, %v2613
  %2615 = vmatmul.f32.gmra.mxu0 %v863
  %v2616 = vpop.f32.mrf.mxu0
  %v2617 = vadd.f32 0.0, %v2616
  %2618 = vmatmul.f32.gmra.mxu0 %v864
  %v2619 = vpop.f32.mrf.mxu0
  %v2620 = vadd.f32 0.0, %v2619
  %2621 = vmatmul.f32.gmra.mxu0 %v865
  %v2622 = vpop.f32.mrf.mxu0
  %v2623 = vadd.f32 0.0, %v2622
  %2624 = vdwg.mxu0
  %v2625 = vsub.f32 %v980, %v2578
  %v2626 = vsub.f32 %v981, %v2581
  %v2627 = vsub.f32 %v982, %v2584
  %v2628 = vsub.f32 %v983, %v2587
  %v2629 = vsub.f32 %v984, %v2590
  %v2630 = vsub.f32 %v985, %v2593
  %v2631 = vsub.f32 %v986, %v2596
  %v2632 = vsub.f32 %v987, %v2599
  %v2633 = vsub.f32 %v988, %v2602
  %v2634 = vsub.f32 %v989, %v2605
  %v2635 = vsub.f32 %v990, %v2608
  %v2636 = vsub.f32 %v991, %v2611
  %v2637 = vsub.f32 %v992, %v2614
  %v2638 = vsub.f32 %v993, %v2617
  %v2639 = vsub.f32 %v994, %v2620
  %v2640 = vsub.f32 %v995, %v2623
  %2641 = vmatpush.msra.mxu0 %v2640
  %2642 = vmatpush.msra.mxu0 %v2639
  %2643 = vmatpush.msra.mxu0 %v2638
  %2644 = vmatpush.msra.mxu0 %v2637
  %2645 = vmatpush.msra.mxu0 %v2636
  %2646 = vmatpush.msra.mxu0 %v2635
  %2647 = vmatpush.msra.mxu0 %v2634
  %2648 = vmatpush.msra.mxu0 %v2633
  %2649 = vmatpush.msra.mxu0 %v2632
  %2650 = vmatpush.msra.mxu0 %v2631
  %2651 = vmatpush.msra.mxu0 %v2630
  %2652 = vmatpush.msra.mxu0 %v2629
  %2653 = vmatpush.msra.mxu0 %v2628
  %2654 = vmatpush.msra.mxu0 %v2627
  %2655 = vmatpush.msra.mxu0 %v2626
  %2656 = vmatpush.msra.mxu0 %v2625
  %2657 = vmatmul.f32.gmra.mxu0 %v2513
  %v2658 = vpop.f32.mrf.mxu0
  %v2659 = vadd.f32 0.0, %v2658
  %2660 = vmatmul.f32.gmra.mxu0 %v2516
  %v2661 = vpop.f32.mrf.mxu0
  %v2662 = vadd.f32 0.0, %v2661
  %2663 = vmatmul.f32.gmra.mxu0 %v2519
  %v2664 = vpop.f32.mrf.mxu0
  %v2665 = vadd.f32 0.0, %v2664
  %2666 = vmatmul.f32.gmra.mxu0 %v2522
  %v2667 = vpop.f32.mrf.mxu0
  %v2668 = vadd.f32 0.0, %v2667
  %2669 = vmatmul.f32.gmra.mxu0 %v2525
  %v2670 = vpop.f32.mrf.mxu0
  %v2671 = vadd.f32 0.0, %v2670
  %2672 = vmatmul.f32.gmra.mxu0 %v2528
  %v2673 = vpop.f32.mrf.mxu0
  %v2674 = vadd.f32 0.0, %v2673
  %2675 = vmatmul.f32.gmra.mxu0 %v2531
  %v2676 = vpop.f32.mrf.mxu0
  %v2677 = vadd.f32 0.0, %v2676
  %2678 = vmatmul.f32.gmra.mxu0 %v2534
  %v2679 = vpop.f32.mrf.mxu0
  %v2680 = vadd.f32 0.0, %v2679
  %2681 = vmatmul.f32.gmra.mxu0 %v2537
  %v2682 = vpop.f32.mrf.mxu0
  %v2683 = vadd.f32 0.0, %v2682
  %2684 = vmatmul.f32.gmra.mxu0 %v2540
  %v2685 = vpop.f32.mrf.mxu0
  %v2686 = vadd.f32 0.0, %v2685
  %2687 = vmatmul.f32.gmra.mxu0 %v2543
  %v2688 = vpop.f32.mrf.mxu0
  %v2689 = vadd.f32 0.0, %v2688
  %2690 = vmatmul.f32.gmra.mxu0 %v2546
  %v2691 = vpop.f32.mrf.mxu0
  %v2692 = vadd.f32 0.0, %v2691
  %2693 = vmatmul.f32.gmra.mxu0 %v2549
  %v2694 = vpop.f32.mrf.mxu0
  %v2695 = vadd.f32 0.0, %v2694
  %2696 = vmatmul.f32.gmra.mxu0 %v2552
  %v2697 = vpop.f32.mrf.mxu0
  %v2698 = vadd.f32 0.0, %v2697
  %2699 = vmatmul.f32.gmra.mxu0 %v2555
  %v2700 = vpop.f32.mrf.mxu0
  %v2701 = vadd.f32 0.0, %v2700
  %2702 = vmatmul.f32.gmra.mxu0 %v2558
  %v2703 = vpop.f32.mrf.mxu0
  %v2704 = vadd.f32 0.0, %v2703
  %2705 = vdwg.mxu0
  %2706 = vmatpush.msra.mxu0 %v2704
  %2707 = vmatpush.msra.mxu0 %v2701
  %2708 = vmatpush.msra.mxu0 %v2698
  %2709 = vmatpush.msra.mxu0 %v2695
  %2710 = vmatpush.msra.mxu0 %v2692
  %2711 = vmatpush.msra.mxu0 %v2689
  %2712 = vmatpush.msra.mxu0 %v2686
  %2713 = vmatpush.msra.mxu0 %v2683
  %2714 = vmatpush.msra.mxu0 %v2680
  %2715 = vmatpush.msra.mxu0 %v2677
  %2716 = vmatpush.msra.mxu0 %v2674
  %2717 = vmatpush.msra.mxu0 %v2671
  %2718 = vmatpush.msra.mxu0 %v2668
  %2719 = vmatpush.msra.mxu0 %v2665
  %2720 = vmatpush.msra.mxu0 %v2662
  %2721 = vmatpush.msra.mxu0 %v2659
  %2722 = vmatmul.f32.gmra.mxu0 %v818
  %v2723 = vpop.f32.mrf.mxu0
  %v2724 = vadd.f32 0.0, %v2723
  %2725 = vmatmul.f32.gmra.mxu0 %v819
  %v2726 = vpop.f32.mrf.mxu0
  %v2727 = vadd.f32 0.0, %v2726
  %2728 = vmatmul.f32.gmra.mxu0 %v820
  %v2729 = vpop.f32.mrf.mxu0
  %v2730 = vadd.f32 0.0, %v2729
  %2731 = vmatmul.f32.gmra.mxu0 %v821
  %v2732 = vpop.f32.mrf.mxu0
  %v2733 = vadd.f32 0.0, %v2732
  %2734 = vmatmul.f32.gmra.mxu0 %v822
  %v2735 = vpop.f32.mrf.mxu0
  %v2736 = vadd.f32 0.0, %v2735
  %2737 = vmatmul.f32.gmra.mxu0 %v823
  %v2738 = vpop.f32.mrf.mxu0
  %v2739 = vadd.f32 0.0, %v2738
  %2740 = vmatmul.f32.gmra.mxu0 %v824
  %v2741 = vpop.f32.mrf.mxu0
  %v2742 = vadd.f32 0.0, %v2741
  %2743 = vmatmul.f32.gmra.mxu0 %v825
  %v2744 = vpop.f32.mrf.mxu0
  %v2745 = vadd.f32 0.0, %v2744
  %2746 = vmatmul.f32.gmra.mxu0 %v858
  %v2747 = vpop.f32.mrf.mxu0
  %v2748 = vadd.f32 0.0, %v2747
  %2749 = vmatmul.f32.gmra.mxu0 %v859
  %v2750 = vpop.f32.mrf.mxu0
  %v2751 = vadd.f32 0.0, %v2750
  %2752 = vmatmul.f32.gmra.mxu0 %v860
  %v2753 = vpop.f32.mrf.mxu0
  %v2754 = vadd.f32 0.0, %v2753
  %2755 = vmatmul.f32.gmra.mxu0 %v861
  %v2756 = vpop.f32.mrf.mxu0
  %v2757 = vadd.f32 0.0, %v2756
  %2758 = vmatmul.f32.gmra.mxu0 %v862
  %v2759 = vpop.f32.mrf.mxu0
  %v2760 = vadd.f32 0.0, %v2759
  %2761 = vmatmul.f32.gmra.mxu0 %v863
  %v2762 = vpop.f32.mrf.mxu0
  %v2763 = vadd.f32 0.0, %v2762
  %2764 = vmatmul.f32.gmra.mxu0 %v864
  %v2765 = vpop.f32.mrf.mxu0
  %v2766 = vadd.f32 0.0, %v2765
  %2767 = vmatmul.f32.gmra.mxu0 %v865
  %v2768 = vpop.f32.mrf.mxu0
  %v2769 = vadd.f32 0.0, %v2768
  %2770 = vdwg.mxu0
  %v2771 = vsub.f32 %v980, %v2724
  %v2772 = vsub.f32 %v981, %v2727
  %v2773 = vsub.f32 %v982, %v2730
  %v2774 = vsub.f32 %v983, %v2733
  %v2775 = vsub.f32 %v984, %v2736
  %v2776 = vsub.f32 %v985, %v2739
  %v2777 = vsub.f32 %v986, %v2742
  %v2778 = vsub.f32 %v987, %v2745
  %v2779 = vsub.f32 %v988, %v2748
  %v2780 = vsub.f32 %v989, %v2751
  %v2781 = vsub.f32 %v990, %v2754
  %v2782 = vsub.f32 %v991, %v2757
  %v2783 = vsub.f32 %v992, %v2760
  %v2784 = vsub.f32 %v993, %v2763
  %v2785 = vsub.f32 %v994, %v2766
  %v2786 = vsub.f32 %v995, %v2769
  %2787 = vmatpush.msra.mxu0 %v2786
  %2788 = vmatpush.msra.mxu0 %v2785
  %2789 = vmatpush.msra.mxu0 %v2784
  %2790 = vmatpush.msra.mxu0 %v2783
  %2791 = vmatpush.msra.mxu0 %v2782
  %2792 = vmatpush.msra.mxu0 %v2781
  %2793 = vmatpush.msra.mxu0 %v2780
  %2794 = vmatpush.msra.mxu0 %v2779
  %2795 = vmatpush.msra.mxu0 %v2778
  %2796 = vmatpush.msra.mxu0 %v2777
  %2797 = vmatpush.msra.mxu0 %v2776
  %2798 = vmatpush.msra.mxu0 %v2775
  %2799 = vmatpush.msra.mxu0 %v2774
  %2800 = vmatpush.msra.mxu0 %v2773
  %2801 = vmatpush.msra.mxu0 %v2772
  %2802 = vmatpush.msra.mxu0 %v2771
  %2803 = vmatmul.f32.gmra.mxu0 %v2659
  %v2804 = vpop.f32.mrf.mxu0
  %v2805 = vadd.f32 0.0, %v2804
  %2806 = vmatmul.f32.gmra.mxu0 %v2662
  %v2807 = vpop.f32.mrf.mxu0
  %v2808 = vadd.f32 0.0, %v2807
  %2809 = vmatmul.f32.gmra.mxu0 %v2665
  %v2810 = vpop.f32.mrf.mxu0
  %v2811 = vadd.f32 0.0, %v2810
  %2812 = vmatmul.f32.gmra.mxu0 %v2668
  %v2813 = vpop.f32.mrf.mxu0
  %v2814 = vadd.f32 0.0, %v2813
  %2815 = vmatmul.f32.gmra.mxu0 %v2671
  %v2816 = vpop.f32.mrf.mxu0
  %v2817 = vadd.f32 0.0, %v2816
  %2818 = vmatmul.f32.gmra.mxu0 %v2674
  %v2819 = vpop.f32.mrf.mxu0
  %v2820 = vadd.f32 0.0, %v2819
  %2821 = vmatmul.f32.gmra.mxu0 %v2677
  %v2822 = vpop.f32.mrf.mxu0
  %v2823 = vadd.f32 0.0, %v2822
  %2824 = vmatmul.f32.gmra.mxu0 %v2680
  %v2825 = vpop.f32.mrf.mxu0
  %v2826 = vadd.f32 0.0, %v2825
  %2827 = vmatmul.f32.gmra.mxu0 %v2683
  %v2828 = vpop.f32.mrf.mxu0
  %v2829 = vadd.f32 0.0, %v2828
  %2830 = vmatmul.f32.gmra.mxu0 %v2686
  %v2831 = vpop.f32.mrf.mxu0
  %v2832 = vadd.f32 0.0, %v2831
  %2833 = vmatmul.f32.gmra.mxu0 %v2689
  %v2834 = vpop.f32.mrf.mxu0
  %v2835 = vadd.f32 0.0, %v2834
  %2836 = vmatmul.f32.gmra.mxu0 %v2692
  %v2837 = vpop.f32.mrf.mxu0
  %v2838 = vadd.f32 0.0, %v2837
  %2839 = vmatmul.f32.gmra.mxu0 %v2695
  %v2840 = vpop.f32.mrf.mxu0
  %v2841 = vadd.f32 0.0, %v2840
  %2842 = vmatmul.f32.gmra.mxu0 %v2698
  %v2843 = vpop.f32.mrf.mxu0
  %v2844 = vadd.f32 0.0, %v2843
  %2845 = vmatmul.f32.gmra.mxu0 %v2701
  %v2846 = vpop.f32.mrf.mxu0
  %v2847 = vadd.f32 0.0, %v2846
  %2848 = vmatmul.f32.gmra.mxu0 %v2704
  %v2849 = vpop.f32.mrf.mxu0
  %v2850 = vadd.f32 0.0, %v2849
  %2851 = vdwg.mxu0
  %2852 = vmatpush.msra.mxu0 %v2850
  %2853 = vmatpush.msra.mxu0 %v2847
  %2854 = vmatpush.msra.mxu0 %v2844
  %2855 = vmatpush.msra.mxu0 %v2841
  %2856 = vmatpush.msra.mxu0 %v2838
  %2857 = vmatpush.msra.mxu0 %v2835
  %2858 = vmatpush.msra.mxu0 %v2832
  %2859 = vmatpush.msra.mxu0 %v2829
  %2860 = vmatpush.msra.mxu0 %v2826
  %2861 = vmatpush.msra.mxu0 %v2823
  %2862 = vmatpush.msra.mxu0 %v2820
  %2863 = vmatpush.msra.mxu0 %v2817
  %2864 = vmatpush.msra.mxu0 %v2814
  %2865 = vmatpush.msra.mxu0 %v2811
  %2866 = vmatpush.msra.mxu0 %v2808
  %2867 = vmatpush.msra.mxu0 %v2805
  %2868 = vmatmul.f32.gmra.mxu0 %v818
  %v2869 = vpop.f32.mrf.mxu0
  %v2870 = vadd.f32 0.0, %v2869
  %2871 = vmatmul.f32.gmra.mxu0 %v819
  %v2872 = vpop.f32.mrf.mxu0
  %v2873 = vadd.f32 0.0, %v2872
  %2874 = vmatmul.f32.gmra.mxu0 %v820
  %v2875 = vpop.f32.mrf.mxu0
  %v2876 = vadd.f32 0.0, %v2875
  %2877 = vmatmul.f32.gmra.mxu0 %v821
  %v2878 = vpop.f32.mrf.mxu0
  %v2879 = vadd.f32 0.0, %v2878
  %2880 = vmatmul.f32.gmra.mxu0 %v822
  %v2881 = vpop.f32.mrf.mxu0
  %v2882 = vadd.f32 0.0, %v2881
  %2883 = vmatmul.f32.gmra.mxu0 %v823
  %v2884 = vpop.f32.mrf.mxu0
  %v2885 = vadd.f32 0.0, %v2884
  %2886 = vmatmul.f32.gmra.mxu0 %v824
  %v2887 = vpop.f32.mrf.mxu0
  %v2888 = vadd.f32 0.0, %v2887
  %2889 = vmatmul.f32.gmra.mxu0 %v825
  %v2890 = vpop.f32.mrf.mxu0
  %v2891 = vadd.f32 0.0, %v2890
  %2892 = vmatmul.f32.gmra.mxu0 %v858
  %v2893 = vpop.f32.mrf.mxu0
  %v2894 = vadd.f32 0.0, %v2893
  %2895 = vmatmul.f32.gmra.mxu0 %v859
  %v2896 = vpop.f32.mrf.mxu0
  %v2897 = vadd.f32 0.0, %v2896
  %2898 = vmatmul.f32.gmra.mxu0 %v860
  %v2899 = vpop.f32.mrf.mxu0
  %v2900 = vadd.f32 0.0, %v2899
  %2901 = vmatmul.f32.gmra.mxu0 %v861
  %v2902 = vpop.f32.mrf.mxu0
  %v2903 = vadd.f32 0.0, %v2902
  %2904 = vmatmul.f32.gmra.mxu0 %v862
  %v2905 = vpop.f32.mrf.mxu0
  %v2906 = vadd.f32 0.0, %v2905
  %2907 = vmatmul.f32.gmra.mxu0 %v863
  %v2908 = vpop.f32.mrf.mxu0
  %v2909 = vadd.f32 0.0, %v2908
  %2910 = vmatmul.f32.gmra.mxu0 %v864
  %v2911 = vpop.f32.mrf.mxu0
  %v2912 = vadd.f32 0.0, %v2911
  %2913 = vmatmul.f32.gmra.mxu0 %v865
  %v2914 = vpop.f32.mrf.mxu0
  %v2915 = vadd.f32 0.0, %v2914
  %2916 = vdwg.mxu0
  %v2917 = vsub.f32 %v980, %v2870
  %v2918 = vsub.f32 %v981, %v2873
  %v2919 = vsub.f32 %v982, %v2876
  %v2920 = vsub.f32 %v983, %v2879
  %v2921 = vsub.f32 %v984, %v2882
  %v2922 = vsub.f32 %v985, %v2885
  %v2923 = vsub.f32 %v986, %v2888
  %v2924 = vsub.f32 %v987, %v2891
  %v2925 = vsub.f32 %v988, %v2894
  %v2926 = vsub.f32 %v989, %v2897
  %v2927 = vsub.f32 %v990, %v2900
  %v2928 = vsub.f32 %v991, %v2903
  %v2929 = vsub.f32 %v992, %v2906
  %v2930 = vsub.f32 %v993, %v2909
  %v2931 = vsub.f32 %v994, %v2912
  %v2932 = vsub.f32 %v995, %v2915
  %2933 = vmatpush.msra.mxu0 %v2932
  %2934 = vmatpush.msra.mxu0 %v2931
  %2935 = vmatpush.msra.mxu0 %v2930
  %2936 = vmatpush.msra.mxu0 %v2929
  %2937 = vmatpush.msra.mxu0 %v2928
  %2938 = vmatpush.msra.mxu0 %v2927
  %2939 = vmatpush.msra.mxu0 %v2926
  %2940 = vmatpush.msra.mxu0 %v2925
  %2941 = vmatpush.msra.mxu0 %v2924
  %2942 = vmatpush.msra.mxu0 %v2923
  %2943 = vmatpush.msra.mxu0 %v2922
  %2944 = vmatpush.msra.mxu0 %v2921
  %2945 = vmatpush.msra.mxu0 %v2920
  %2946 = vmatpush.msra.mxu0 %v2919
  %2947 = vmatpush.msra.mxu0 %v2918
  %2948 = vmatpush.msra.mxu0 %v2917
  %2949 = vmatmul.f32.gmra.mxu0 %v2805
  %v2950 = vpop.f32.mrf.mxu0
  %v2951 = vadd.f32 0.0, %v2950
  %2952 = vmatmul.f32.gmra.mxu0 %v2808
  %v2953 = vpop.f32.mrf.mxu0
  %v2954 = vadd.f32 0.0, %v2953
  %2955 = vmatmul.f32.gmra.mxu0 %v2811
  %v2956 = vpop.f32.mrf.mxu0
  %v2957 = vadd.f32 0.0, %v2956
  %2958 = vmatmul.f32.gmra.mxu0 %v2814
  %v2959 = vpop.f32.mrf.mxu0
  %v2960 = vadd.f32 0.0, %v2959
  %2961 = vmatmul.f32.gmra.mxu0 %v2817
  %v2962 = vpop.f32.mrf.mxu0
  %v2963 = vadd.f32 0.0, %v2962
  %2964 = vmatmul.f32.gmra.mxu0 %v2820
  %v2965 = vpop.f32.mrf.mxu0
  %v2966 = vadd.f32 0.0, %v2965
  %2967 = vmatmul.f32.gmra.mxu0 %v2823
  %v2968 = vpop.f32.mrf.mxu0
  %v2969 = vadd.f32 0.0, %v2968
  %2970 = vmatmul.f32.gmra.mxu0 %v2826
  %v2971 = vpop.f32.mrf.mxu0
  %v2972 = vadd.f32 0.0, %v2971
  %2973 = vmatmul.f32.gmra.mxu0 %v2829
  %v2974 = vpop.f32.mrf.mxu0
  %v2975 = vadd.f32 0.0, %v2974
  %2976 = vmatmul.f32.gmra.mxu0 %v2832
  %v2977 = vpop.f32.mrf.mxu0
  %v2978 = vadd.f32 0.0, %v2977
  %2979 = vmatmul.f32.gmra.mxu0 %v2835
  %v2980 = vpop.f32.mrf.mxu0
  %v2981 = vadd.f32 0.0, %v2980
  %2982 = vmatmul.f32.gmra.mxu0 %v2838
  %v2983 = vpop.f32.mrf.mxu0
  %v2984 = vadd.f32 0.0, %v2983
  %2985 = vmatmul.f32.gmra.mxu0 %v2841
  %v2986 = vpop.f32.mrf.mxu0
  %v2987 = vadd.f32 0.0, %v2986
  %2988 = vmatmul.f32.gmra.mxu0 %v2844
  %v2989 = vpop.f32.mrf.mxu0
  %v2990 = vadd.f32 0.0, %v2989
  %2991 = vmatmul.f32.gmra.mxu0 %v2847
  %v2992 = vpop.f32.mrf.mxu0
  %v2993 = vadd.f32 0.0, %v2992
  %2994 = vmatmul.f32.gmra.mxu0 %v2850
  %v2995 = vpop.f32.mrf.mxu0
  %v2996 = vadd.f32 0.0, %v2995
  %2997 = vdwg.mxu0
  %v2998 = vadd.f32 %v28, %v32
  %v2999 = vadd.f32 %v2998, %v36
  %v3000 = vadd.f32 %v2999, %v40
  %v3001 = vadd.f32 %v3000, %v44
  %v3002 = vadd.f32 %v3001, %v48
  %v3003 = vadd.f32 %v3002, %v52
  %v3004 = vadd.f32 %v3003, %v56
  %v3005 = vrot.slane %v3004, 4
  %v3006 = vadd.f32 %v3004, %v3005
  %v3007 = vrot.slane %v3006, 2
  %v3008 = vadd.f32 %v3006, %v3007
  %v3009 = vrot.slane %v3008, 1
  %v3010 = vadd.f32 %v3008, %v3009
  %v3011 = vadd.f32 %v29, %v33
  %v3012 = vadd.f32 %v3011, %v37
  %v3013 = vadd.f32 %v3012, %v41
  %v3014 = vadd.f32 %v3013, %v45
  %v3015 = vadd.f32 %v3014, %v49
  %v3016 = vadd.f32 %v3015, %v53
  %v3017 = vadd.f32 %v3016, %v57
  %v3018 = vrot.slane %v3017, 4
  %v3019 = vadd.f32 %v3017, %v3018
  %v3020 = vrot.slane %v3019, 2
  %v3021 = vadd.f32 %v3019, %v3020
  %v3022 = vrot.slane %v3021, 1
  %v3023 = vadd.f32 %v3021, %v3022
  %v3024 = vadd.f32 %v30, %v34
  %v3025 = vadd.f32 %v3024, %v38
  %v3026 = vadd.f32 %v3025, %v42
  %v3027 = vadd.f32 %v3026, %v46
  %v3028 = vadd.f32 %v3027, %v50
  %v3029 = vadd.f32 %v3028, %v54
  %v3030 = vadd.f32 %v3029, %v58
  %v3031 = vrot.slane %v3030, 4
  %v3032 = vadd.f32 %v3030, %v3031
  %v3033 = vrot.slane %v3032, 2
  %v3034 = vadd.f32 %v3032, %v3033
  %v3035 = vrot.slane %v3034, 1
  %v3036 = vadd.f32 %v3034, %v3035
  %v3037 = vadd.f32 %v31, %v35
  %v3038 = vadd.f32 %v3037, %v39
  %v3039 = vadd.f32 %v3038, %v43
  %v3040 = vadd.f32 %v3039, %v47
  %v3041 = vadd.f32 %v3040, %v51
  %v3042 = vadd.f32 %v3041, %v55
  %v3043 = vadd.f32 %v3042, %v59
  %v3044 = vrot.slane %v3043, 4
  %v3045 = vadd.f32 %v3043, %v3044
  %v3046 = vrot.slane %v3045, 2
  %v3047 = vadd.f32 %v3045, %v3046
  %v3048 = vrot.slane %v3047, 1
  %v3049 = vadd.f32 %v3047, %v3048
  %v3050 = vmul.f32 %v3010, %v728
  %v3051 = vmul.f32 %v3023, %v728
  %v3052 = vmul.f32 %v3036, %v728
  %v3053 = vmul.f32 %v3049, %v728
  %v3054 = vadd.f32 %v60, %v64
  %v3055 = vadd.f32 %v3054, %v68
  %v3056 = vadd.f32 %v3055, %v72
  %v3057 = vadd.f32 %v3056, %v76
  %v3058 = vadd.f32 %v3057, %v80
  %v3059 = vadd.f32 %v3058, %v84
  %v3060 = vadd.f32 %v3059, %v88
  %v3061 = vrot.slane %v3060, 4
  %v3062 = vadd.f32 %v3060, %v3061
  %v3063 = vrot.slane %v3062, 2
  %v3064 = vadd.f32 %v3062, %v3063
  %v3065 = vrot.slane %v3064, 1
  %v3066 = vadd.f32 %v3064, %v3065
  %v3067 = vadd.f32 %v61, %v65
  %v3068 = vadd.f32 %v3067, %v69
  %v3069 = vadd.f32 %v3068, %v73
  %v3070 = vadd.f32 %v3069, %v77
  %v3071 = vadd.f32 %v3070, %v81
  %v3072 = vadd.f32 %v3071, %v85
  %v3073 = vadd.f32 %v3072, %v89
  %v3074 = vrot.slane %v3073, 4
  %v3075 = vadd.f32 %v3073, %v3074
  %v3076 = vrot.slane %v3075, 2
  %v3077 = vadd.f32 %v3075, %v3076
  %v3078 = vrot.slane %v3077, 1
  %v3079 = vadd.f32 %v3077, %v3078
  %v3080 = vadd.f32 %v62, %v66
  %v3081 = vadd.f32 %v3080, %v70
  %v3082 = vadd.f32 %v3081, %v74
  %v3083 = vadd.f32 %v3082, %v78
  %v3084 = vadd.f32 %v3083, %v82
  %v3085 = vadd.f32 %v3084, %v86
  %v3086 = vadd.f32 %v3085, %v90
  %v3087 = vrot.slane %v3086, 4
  %v3088 = vadd.f32 %v3086, %v3087
  %v3089 = vrot.slane %v3088, 2
  %v3090 = vadd.f32 %v3088, %v3089
  %v3091 = vrot.slane %v3090, 1
  %v3092 = vadd.f32 %v3090, %v3091
  %v3093 = vadd.f32 %v63, %v67
  %v3094 = vadd.f32 %v3093, %v71
  %v3095 = vadd.f32 %v3094, %v75
  %v3096 = vadd.f32 %v3095, %v79
  %v3097 = vadd.f32 %v3096, %v83
  %v3098 = vadd.f32 %v3097, %v87
  %v3099 = vadd.f32 %v3098, %v91
  %v3100 = vrot.slane %v3099, 4
  %v3101 = vadd.f32 %v3099, %v3100
  %v3102 = vrot.slane %v3101, 2
  %v3103 = vadd.f32 %v3101, %v3102
  %v3104 = vrot.slane %v3103, 1
  %v3105 = vadd.f32 %v3103, %v3104
  %v3106 = vmul.f32 %v3066, %v728
  %v3107 = vmul.f32 %v3079, %v728
  %v3108 = vmul.f32 %v3092, %v728
  %v3109 = vmul.f32 %v3105, %v728
  %v3110 = vsub.f32 %v28, %v3050
  %v3111 = vsub.f32 %v29, %v3051
  %v3112 = vsub.f32 %v30, %v3052
  %v3113 = vsub.f32 %v31, %v3053
  %v3114 = vsub.f32 %v32, %v3050
  %v3115 = vsub.f32 %v33, %v3051
  %v3116 = vsub.f32 %v34, %v3052
  %v3117 = vsub.f32 %v35, %v3053
  %v3118 = vsub.f32 %v36, %v3050
  %v3119 = vsub.f32 %v37, %v3051
  %v3120 = vsub.f32 %v38, %v3052
  %v3121 = vsub.f32 %v39, %v3053
  %v3122 = vsub.f32 %v40, %v3050
  %v3123 = vsub.f32 %v41, %v3051
  %v3124 = vsub.f32 %v42, %v3052
  %v3125 = vsub.f32 %v43, %v3053
  %v3126 = vsub.f32 %v44, %v3050
  %v3127 = vsub.f32 %v45, %v3051
  %v3128 = vsub.f32 %v46, %v3052
  %v3129 = vsub.f32 %v47, %v3053
  %v3130 = vsub.f32 %v48, %v3050
  %v3131 = vsub.f32 %v49, %v3051
  %v3132 = vsub.f32 %v50, %v3052
  %v3133 = vsub.f32 %v51, %v3053
  %v3134 = vsub.f32 %v52, %v3050
  %v3135 = vsub.f32 %v53, %v3051
  %v3136 = vsub.f32 %v54, %v3052
  %v3137 = vsub.f32 %v55, %v3053
  %v3138 = vsub.f32 %v56, %v3050
  %v3139 = vsub.f32 %v57, %v3051
  %v3140 = vsub.f32 %v58, %v3052
  %v3141 = vsub.f32 %v59, %v3053
  %v3142 = vsub.f32 %v60, %v3106
  %v3143 = vsub.f32 %v61, %v3107
  %v3144 = vsub.f32 %v62, %v3108
  %v3145 = vsub.f32 %v63, %v3109
  %v3146 = vsub.f32 %v64, %v3106
  %v3147 = vsub.f32 %v65, %v3107
  %v3148 = vsub.f32 %v66, %v3108
  %v3149 = vsub.f32 %v67, %v3109
  %v3150 = vsub.f32 %v68, %v3106
  %v3151 = vsub.f32 %v69, %v3107
  %v3152 = vsub.f32 %v70, %v3108
  %v3153 = vsub.f32 %v71, %v3109
  %v3154 = vsub.f32 %v72, %v3106
  %v3155 = vsub.f32 %v73, %v3107
  %v3156 = vsub.f32 %v74, %v3108
  %v3157 = vsub.f32 %v75, %v3109
  %v3158 = vsub.f32 %v76, %v3106
  %v3159 = vsub.f32 %v77, %v3107
  %v3160 = vsub.f32 %v78, %v3108
  %v3161 = vsub.f32 %v79, %v3109
  %v3162 = vsub.f32 %v80, %v3106
  %v3163 = vsub.f32 %v81, %v3107
  %v3164 = vsub.f32 %v82, %v3108
  %v3165 = vsub.f32 %v83, %v3109
  %v3166 = vsub.f32 %v84, %v3106
  %v3167 = vsub.f32 %v85, %v3107
  %v3168 = vsub.f32 %v86, %v3108
  %v3169 = vsub.f32 %v87, %v3109
  %v3170 = vsub.f32 %v88, %v3106
  %v3171 = vsub.f32 %v89, %v3107
  %v3172 = vsub.f32 %v90, %v3108
  %v3173 = vsub.f32 %v91, %v3109
  %v3174 = vmul.f32 %v3110, %v3110
  %v3175 = vmul.f32 %v3111, %v3111
  %v3176 = vmul.f32 %v3112, %v3112
  %v3177 = vmul.f32 %v3113, %v3113
  %v3178 = vmul.f32 %v3114, %v3114
  %v3179 = vmul.f32 %v3115, %v3115
  %v3180 = vmul.f32 %v3116, %v3116
  %v3181 = vmul.f32 %v3117, %v3117
  %v3182 = vmul.f32 %v3118, %v3118
  %v3183 = vmul.f32 %v3119, %v3119
  %v3184 = vmul.f32 %v3120, %v3120
  %v3185 = vmul.f32 %v3121, %v3121
  %v3186 = vmul.f32 %v3122, %v3122
  %v3187 = vmul.f32 %v3123, %v3123
  %v3188 = vmul.f32 %v3124, %v3124
  %v3189 = vmul.f32 %v3125, %v3125
  %v3190 = vmul.f32 %v3126, %v3126
  %v3191 = vmul.f32 %v3127, %v3127
  %v3192 = vmul.f32 %v3128, %v3128
  %v3193 = vmul.f32 %v3129, %v3129
  %v3194 = vmul.f32 %v3130, %v3130
  %v3195 = vmul.f32 %v3131, %v3131
  %v3196 = vmul.f32 %v3132, %v3132
  %v3197 = vmul.f32 %v3133, %v3133
  %v3198 = vmul.f32 %v3134, %v3134
  %v3199 = vmul.f32 %v3135, %v3135
  %v3200 = vmul.f32 %v3136, %v3136
  %v3201 = vmul.f32 %v3137, %v3137
  %v3202 = vmul.f32 %v3138, %v3138
  %v3203 = vmul.f32 %v3139, %v3139
  %v3204 = vmul.f32 %v3140, %v3140
  %v3205 = vmul.f32 %v3141, %v3141
  %v3206 = vadd.f32 %v3174, %v3178
  %v3207 = vadd.f32 %v3206, %v3182
  %v3208 = vadd.f32 %v3207, %v3186
  %v3209 = vadd.f32 %v3208, %v3190
  %v3210 = vadd.f32 %v3209, %v3194
  %v3211 = vadd.f32 %v3210, %v3198
  %v3212 = vadd.f32 %v3211, %v3202
  %v3213 = vrot.slane %v3212, 4
  %v3214 = vadd.f32 %v3212, %v3213
  %v3215 = vrot.slane %v3214, 2
  %v3216 = vadd.f32 %v3214, %v3215
  %v3217 = vrot.slane %v3216, 1
  %v3218 = vadd.f32 %v3216, %v3217
  %v3219 = vadd.f32 %v3175, %v3179
  %v3220 = vadd.f32 %v3219, %v3183
  %v3221 = vadd.f32 %v3220, %v3187
  %v3222 = vadd.f32 %v3221, %v3191
  %v3223 = vadd.f32 %v3222, %v3195
  %v3224 = vadd.f32 %v3223, %v3199
  %v3225 = vadd.f32 %v3224, %v3203
  %v3226 = vrot.slane %v3225, 4
  %v3227 = vadd.f32 %v3225, %v3226
  %v3228 = vrot.slane %v3227, 2
  %v3229 = vadd.f32 %v3227, %v3228
  %v3230 = vrot.slane %v3229, 1
  %v3231 = vadd.f32 %v3229, %v3230
  %v3232 = vadd.f32 %v3176, %v3180
  %v3233 = vadd.f32 %v3232, %v3184
  %v3234 = vadd.f32 %v3233, %v3188
  %v3235 = vadd.f32 %v3234, %v3192
  %v3236 = vadd.f32 %v3235, %v3196
  %v3237 = vadd.f32 %v3236, %v3200
  %v3238 = vadd.f32 %v3237, %v3204
  %v3239 = vrot.slane %v3238, 4
  %v3240 = vadd.f32 %v3238, %v3239
  %v3241 = vrot.slane %v3240, 2
  %v3242 = vadd.f32 %v3240, %v3241
  %v3243 = vrot.slane %v3242, 1
  %v3244 = vadd.f32 %v3242, %v3243
  %v3245 = vadd.f32 %v3177, %v3181
  %v3246 = vadd.f32 %v3245, %v3185
  %v3247 = vadd.f32 %v3246, %v3189
  %v3248 = vadd.f32 %v3247, %v3193
  %v3249 = vadd.f32 %v3248, %v3197
  %v3250 = vadd.f32 %v3249, %v3201
  %v3251 = vadd.f32 %v3250, %v3205
  %v3252 = vrot.slane %v3251, 4
  %v3253 = vadd.f32 %v3251, %v3252
  %v3254 = vrot.slane %v3253, 2
  %v3255 = vadd.f32 %v3253, %v3254
  %v3256 = vrot.slane %v3255, 1
  %v3257 = vadd.f32 %v3255, %v3256
  %v3258 = vmul.f32 %v3218, %v728
  %v3259 = vmul.f32 %v3231, %v728
  %v3260 = vmul.f32 %v3244, %v728
  %v3261 = vmul.f32 %v3257, %v728
  %v3262 = vmul.f32 %v3142, %v3142
  %v3263 = vmul.f32 %v3143, %v3143
  %v3264 = vmul.f32 %v3144, %v3144
  %v3265 = vmul.f32 %v3145, %v3145
  %v3266 = vmul.f32 %v3146, %v3146
  %v3267 = vmul.f32 %v3147, %v3147
  %v3268 = vmul.f32 %v3148, %v3148
  %v3269 = vmul.f32 %v3149, %v3149
  %v3270 = vmul.f32 %v3150, %v3150
  %v3271 = vmul.f32 %v3151, %v3151
  %v3272 = vmul.f32 %v3152, %v3152
  %v3273 = vmul.f32 %v3153, %v3153
  %v3274 = vmul.f32 %v3154, %v3154
  %v3275 = vmul.f32 %v3155, %v3155
  %v3276 = vmul.f32 %v3156, %v3156
  %v3277 = vmul.f32 %v3157, %v3157
  %v3278 = vmul.f32 %v3158, %v3158
  %v3279 = vmul.f32 %v3159, %v3159
  %v3280 = vmul.f32 %v3160, %v3160
  %v3281 = vmul.f32 %v3161, %v3161
  %v3282 = vmul.f32 %v3162, %v3162
  %v3283 = vmul.f32 %v3163, %v3163
  %v3284 = vmul.f32 %v3164, %v3164
  %v3285 = vmul.f32 %v3165, %v3165
  %v3286 = vmul.f32 %v3166, %v3166
  %v3287 = vmul.f32 %v3167, %v3167
  %v3288 = vmul.f32 %v3168, %v3168
  %v3289 = vmul.f32 %v3169, %v3169
  %v3290 = vmul.f32 %v3170, %v3170
  %v3291 = vmul.f32 %v3171, %v3171
  %v3292 = vmul.f32 %v3172, %v3172
  %v3293 = vmul.f32 %v3173, %v3173
  %v3294 = vadd.f32 %v3262, %v3266
  %v3295 = vadd.f32 %v3294, %v3270
  %v3296 = vadd.f32 %v3295, %v3274
  %v3297 = vadd.f32 %v3296, %v3278
  %v3298 = vadd.f32 %v3297, %v3282
  %v3299 = vadd.f32 %v3298, %v3286
  %v3300 = vadd.f32 %v3299, %v3290
  %v3301 = vrot.slane %v3300, 4
  %v3302 = vadd.f32 %v3300, %v3301
  %v3303 = vrot.slane %v3302, 2
  %v3304 = vadd.f32 %v3302, %v3303
  %v3305 = vrot.slane %v3304, 1
  %v3306 = vadd.f32 %v3304, %v3305
  %v3307 = vadd.f32 %v3263, %v3267
  %v3308 = vadd.f32 %v3307, %v3271
  %v3309 = vadd.f32 %v3308, %v3275
  %v3310 = vadd.f32 %v3309, %v3279
  %v3311 = vadd.f32 %v3310, %v3283
  %v3312 = vadd.f32 %v3311, %v3287
  %v3313 = vadd.f32 %v3312, %v3291
  %v3314 = vrot.slane %v3313, 4
  %v3315 = vadd.f32 %v3313, %v3314
  %v3316 = vrot.slane %v3315, 2
  %v3317 = vadd.f32 %v3315, %v3316
  %v3318 = vrot.slane %v3317, 1
  %v3319 = vadd.f32 %v3317, %v3318
  %v3320 = vadd.f32 %v3264, %v3268
  %v3321 = vadd.f32 %v3320, %v3272
  %v3322 = vadd.f32 %v3321, %v3276
  %v3323 = vadd.f32 %v3322, %v3280
  %v3324 = vadd.f32 %v3323, %v3284
  %v3325 = vadd.f32 %v3324, %v3288
  %v3326 = vadd.f32 %v3325, %v3292
  %v3327 = vrot.slane %v3326, 4
  %v3328 = vadd.f32 %v3326, %v3327
  %v3329 = vrot.slane %v3328, 2
  %v3330 = vadd.f32 %v3328, %v3329
  %v3331 = vrot.slane %v3330, 1
  %v3332 = vadd.f32 %v3330, %v3331
  %v3333 = vadd.f32 %v3265, %v3269
  %v3334 = vadd.f32 %v3333, %v3273
  %v3335 = vadd.f32 %v3334, %v3277
  %v3336 = vadd.f32 %v3335, %v3281
  %v3337 = vadd.f32 %v3336, %v3285
  %v3338 = vadd.f32 %v3337, %v3289
  %v3339 = vadd.f32 %v3338, %v3293
  %v3340 = vrot.slane %v3339, 4
  %v3341 = vadd.f32 %v3339, %v3340
  %v3342 = vrot.slane %v3341, 2
  %v3343 = vadd.f32 %v3341, %v3342
  %v3344 = vrot.slane %v3343, 1
  %v3345 = vadd.f32 %v3343, %v3344
  %v3346 = vmul.f32 %v3306, %v728
  %v3347 = vmul.f32 %v3319, %v728
  %v3348 = vmul.f32 %v3332, %v728
  %v3349 = vmul.f32 %v3345, %v728
  %v3351 = vsel %vm697, %v2951, 0
  %v3354 = vsel %vm697, %v2954, 0
  %v3357 = vsel %vm697, %v2957, 0
  %v3360 = vsel %vm697, %v2960, 0
  %v3363 = vsel %vm697, %v2963, 0
  %v3366 = vsel %vm697, %v2966, 0
  %v3369 = vsel %vm697, %v2969, 0
  %v3372 = vsel %vm697, %v2972, 0
  %3374 = vmatpush.msra.mxu0 0.0
  %3375 = vmatpush.msra.mxu0 0.0
  %3376 = vmatpush.msra.mxu0 0.0
  %3377 = vmatpush.msra.mxu0 0.0
  %3378 = vmatpush.msra.mxu0 0.0
  %3379 = vmatpush.msra.mxu0 0.0
  %3380 = vmatpush.msra.mxu0 0.0
  %3381 = vmatpush.msra.mxu0 0.0
  %3382 = vmatpush.msra.mxu0 %v744
  %3383 = vmatpush.msra.mxu0 %v743
  %3384 = vmatpush.msra.mxu0 %v742
  %3385 = vmatpush.msra.mxu0 %v741
  %3386 = vmatpush.msra.mxu0 %v740
  %3387 = vmatpush.msra.mxu0 %v739
  %3388 = vmatpush.msra.mxu0 %v738
  %3389 = vmatpush.msra.mxu0 %v737
  %3390 = vmatmul.f32.gmra.mxu0 %v3351
  %v3391 = vpop.f32.mrf.mxu0
  %v3392 = vadd.f32 0.0, %v3391
  %3393 = vmatmul.f32.gmra.mxu0 %v3354
  %v3394 = vpop.f32.mrf.mxu0
  %v3395 = vadd.f32 0.0, %v3394
  %3396 = vmatmul.f32.gmra.mxu0 %v3357
  %v3397 = vpop.f32.mrf.mxu0
  %v3398 = vadd.f32 0.0, %v3397
  %3399 = vmatmul.f32.gmra.mxu0 %v3360
  %v3400 = vpop.f32.mrf.mxu0
  %v3401 = vadd.f32 0.0, %v3400
  %3402 = vmatmul.f32.gmra.mxu0 %v3363
  %v3403 = vpop.f32.mrf.mxu0
  %v3404 = vadd.f32 0.0, %v3403
  %3405 = vmatmul.f32.gmra.mxu0 %v3366
  %v3406 = vpop.f32.mrf.mxu0
  %v3407 = vadd.f32 0.0, %v3406
  %3408 = vmatmul.f32.gmra.mxu0 %v3369
  %v3409 = vpop.f32.mrf.mxu0
  %v3410 = vadd.f32 0.0, %v3409
  %3411 = vmatmul.f32.gmra.mxu0 %v3372
  %v3412 = vpop.f32.mrf.mxu0
  %v3413 = vadd.f32 0.0, %v3412
  %3414 = vdwg.mxu0
  %v3415 = vmul.f32 %v2951, 64.0
  %v3416 = vmul.f32 %v2954, 64.0
  %v3417 = vmul.f32 %v2957, 64.0
  %v3418 = vmul.f32 %v2960, 64.0
  %v3419 = vmul.f32 %v2963, 64.0
  %v3420 = vmul.f32 %v2966, 64.0
  %v3421 = vmul.f32 %v2969, 64.0
  %v3422 = vmul.f32 %v2972, 64.0
  %v3424 = vsel %vm697, %v3392, 0
  %v3427 = vsel %vm697, %v3395, 0
  %v3430 = vsel %vm697, %v3398, 0
  %v3433 = vsel %vm697, %v3401, 0
  %v3436 = vsel %vm697, %v3404, 0
  %v3439 = vsel %vm697, %v3407, 0
  %v3442 = vsel %vm697, %v3410, 0
  %v3445 = vsel %vm697, %v3413, 0
  %3447 = vmatpush.xpose.msra.mxu0 0.0
  %3448 = vmatpush.xpose.msra.mxu0 0.0
  %3449 = vmatpush.xpose.msra.mxu0 0.0
  %3450 = vmatpush.xpose.msra.mxu0 0.0
  %3451 = vmatpush.xpose.msra.mxu0 0.0
  %3452 = vmatpush.xpose.msra.mxu0 0.0
  %3453 = vmatpush.xpose.msra.mxu0 0.0
  %3454 = vmatpush.xpose.msra.mxu0 0.0
  %3455 = vmatpush.xpose.msra.mxu0 %v3445
  %3456 = vmatpush.xpose.msra.mxu0 %v3442
  %3457 = vmatpush.xpose.msra.mxu0 %v3439
  %3458 = vmatpush.xpose.msra.mxu0 %v3436
  %3459 = vmatpush.xpose.msra.mxu0 %v3433
  %3460 = vmatpush.xpose.msra.mxu0 %v3430
  %3461 = vmatpush.xpose.msra.mxu0 %v3427
  %3462 = vmatpush.xpose.msra.mxu0 %v3424
  %3463 = vmatmul.f32.gmra.mxu0 %v3424
  %v3464 = vpop.f32.mrf.mxu0
  %v3465 = vadd.f32 %v3415, %v3464
  %3466 = vmatmul.f32.gmra.mxu0 %v3427
  %v3467 = vpop.f32.mrf.mxu0
  %v3468 = vadd.f32 %v3416, %v3467
  %3469 = vmatmul.f32.gmra.mxu0 %v3430
  %v3470 = vpop.f32.mrf.mxu0
  %v3471 = vadd.f32 %v3417, %v3470
  %3472 = vmatmul.f32.gmra.mxu0 %v3433
  %v3473 = vpop.f32.mrf.mxu0
  %v3474 = vadd.f32 %v3418, %v3473
  %3475 = vmatmul.f32.gmra.mxu0 %v3436
  %v3476 = vpop.f32.mrf.mxu0
  %v3477 = vadd.f32 %v3419, %v3476
  %3478 = vmatmul.f32.gmra.mxu0 %v3439
  %v3479 = vpop.f32.mrf.mxu0
  %v3480 = vadd.f32 %v3420, %v3479
  %3481 = vmatmul.f32.gmra.mxu0 %v3442
  %v3482 = vpop.f32.mrf.mxu0
  %v3483 = vadd.f32 %v3421, %v3482
  %3484 = vmatmul.f32.gmra.mxu0 %v3445
  %v3485 = vpop.f32.mrf.mxu0
  %v3486 = vadd.f32 %v3422, %v3485
  %3487 = vdwg.mxu0
  %3496 = vrot.lane.b32.xlu0 %v2975, 64
  %v3497 = vpop.permute.xlu0 %3496
  %3498 = vrot.lane.b32.xlu0 %v2978, 64
  %v3499 = vpop.permute.xlu0 %3498
  %3500 = vrot.lane.b32.xlu0 %v2981, 64
  %v3501 = vpop.permute.xlu0 %3500
  %3502 = vrot.lane.b32.xlu0 %v2984, 64
  %v3503 = vpop.permute.xlu0 %3502
  %3504 = vrot.lane.b32.xlu0 %v2987, 64
  %v3505 = vpop.permute.xlu0 %3504
  %3506 = vrot.lane.b32.xlu0 %v2990, 64
  %v3507 = vpop.permute.xlu0 %3506
  %3508 = vrot.lane.b32.xlu0 %v2993, 64
  %v3509 = vpop.permute.xlu0 %3508
  %3510 = vrot.lane.b32.xlu0 %v2996, 64
  %v3511 = vpop.permute.xlu0 %3510
  %v3512 = vsel %vm697, %v3497, 0
  %v3514 = vsel %vm697, %v3499, 0
  %v3516 = vsel %vm697, %v3501, 0
  %v3518 = vsel %vm697, %v3503, 0
  %v3520 = vsel %vm697, %v3505, 0
  %v3522 = vsel %vm697, %v3507, 0
  %v3524 = vsel %vm697, %v3509, 0
  %v3526 = vsel %vm697, %v3511, 0
  %3528 = vmatpush.msra.mxu0 0.0
  %3529 = vmatpush.msra.mxu0 0.0
  %3530 = vmatpush.msra.mxu0 0.0
  %3531 = vmatpush.msra.mxu0 0.0
  %3532 = vmatpush.msra.mxu0 0.0
  %3533 = vmatpush.msra.mxu0 0.0
  %3534 = vmatpush.msra.mxu0 0.0
  %3535 = vmatpush.msra.mxu0 0.0
  %3536 = vmatpush.msra.mxu0 %v744
  %3537 = vmatpush.msra.mxu0 %v743
  %3538 = vmatpush.msra.mxu0 %v742
  %3539 = vmatpush.msra.mxu0 %v741
  %3540 = vmatpush.msra.mxu0 %v740
  %3541 = vmatpush.msra.mxu0 %v739
  %3542 = vmatpush.msra.mxu0 %v738
  %3543 = vmatpush.msra.mxu0 %v737
  %3544 = vmatmul.f32.gmra.mxu0 %v3512
  %v3545 = vpop.f32.mrf.mxu0
  %v3546 = vadd.f32 0.0, %v3545
  %3547 = vmatmul.f32.gmra.mxu0 %v3514
  %v3548 = vpop.f32.mrf.mxu0
  %v3549 = vadd.f32 0.0, %v3548
  %3550 = vmatmul.f32.gmra.mxu0 %v3516
  %v3551 = vpop.f32.mrf.mxu0
  %v3552 = vadd.f32 0.0, %v3551
  %3553 = vmatmul.f32.gmra.mxu0 %v3518
  %v3554 = vpop.f32.mrf.mxu0
  %v3555 = vadd.f32 0.0, %v3554
  %3556 = vmatmul.f32.gmra.mxu0 %v3520
  %v3557 = vpop.f32.mrf.mxu0
  %v3558 = vadd.f32 0.0, %v3557
  %3559 = vmatmul.f32.gmra.mxu0 %v3522
  %v3560 = vpop.f32.mrf.mxu0
  %v3561 = vadd.f32 0.0, %v3560
  %3562 = vmatmul.f32.gmra.mxu0 %v3524
  %v3563 = vpop.f32.mrf.mxu0
  %v3564 = vadd.f32 0.0, %v3563
  %3565 = vmatmul.f32.gmra.mxu0 %v3526
  %v3566 = vpop.f32.mrf.mxu0
  %v3567 = vadd.f32 0.0, %v3566
  %3568 = vdwg.mxu0
  %v3570 = vsel %vm697, %v689, 0
  %v3573 = vsel %vm697, %v690, 0
  %v3576 = vsel %vm697, %v691, 0
  %v3579 = vsel %vm697, %v692, 0
  %v3582 = vsel %vm697, %v693, 0
  %v3585 = vsel %vm697, %v694, 0
  %v3588 = vsel %vm697, %v695, 0
  %v3591 = vsel %vm697, %v696, 0
  %3593 = vmatpush.msra.mxu0 0.0
  %3594 = vmatpush.msra.mxu0 0.0
  %3595 = vmatpush.msra.mxu0 0.0
  %3596 = vmatpush.msra.mxu0 0.0
  %3597 = vmatpush.msra.mxu0 0.0
  %3598 = vmatpush.msra.mxu0 0.0
  %3599 = vmatpush.msra.mxu0 0.0
  %3600 = vmatpush.msra.mxu0 0.0
  %3601 = vmatpush.msra.mxu0 %v3567
  %3602 = vmatpush.msra.mxu0 %v3564
  %3603 = vmatpush.msra.mxu0 %v3561
  %3604 = vmatpush.msra.mxu0 %v3558
  %3605 = vmatpush.msra.mxu0 %v3555
  %3606 = vmatpush.msra.mxu0 %v3552
  %3607 = vmatpush.msra.mxu0 %v3549
  %3608 = vmatpush.msra.mxu0 %v3546
  %3609 = vmatmul.f32.gmra.mxu0 %v3570
  %v3610 = vpop.f32.mrf.mxu0
  %v3611 = vadd.f32 0.0, %v3610
  %3612 = vmatmul.f32.gmra.mxu0 %v3573
  %v3613 = vpop.f32.mrf.mxu0
  %v3614 = vadd.f32 0.0, %v3613
  %3615 = vmatmul.f32.gmra.mxu0 %v3576
  %v3616 = vpop.f32.mrf.mxu0
  %v3617 = vadd.f32 0.0, %v3616
  %3618 = vmatmul.f32.gmra.mxu0 %v3579
  %v3619 = vpop.f32.mrf.mxu0
  %v3620 = vadd.f32 0.0, %v3619
  %3621 = vmatmul.f32.gmra.mxu0 %v3582
  %v3622 = vpop.f32.mrf.mxu0
  %v3623 = vadd.f32 0.0, %v3622
  %3624 = vmatmul.f32.gmra.mxu0 %v3585
  %v3625 = vpop.f32.mrf.mxu0
  %v3626 = vadd.f32 0.0, %v3625
  %3627 = vmatmul.f32.gmra.mxu0 %v3588
  %v3628 = vpop.f32.mrf.mxu0
  %v3629 = vadd.f32 0.0, %v3628
  %3630 = vmatmul.f32.gmra.mxu0 %v3591
  %v3631 = vpop.f32.mrf.mxu0
  %v3632 = vadd.f32 0.0, %v3631
  %3633 = vdwg.mxu0
  %v3635 = vsel %vm697, %v3611, 0
  %v3638 = vsel %vm697, %v3614, 0
  %v3641 = vsel %vm697, %v3617, 0
  %v3644 = vsel %vm697, %v3620, 0
  %v3647 = vsel %vm697, %v3623, 0
  %v3650 = vsel %vm697, %v3626, 0
  %v3653 = vsel %vm697, %v3629, 0
  %v3656 = vsel %vm697, %v3632, 0
  %3658 = vmatpush.msra.mxu0 0.0
  %3659 = vmatpush.msra.mxu0 0.0
  %3660 = vmatpush.msra.mxu0 0.0
  %3661 = vmatpush.msra.mxu0 0.0
  %3662 = vmatpush.msra.mxu0 0.0
  %3663 = vmatpush.msra.mxu0 0.0
  %3664 = vmatpush.msra.mxu0 0.0
  %3665 = vmatpush.msra.mxu0 0.0
  %3666 = vmatpush.msra.mxu0 %v3138
  %3667 = vmatpush.msra.mxu0 %v3134
  %3668 = vmatpush.msra.mxu0 %v3130
  %3669 = vmatpush.msra.mxu0 %v3126
  %3670 = vmatpush.msra.mxu0 %v3122
  %3671 = vmatpush.msra.mxu0 %v3118
  %3672 = vmatpush.msra.mxu0 %v3114
  %3673 = vmatpush.msra.mxu0 %v3110
  %3674 = vmatmul.f32.gmra.mxu0 %v3635
  %v3675 = vpop.f32.mrf.mxu0
  %v3676 = vadd.f32 0.0, %v3675
  %3677 = vmatmul.f32.gmra.mxu0 %v3638
  %v3678 = vpop.f32.mrf.mxu0
  %v3679 = vadd.f32 0.0, %v3678
  %3680 = vmatmul.f32.gmra.mxu0 %v3641
  %v3681 = vpop.f32.mrf.mxu0
  %v3682 = vadd.f32 0.0, %v3681
  %3683 = vmatmul.f32.gmra.mxu0 %v3644
  %v3684 = vpop.f32.mrf.mxu0
  %v3685 = vadd.f32 0.0, %v3684
  %3686 = vmatmul.f32.gmra.mxu0 %v3647
  %v3687 = vpop.f32.mrf.mxu0
  %v3688 = vadd.f32 0.0, %v3687
  %3689 = vmatmul.f32.gmra.mxu0 %v3650
  %v3690 = vpop.f32.mrf.mxu0
  %v3691 = vadd.f32 0.0, %v3690
  %3692 = vmatmul.f32.gmra.mxu0 %v3653
  %v3693 = vpop.f32.mrf.mxu0
  %v3694 = vadd.f32 0.0, %v3693
  %3695 = vmatmul.f32.gmra.mxu0 %v3656
  %v3696 = vpop.f32.mrf.mxu0
  %v3697 = vadd.f32 0.0, %v3696
  %3698 = vdwg.mxu0
  %3699 = vmatpush.msra.mxu0 0.0
  %3700 = vmatpush.msra.mxu0 0.0
  %3701 = vmatpush.msra.mxu0 0.0
  %3702 = vmatpush.msra.mxu0 0.0
  %3703 = vmatpush.msra.mxu0 0.0
  %3704 = vmatpush.msra.mxu0 0.0
  %3705 = vmatpush.msra.mxu0 0.0
  %3706 = vmatpush.msra.mxu0 0.0
  %3707 = vmatpush.msra.mxu0 %v3139
  %3708 = vmatpush.msra.mxu0 %v3135
  %3709 = vmatpush.msra.mxu0 %v3131
  %3710 = vmatpush.msra.mxu0 %v3127
  %3711 = vmatpush.msra.mxu0 %v3123
  %3712 = vmatpush.msra.mxu0 %v3119
  %3713 = vmatpush.msra.mxu0 %v3115
  %3714 = vmatpush.msra.mxu0 %v3111
  %3715 = vmatmul.f32.gmra.mxu0 %v3635
  %v3716 = vpop.f32.mrf.mxu0
  %v3717 = vadd.f32 0.0, %v3716
  %3718 = vmatmul.f32.gmra.mxu0 %v3638
  %v3719 = vpop.f32.mrf.mxu0
  %v3720 = vadd.f32 0.0, %v3719
  %3721 = vmatmul.f32.gmra.mxu0 %v3641
  %v3722 = vpop.f32.mrf.mxu0
  %v3723 = vadd.f32 0.0, %v3722
  %3724 = vmatmul.f32.gmra.mxu0 %v3644
  %v3725 = vpop.f32.mrf.mxu0
  %v3726 = vadd.f32 0.0, %v3725
  %3727 = vmatmul.f32.gmra.mxu0 %v3647
  %v3728 = vpop.f32.mrf.mxu0
  %v3729 = vadd.f32 0.0, %v3728
  %3730 = vmatmul.f32.gmra.mxu0 %v3650
  %v3731 = vpop.f32.mrf.mxu0
  %v3732 = vadd.f32 0.0, %v3731
  %3733 = vmatmul.f32.gmra.mxu0 %v3653
  %v3734 = vpop.f32.mrf.mxu0
  %v3735 = vadd.f32 0.0, %v3734
  %3736 = vmatmul.f32.gmra.mxu0 %v3656
  %v3737 = vpop.f32.mrf.mxu0
  %v3738 = vadd.f32 0.0, %v3737
  %3739 = vdwg.mxu0
  %3740 = vmatpush.msra.mxu0 0.0
  %3741 = vmatpush.msra.mxu0 0.0
  %3742 = vmatpush.msra.mxu0 0.0
  %3743 = vmatpush.msra.mxu0 0.0
  %3744 = vmatpush.msra.mxu0 0.0
  %3745 = vmatpush.msra.mxu0 0.0
  %3746 = vmatpush.msra.mxu0 0.0
  %3747 = vmatpush.msra.mxu0 0.0
  %3748 = vmatpush.msra.mxu0 %v3140
  %3749 = vmatpush.msra.mxu0 %v3136
  %3750 = vmatpush.msra.mxu0 %v3132
  %3751 = vmatpush.msra.mxu0 %v3128
  %3752 = vmatpush.msra.mxu0 %v3124
  %3753 = vmatpush.msra.mxu0 %v3120
  %3754 = vmatpush.msra.mxu0 %v3116
  %3755 = vmatpush.msra.mxu0 %v3112
  %3756 = vmatmul.f32.gmra.mxu0 %v3635
  %v3757 = vpop.f32.mrf.mxu0
  %v3758 = vadd.f32 0.0, %v3757
  %3759 = vmatmul.f32.gmra.mxu0 %v3638
  %v3760 = vpop.f32.mrf.mxu0
  %v3761 = vadd.f32 0.0, %v3760
  %3762 = vmatmul.f32.gmra.mxu0 %v3641
  %v3763 = vpop.f32.mrf.mxu0
  %v3764 = vadd.f32 0.0, %v3763
  %3765 = vmatmul.f32.gmra.mxu0 %v3644
  %v3766 = vpop.f32.mrf.mxu0
  %v3767 = vadd.f32 0.0, %v3766
  %3768 = vmatmul.f32.gmra.mxu0 %v3647
  %v3769 = vpop.f32.mrf.mxu0
  %v3770 = vadd.f32 0.0, %v3769
  %3771 = vmatmul.f32.gmra.mxu0 %v3650
  %v3772 = vpop.f32.mrf.mxu0
  %v3773 = vadd.f32 0.0, %v3772
  %3774 = vmatmul.f32.gmra.mxu0 %v3653
  %v3775 = vpop.f32.mrf.mxu0
  %v3776 = vadd.f32 0.0, %v3775
  %3777 = vmatmul.f32.gmra.mxu0 %v3656
  %v3778 = vpop.f32.mrf.mxu0
  %v3779 = vadd.f32 0.0, %v3778
  %3780 = vdwg.mxu0
  %3781 = vmatpush.msra.mxu0 0.0
  %3782 = vmatpush.msra.mxu0 0.0
  %3783 = vmatpush.msra.mxu0 0.0
  %3784 = vmatpush.msra.mxu0 0.0
  %3785 = vmatpush.msra.mxu0 0.0
  %3786 = vmatpush.msra.mxu0 0.0
  %3787 = vmatpush.msra.mxu0 0.0
  %3788 = vmatpush.msra.mxu0 0.0
  %3789 = vmatpush.msra.mxu0 %v3141
  %3790 = vmatpush.msra.mxu0 %v3137
  %3791 = vmatpush.msra.mxu0 %v3133
  %3792 = vmatpush.msra.mxu0 %v3129
  %3793 = vmatpush.msra.mxu0 %v3125
  %3794 = vmatpush.msra.mxu0 %v3121
  %3795 = vmatpush.msra.mxu0 %v3117
  %3796 = vmatpush.msra.mxu0 %v3113
  %3797 = vmatmul.f32.gmra.mxu0 %v3635
  %v3798 = vpop.f32.mrf.mxu0
  %v3799 = vadd.f32 0.0, %v3798
  %3800 = vmatmul.f32.gmra.mxu0 %v3638
  %v3801 = vpop.f32.mrf.mxu0
  %v3802 = vadd.f32 0.0, %v3801
  %3803 = vmatmul.f32.gmra.mxu0 %v3641
  %v3804 = vpop.f32.mrf.mxu0
  %v3805 = vadd.f32 0.0, %v3804
  %3806 = vmatmul.f32.gmra.mxu0 %v3644
  %v3807 = vpop.f32.mrf.mxu0
  %v3808 = vadd.f32 0.0, %v3807
  %3809 = vmatmul.f32.gmra.mxu0 %v3647
  %v3810 = vpop.f32.mrf.mxu0
  %v3811 = vadd.f32 0.0, %v3810
  %3812 = vmatmul.f32.gmra.mxu0 %v3650
  %v3813 = vpop.f32.mrf.mxu0
  %v3814 = vadd.f32 0.0, %v3813
  %3815 = vmatmul.f32.gmra.mxu0 %v3653
  %v3816 = vpop.f32.mrf.mxu0
  %v3817 = vadd.f32 0.0, %v3816
  %3818 = vmatmul.f32.gmra.mxu0 %v3656
  %v3819 = vpop.f32.mrf.mxu0
  %v3820 = vadd.f32 0.0, %v3819
  %3821 = vdwg.mxu0
  %3822 = vmatpush.msra.mxu0 0.0
  %3823 = vmatpush.msra.mxu0 0.0
  %3824 = vmatpush.msra.mxu0 0.0
  %3825 = vmatpush.msra.mxu0 0.0
  %3826 = vmatpush.msra.mxu0 0.0
  %3827 = vmatpush.msra.mxu0 0.0
  %3828 = vmatpush.msra.mxu0 0.0
  %3829 = vmatpush.msra.mxu0 0.0
  %3830 = vmatpush.msra.mxu0 %v3170
  %3831 = vmatpush.msra.mxu0 %v3166
  %3832 = vmatpush.msra.mxu0 %v3162
  %3833 = vmatpush.msra.mxu0 %v3158
  %3834 = vmatpush.msra.mxu0 %v3154
  %3835 = vmatpush.msra.mxu0 %v3150
  %3836 = vmatpush.msra.mxu0 %v3146
  %3837 = vmatpush.msra.mxu0 %v3142
  %3838 = vmatmul.f32.gmra.mxu0 %v3635
  %v3839 = vpop.f32.mrf.mxu0
  %v3840 = vadd.f32 0.0, %v3839
  %3841 = vmatmul.f32.gmra.mxu0 %v3638
  %v3842 = vpop.f32.mrf.mxu0
  %v3843 = vadd.f32 0.0, %v3842
  %3844 = vmatmul.f32.gmra.mxu0 %v3641
  %v3845 = vpop.f32.mrf.mxu0
  %v3846 = vadd.f32 0.0, %v3845
  %3847 = vmatmul.f32.gmra.mxu0 %v3644
  %v3848 = vpop.f32.mrf.mxu0
  %v3849 = vadd.f32 0.0, %v3848
  %3850 = vmatmul.f32.gmra.mxu0 %v3647
  %v3851 = vpop.f32.mrf.mxu0
  %v3852 = vadd.f32 0.0, %v3851
  %3853 = vmatmul.f32.gmra.mxu0 %v3650
  %v3854 = vpop.f32.mrf.mxu0
  %v3855 = vadd.f32 0.0, %v3854
  %3856 = vmatmul.f32.gmra.mxu0 %v3653
  %v3857 = vpop.f32.mrf.mxu0
  %v3858 = vadd.f32 0.0, %v3857
  %3859 = vmatmul.f32.gmra.mxu0 %v3656
  %v3860 = vpop.f32.mrf.mxu0
  %v3861 = vadd.f32 0.0, %v3860
  %3862 = vdwg.mxu0
  %3863 = vmatpush.msra.mxu0 0.0
  %3864 = vmatpush.msra.mxu0 0.0
  %3865 = vmatpush.msra.mxu0 0.0
  %3866 = vmatpush.msra.mxu0 0.0
  %3867 = vmatpush.msra.mxu0 0.0
  %3868 = vmatpush.msra.mxu0 0.0
  %3869 = vmatpush.msra.mxu0 0.0
  %3870 = vmatpush.msra.mxu0 0.0
  %3871 = vmatpush.msra.mxu0 %v3171
  %3872 = vmatpush.msra.mxu0 %v3167
  %3873 = vmatpush.msra.mxu0 %v3163
  %3874 = vmatpush.msra.mxu0 %v3159
  %3875 = vmatpush.msra.mxu0 %v3155
  %3876 = vmatpush.msra.mxu0 %v3151
  %3877 = vmatpush.msra.mxu0 %v3147
  %3878 = vmatpush.msra.mxu0 %v3143
  %3879 = vmatmul.f32.gmra.mxu0 %v3635
  %v3880 = vpop.f32.mrf.mxu0
  %v3881 = vadd.f32 0.0, %v3880
  %3882 = vmatmul.f32.gmra.mxu0 %v3638
  %v3883 = vpop.f32.mrf.mxu0
  %v3884 = vadd.f32 0.0, %v3883
  %3885 = vmatmul.f32.gmra.mxu0 %v3641
  %v3886 = vpop.f32.mrf.mxu0
  %v3887 = vadd.f32 0.0, %v3886
  %3888 = vmatmul.f32.gmra.mxu0 %v3644
  %v3889 = vpop.f32.mrf.mxu0
  %v3890 = vadd.f32 0.0, %v3889
  %3891 = vmatmul.f32.gmra.mxu0 %v3647
  %v3892 = vpop.f32.mrf.mxu0
  %v3893 = vadd.f32 0.0, %v3892
  %3894 = vmatmul.f32.gmra.mxu0 %v3650
  %v3895 = vpop.f32.mrf.mxu0
  %v3896 = vadd.f32 0.0, %v3895
  %3897 = vmatmul.f32.gmra.mxu0 %v3653
  %v3898 = vpop.f32.mrf.mxu0
  %v3899 = vadd.f32 0.0, %v3898
  %3900 = vmatmul.f32.gmra.mxu0 %v3656
  %v3901 = vpop.f32.mrf.mxu0
  %v3902 = vadd.f32 0.0, %v3901
  %3903 = vdwg.mxu0
  %3904 = vmatpush.msra.mxu0 0.0
  %3905 = vmatpush.msra.mxu0 0.0
  %3906 = vmatpush.msra.mxu0 0.0
  %3907 = vmatpush.msra.mxu0 0.0
  %3908 = vmatpush.msra.mxu0 0.0
  %3909 = vmatpush.msra.mxu0 0.0
  %3910 = vmatpush.msra.mxu0 0.0
  %3911 = vmatpush.msra.mxu0 0.0
  %3912 = vmatpush.msra.mxu0 %v3172
  %3913 = vmatpush.msra.mxu0 %v3168
  %3914 = vmatpush.msra.mxu0 %v3164
  %3915 = vmatpush.msra.mxu0 %v3160
  %3916 = vmatpush.msra.mxu0 %v3156
  %3917 = vmatpush.msra.mxu0 %v3152
  %3918 = vmatpush.msra.mxu0 %v3148
  %3919 = vmatpush.msra.mxu0 %v3144
  %3920 = vmatmul.f32.gmra.mxu0 %v3635
  %v3921 = vpop.f32.mrf.mxu0
  %v3922 = vadd.f32 0.0, %v3921
  %3923 = vmatmul.f32.gmra.mxu0 %v3638
  %v3924 = vpop.f32.mrf.mxu0
  %v3925 = vadd.f32 0.0, %v3924
  %3926 = vmatmul.f32.gmra.mxu0 %v3641
  %v3927 = vpop.f32.mrf.mxu0
  %v3928 = vadd.f32 0.0, %v3927
  %3929 = vmatmul.f32.gmra.mxu0 %v3644
  %v3930 = vpop.f32.mrf.mxu0
  %v3931 = vadd.f32 0.0, %v3930
  %3932 = vmatmul.f32.gmra.mxu0 %v3647
  %v3933 = vpop.f32.mrf.mxu0
  %v3934 = vadd.f32 0.0, %v3933
  %3935 = vmatmul.f32.gmra.mxu0 %v3650
  %v3936 = vpop.f32.mrf.mxu0
  %v3937 = vadd.f32 0.0, %v3936
  %3938 = vmatmul.f32.gmra.mxu0 %v3653
  %v3939 = vpop.f32.mrf.mxu0
  %v3940 = vadd.f32 0.0, %v3939
  %3941 = vmatmul.f32.gmra.mxu0 %v3656
  %v3942 = vpop.f32.mrf.mxu0
  %v3943 = vadd.f32 0.0, %v3942
  %3944 = vdwg.mxu0
  %3945 = vmatpush.msra.mxu0 0.0
  %3946 = vmatpush.msra.mxu0 0.0
  %3947 = vmatpush.msra.mxu0 0.0
  %3948 = vmatpush.msra.mxu0 0.0
  %3949 = vmatpush.msra.mxu0 0.0
  %3950 = vmatpush.msra.mxu0 0.0
  %3951 = vmatpush.msra.mxu0 0.0
  %3952 = vmatpush.msra.mxu0 0.0
  %3953 = vmatpush.msra.mxu0 %v3173
  %3954 = vmatpush.msra.mxu0 %v3169
  %3955 = vmatpush.msra.mxu0 %v3165
  %3956 = vmatpush.msra.mxu0 %v3161
  %3957 = vmatpush.msra.mxu0 %v3157
  %3958 = vmatpush.msra.mxu0 %v3153
  %3959 = vmatpush.msra.mxu0 %v3149
  %3960 = vmatpush.msra.mxu0 %v3145
  %3961 = vmatmul.f32.gmra.mxu0 %v3635
  %v3962 = vpop.f32.mrf.mxu0
  %v3963 = vadd.f32 0.0, %v3962
  %3964 = vmatmul.f32.gmra.mxu0 %v3638
  %v3965 = vpop.f32.mrf.mxu0
  %v3966 = vadd.f32 0.0, %v3965
  %3967 = vmatmul.f32.gmra.mxu0 %v3641
  %v3968 = vpop.f32.mrf.mxu0
  %v3969 = vadd.f32 0.0, %v3968
  %3970 = vmatmul.f32.gmra.mxu0 %v3644
  %v3971 = vpop.f32.mrf.mxu0
  %v3972 = vadd.f32 0.0, %v3971
  %3973 = vmatmul.f32.gmra.mxu0 %v3647
  %v3974 = vpop.f32.mrf.mxu0
  %v3975 = vadd.f32 0.0, %v3974
  %3976 = vmatmul.f32.gmra.mxu0 %v3650
  %v3977 = vpop.f32.mrf.mxu0
  %v3978 = vadd.f32 0.0, %v3977
  %3979 = vmatmul.f32.gmra.mxu0 %v3653
  %v3980 = vpop.f32.mrf.mxu0
  %v3981 = vadd.f32 0.0, %v3980
  %3982 = vmatmul.f32.gmra.mxu0 %v3656
  %v3983 = vpop.f32.mrf.mxu0
  %v3984 = vadd.f32 0.0, %v3983
  %3985 = vdwg.mxu0
  %v3987 = vsel %vm697, %v3465, 0
  %v3990 = vsel %vm697, %v3468, 0
  %v3993 = vsel %vm697, %v3471, 0
  %v3996 = vsel %vm697, %v3474, 0
  %v3999 = vsel %vm697, %v3477, 0
  %v4002 = vsel %vm697, %v3480, 0
  %v4005 = vsel %vm697, %v3483, 0
  %v4008 = vsel %vm697, %v3486, 0
  %4010 = vmatpush.msra.mxu0 0.0
  %4011 = vmatpush.msra.mxu0 0.0
  %4012 = vmatpush.msra.mxu0 0.0
  %4013 = vmatpush.msra.mxu0 0.0
  %4014 = vmatpush.msra.mxu0 0.0
  %4015 = vmatpush.msra.mxu0 0.0
  %4016 = vmatpush.msra.mxu0 0.0
  %4017 = vmatpush.msra.mxu0 0.0
  %4018 = vmatpush.msra.mxu0 %v3697
  %4019 = vmatpush.msra.mxu0 %v3694
  %4020 = vmatpush.msra.mxu0 %v3691
  %4021 = vmatpush.msra.mxu0 %v3688
  %4022 = vmatpush.msra.mxu0 %v3685
  %4023 = vmatpush.msra.mxu0 %v3682
  %4024 = vmatpush.msra.mxu0 %v3679
  %4025 = vmatpush.msra.mxu0 %v3676
  %4026 = vmatmul.f32.gmra.mxu0 %v3987
  %v4027 = vpop.f32.mrf.mxu0
  %v4028 = vadd.f32 0.0, %v4027
  %4029 = vmatmul.f32.gmra.mxu0 %v3990
  %v4030 = vpop.f32.mrf.mxu0
  %v4031 = vadd.f32 0.0, %v4030
  %4032 = vmatmul.f32.gmra.mxu0 %v3993
  %v4033 = vpop.f32.mrf.mxu0
  %v4034 = vadd.f32 0.0, %v4033
  %4035 = vmatmul.f32.gmra.mxu0 %v3996
  %v4036 = vpop.f32.mrf.mxu0
  %v4037 = vadd.f32 0.0, %v4036
  %4038 = vmatmul.f32.gmra.mxu0 %v3999
  %v4039 = vpop.f32.mrf.mxu0
  %v4040 = vadd.f32 0.0, %v4039
  %4041 = vmatmul.f32.gmra.mxu0 %v4002
  %v4042 = vpop.f32.mrf.mxu0
  %v4043 = vadd.f32 0.0, %v4042
  %4044 = vmatmul.f32.gmra.mxu0 %v4005
  %v4045 = vpop.f32.mrf.mxu0
  %v4046 = vadd.f32 0.0, %v4045
  %4047 = vmatmul.f32.gmra.mxu0 %v4008
  %v4048 = vpop.f32.mrf.mxu0
  %v4049 = vadd.f32 0.0, %v4048
  %4050 = vdwg.mxu0
  %4051 = vmatpush.msra.mxu0 0.0
  %4052 = vmatpush.msra.mxu0 0.0
  %4053 = vmatpush.msra.mxu0 0.0
  %4054 = vmatpush.msra.mxu0 0.0
  %4055 = vmatpush.msra.mxu0 0.0
  %4056 = vmatpush.msra.mxu0 0.0
  %4057 = vmatpush.msra.mxu0 0.0
  %4058 = vmatpush.msra.mxu0 0.0
  %4059 = vmatpush.msra.mxu0 %v3738
  %4060 = vmatpush.msra.mxu0 %v3735
  %4061 = vmatpush.msra.mxu0 %v3732
  %4062 = vmatpush.msra.mxu0 %v3729
  %4063 = vmatpush.msra.mxu0 %v3726
  %4064 = vmatpush.msra.mxu0 %v3723
  %4065 = vmatpush.msra.mxu0 %v3720
  %4066 = vmatpush.msra.mxu0 %v3717
  %4067 = vmatmul.f32.gmra.mxu0 %v3987
  %v4068 = vpop.f32.mrf.mxu0
  %v4069 = vadd.f32 0.0, %v4068
  %4070 = vmatmul.f32.gmra.mxu0 %v3990
  %v4071 = vpop.f32.mrf.mxu0
  %v4072 = vadd.f32 0.0, %v4071
  %4073 = vmatmul.f32.gmra.mxu0 %v3993
  %v4074 = vpop.f32.mrf.mxu0
  %v4075 = vadd.f32 0.0, %v4074
  %4076 = vmatmul.f32.gmra.mxu0 %v3996
  %v4077 = vpop.f32.mrf.mxu0
  %v4078 = vadd.f32 0.0, %v4077
  %4079 = vmatmul.f32.gmra.mxu0 %v3999
  %v4080 = vpop.f32.mrf.mxu0
  %v4081 = vadd.f32 0.0, %v4080
  %4082 = vmatmul.f32.gmra.mxu0 %v4002
  %v4083 = vpop.f32.mrf.mxu0
  %v4084 = vadd.f32 0.0, %v4083
  %4085 = vmatmul.f32.gmra.mxu0 %v4005
  %v4086 = vpop.f32.mrf.mxu0
  %v4087 = vadd.f32 0.0, %v4086
  %4088 = vmatmul.f32.gmra.mxu0 %v4008
  %v4089 = vpop.f32.mrf.mxu0
  %v4090 = vadd.f32 0.0, %v4089
  %4091 = vdwg.mxu0
  %4092 = vmatpush.msra.mxu0 0.0
  %4093 = vmatpush.msra.mxu0 0.0
  %4094 = vmatpush.msra.mxu0 0.0
  %4095 = vmatpush.msra.mxu0 0.0
  %4096 = vmatpush.msra.mxu0 0.0
  %4097 = vmatpush.msra.mxu0 0.0
  %4098 = vmatpush.msra.mxu0 0.0
  %4099 = vmatpush.msra.mxu0 0.0
  %4100 = vmatpush.msra.mxu0 %v3779
  %4101 = vmatpush.msra.mxu0 %v3776
  %4102 = vmatpush.msra.mxu0 %v3773
  %4103 = vmatpush.msra.mxu0 %v3770
  %4104 = vmatpush.msra.mxu0 %v3767
  %4105 = vmatpush.msra.mxu0 %v3764
  %4106 = vmatpush.msra.mxu0 %v3761
  %4107 = vmatpush.msra.mxu0 %v3758
  %4108 = vmatmul.f32.gmra.mxu0 %v3987
  %v4109 = vpop.f32.mrf.mxu0
  %v4110 = vadd.f32 0.0, %v4109
  %4111 = vmatmul.f32.gmra.mxu0 %v3990
  %v4112 = vpop.f32.mrf.mxu0
  %v4113 = vadd.f32 0.0, %v4112
  %4114 = vmatmul.f32.gmra.mxu0 %v3993
  %v4115 = vpop.f32.mrf.mxu0
  %v4116 = vadd.f32 0.0, %v4115
  %4117 = vmatmul.f32.gmra.mxu0 %v3996
  %v4118 = vpop.f32.mrf.mxu0
  %v4119 = vadd.f32 0.0, %v4118
  %4120 = vmatmul.f32.gmra.mxu0 %v3999
  %v4121 = vpop.f32.mrf.mxu0
  %v4122 = vadd.f32 0.0, %v4121
  %4123 = vmatmul.f32.gmra.mxu0 %v4002
  %v4124 = vpop.f32.mrf.mxu0
  %v4125 = vadd.f32 0.0, %v4124
  %4126 = vmatmul.f32.gmra.mxu0 %v4005
  %v4127 = vpop.f32.mrf.mxu0
  %v4128 = vadd.f32 0.0, %v4127
  %4129 = vmatmul.f32.gmra.mxu0 %v4008
  %v4130 = vpop.f32.mrf.mxu0
  %v4131 = vadd.f32 0.0, %v4130
  %4132 = vdwg.mxu0
  %4133 = vmatpush.msra.mxu0 0.0
  %4134 = vmatpush.msra.mxu0 0.0
  %4135 = vmatpush.msra.mxu0 0.0
  %4136 = vmatpush.msra.mxu0 0.0
  %4137 = vmatpush.msra.mxu0 0.0
  %4138 = vmatpush.msra.mxu0 0.0
  %4139 = vmatpush.msra.mxu0 0.0
  %4140 = vmatpush.msra.mxu0 0.0
  %4141 = vmatpush.msra.mxu0 %v3820
  %4142 = vmatpush.msra.mxu0 %v3817
  %4143 = vmatpush.msra.mxu0 %v3814
  %4144 = vmatpush.msra.mxu0 %v3811
  %4145 = vmatpush.msra.mxu0 %v3808
  %4146 = vmatpush.msra.mxu0 %v3805
  %4147 = vmatpush.msra.mxu0 %v3802
  %4148 = vmatpush.msra.mxu0 %v3799
  %4149 = vmatmul.f32.gmra.mxu0 %v3987
  %v4150 = vpop.f32.mrf.mxu0
  %v4151 = vadd.f32 0.0, %v4150
  %4152 = vmatmul.f32.gmra.mxu0 %v3990
  %v4153 = vpop.f32.mrf.mxu0
  %v4154 = vadd.f32 0.0, %v4153
  %4155 = vmatmul.f32.gmra.mxu0 %v3993
  %v4156 = vpop.f32.mrf.mxu0
  %v4157 = vadd.f32 0.0, %v4156
  %4158 = vmatmul.f32.gmra.mxu0 %v3996
  %v4159 = vpop.f32.mrf.mxu0
  %v4160 = vadd.f32 0.0, %v4159
  %4161 = vmatmul.f32.gmra.mxu0 %v3999
  %v4162 = vpop.f32.mrf.mxu0
  %v4163 = vadd.f32 0.0, %v4162
  %4164 = vmatmul.f32.gmra.mxu0 %v4002
  %v4165 = vpop.f32.mrf.mxu0
  %v4166 = vadd.f32 0.0, %v4165
  %4167 = vmatmul.f32.gmra.mxu0 %v4005
  %v4168 = vpop.f32.mrf.mxu0
  %v4169 = vadd.f32 0.0, %v4168
  %4170 = vmatmul.f32.gmra.mxu0 %v4008
  %v4171 = vpop.f32.mrf.mxu0
  %v4172 = vadd.f32 0.0, %v4171
  %4173 = vdwg.mxu0
  %4174 = vmatpush.msra.mxu0 0.0
  %4175 = vmatpush.msra.mxu0 0.0
  %4176 = vmatpush.msra.mxu0 0.0
  %4177 = vmatpush.msra.mxu0 0.0
  %4178 = vmatpush.msra.mxu0 0.0
  %4179 = vmatpush.msra.mxu0 0.0
  %4180 = vmatpush.msra.mxu0 0.0
  %4181 = vmatpush.msra.mxu0 0.0
  %4182 = vmatpush.msra.mxu0 %v3861
  %4183 = vmatpush.msra.mxu0 %v3858
  %4184 = vmatpush.msra.mxu0 %v3855
  %4185 = vmatpush.msra.mxu0 %v3852
  %4186 = vmatpush.msra.mxu0 %v3849
  %4187 = vmatpush.msra.mxu0 %v3846
  %4188 = vmatpush.msra.mxu0 %v3843
  %4189 = vmatpush.msra.mxu0 %v3840
  %4190 = vmatmul.f32.gmra.mxu0 %v3987
  %v4191 = vpop.f32.mrf.mxu0
  %v4192 = vadd.f32 0.0, %v4191
  %4193 = vmatmul.f32.gmra.mxu0 %v3990
  %v4194 = vpop.f32.mrf.mxu0
  %v4195 = vadd.f32 0.0, %v4194
  %4196 = vmatmul.f32.gmra.mxu0 %v3993
  %v4197 = vpop.f32.mrf.mxu0
  %v4198 = vadd.f32 0.0, %v4197
  %4199 = vmatmul.f32.gmra.mxu0 %v3996
  %v4200 = vpop.f32.mrf.mxu0
  %v4201 = vadd.f32 0.0, %v4200
  %4202 = vmatmul.f32.gmra.mxu0 %v3999
  %v4203 = vpop.f32.mrf.mxu0
  %v4204 = vadd.f32 0.0, %v4203
  %4205 = vmatmul.f32.gmra.mxu0 %v4002
  %v4206 = vpop.f32.mrf.mxu0
  %v4207 = vadd.f32 0.0, %v4206
  %4208 = vmatmul.f32.gmra.mxu0 %v4005
  %v4209 = vpop.f32.mrf.mxu0
  %v4210 = vadd.f32 0.0, %v4209
  %4211 = vmatmul.f32.gmra.mxu0 %v4008
  %v4212 = vpop.f32.mrf.mxu0
  %v4213 = vadd.f32 0.0, %v4212
  %4214 = vdwg.mxu0
  %4215 = vmatpush.msra.mxu0 0.0
  %4216 = vmatpush.msra.mxu0 0.0
  %4217 = vmatpush.msra.mxu0 0.0
  %4218 = vmatpush.msra.mxu0 0.0
  %4219 = vmatpush.msra.mxu0 0.0
  %4220 = vmatpush.msra.mxu0 0.0
  %4221 = vmatpush.msra.mxu0 0.0
  %4222 = vmatpush.msra.mxu0 0.0
  %4223 = vmatpush.msra.mxu0 %v3902
  %4224 = vmatpush.msra.mxu0 %v3899
  %4225 = vmatpush.msra.mxu0 %v3896
  %4226 = vmatpush.msra.mxu0 %v3893
  %4227 = vmatpush.msra.mxu0 %v3890
  %4228 = vmatpush.msra.mxu0 %v3887
  %4229 = vmatpush.msra.mxu0 %v3884
  %4230 = vmatpush.msra.mxu0 %v3881
  %4231 = vmatmul.f32.gmra.mxu0 %v3987
  %v4232 = vpop.f32.mrf.mxu0
  %v4233 = vadd.f32 0.0, %v4232
  %4234 = vmatmul.f32.gmra.mxu0 %v3990
  %v4235 = vpop.f32.mrf.mxu0
  %v4236 = vadd.f32 0.0, %v4235
  %4237 = vmatmul.f32.gmra.mxu0 %v3993
  %v4238 = vpop.f32.mrf.mxu0
  %v4239 = vadd.f32 0.0, %v4238
  %4240 = vmatmul.f32.gmra.mxu0 %v3996
  %v4241 = vpop.f32.mrf.mxu0
  %v4242 = vadd.f32 0.0, %v4241
  %4243 = vmatmul.f32.gmra.mxu0 %v3999
  %v4244 = vpop.f32.mrf.mxu0
  %v4245 = vadd.f32 0.0, %v4244
  %4246 = vmatmul.f32.gmra.mxu0 %v4002
  %v4247 = vpop.f32.mrf.mxu0
  %v4248 = vadd.f32 0.0, %v4247
  %4249 = vmatmul.f32.gmra.mxu0 %v4005
  %v4250 = vpop.f32.mrf.mxu0
  %v4251 = vadd.f32 0.0, %v4250
  %4252 = vmatmul.f32.gmra.mxu0 %v4008
  %v4253 = vpop.f32.mrf.mxu0
  %v4254 = vadd.f32 0.0, %v4253
  %4255 = vdwg.mxu0
  %4256 = vmatpush.msra.mxu0 0.0
  %4257 = vmatpush.msra.mxu0 0.0
  %4258 = vmatpush.msra.mxu0 0.0
  %4259 = vmatpush.msra.mxu0 0.0
  %4260 = vmatpush.msra.mxu0 0.0
  %4261 = vmatpush.msra.mxu0 0.0
  %4262 = vmatpush.msra.mxu0 0.0
  %4263 = vmatpush.msra.mxu0 0.0
  %4264 = vmatpush.msra.mxu0 %v3943
  %4265 = vmatpush.msra.mxu0 %v3940
  %4266 = vmatpush.msra.mxu0 %v3937
  %4267 = vmatpush.msra.mxu0 %v3934
  %4268 = vmatpush.msra.mxu0 %v3931
  %4269 = vmatpush.msra.mxu0 %v3928
  %4270 = vmatpush.msra.mxu0 %v3925
  %4271 = vmatpush.msra.mxu0 %v3922
  %4272 = vmatmul.f32.gmra.mxu0 %v3987
  %v4273 = vpop.f32.mrf.mxu0
  %v4274 = vadd.f32 0.0, %v4273
  %4275 = vmatmul.f32.gmra.mxu0 %v3990
  %v4276 = vpop.f32.mrf.mxu0
  %v4277 = vadd.f32 0.0, %v4276
  %4278 = vmatmul.f32.gmra.mxu0 %v3993
  %v4279 = vpop.f32.mrf.mxu0
  %v4280 = vadd.f32 0.0, %v4279
  %4281 = vmatmul.f32.gmra.mxu0 %v3996
  %v4282 = vpop.f32.mrf.mxu0
  %v4283 = vadd.f32 0.0, %v4282
  %4284 = vmatmul.f32.gmra.mxu0 %v3999
  %v4285 = vpop.f32.mrf.mxu0
  %v4286 = vadd.f32 0.0, %v4285
  %4287 = vmatmul.f32.gmra.mxu0 %v4002
  %v4288 = vpop.f32.mrf.mxu0
  %v4289 = vadd.f32 0.0, %v4288
  %4290 = vmatmul.f32.gmra.mxu0 %v4005
  %v4291 = vpop.f32.mrf.mxu0
  %v4292 = vadd.f32 0.0, %v4291
  %4293 = vmatmul.f32.gmra.mxu0 %v4008
  %v4294 = vpop.f32.mrf.mxu0
  %v4295 = vadd.f32 0.0, %v4294
  %4296 = vdwg.mxu0
  %4297 = vmatpush.msra.mxu0 0.0
  %4298 = vmatpush.msra.mxu0 0.0
  %4299 = vmatpush.msra.mxu0 0.0
  %4300 = vmatpush.msra.mxu0 0.0
  %4301 = vmatpush.msra.mxu0 0.0
  %4302 = vmatpush.msra.mxu0 0.0
  %4303 = vmatpush.msra.mxu0 0.0
  %4304 = vmatpush.msra.mxu0 0.0
  %4305 = vmatpush.msra.mxu0 %v3984
  %4306 = vmatpush.msra.mxu0 %v3981
  %4307 = vmatpush.msra.mxu0 %v3978
  %4308 = vmatpush.msra.mxu0 %v3975
  %4309 = vmatpush.msra.mxu0 %v3972
  %4310 = vmatpush.msra.mxu0 %v3969
  %4311 = vmatpush.msra.mxu0 %v3966
  %4312 = vmatpush.msra.mxu0 %v3963
  %4313 = vmatmul.f32.gmra.mxu0 %v3987
  %v4314 = vpop.f32.mrf.mxu0
  %v4315 = vadd.f32 0.0, %v4314
  %4316 = vmatmul.f32.gmra.mxu0 %v3990
  %v4317 = vpop.f32.mrf.mxu0
  %v4318 = vadd.f32 0.0, %v4317
  %4319 = vmatmul.f32.gmra.mxu0 %v3993
  %v4320 = vpop.f32.mrf.mxu0
  %v4321 = vadd.f32 0.0, %v4320
  %4322 = vmatmul.f32.gmra.mxu0 %v3996
  %v4323 = vpop.f32.mrf.mxu0
  %v4324 = vadd.f32 0.0, %v4323
  %4325 = vmatmul.f32.gmra.mxu0 %v3999
  %v4326 = vpop.f32.mrf.mxu0
  %v4327 = vadd.f32 0.0, %v4326
  %4328 = vmatmul.f32.gmra.mxu0 %v4002
  %v4329 = vpop.f32.mrf.mxu0
  %v4330 = vadd.f32 0.0, %v4329
  %4331 = vmatmul.f32.gmra.mxu0 %v4005
  %v4332 = vpop.f32.mrf.mxu0
  %v4333 = vadd.f32 0.0, %v4332
  %4334 = vmatmul.f32.gmra.mxu0 %v4008
  %v4335 = vpop.f32.mrf.mxu0
  %v4336 = vadd.f32 0.0, %v4335
  %4337 = vdwg.mxu0
  %v4338 = vmul.f32 %v3676, %v4028
  %v4339 = vmul.f32 %v3717, %v4069
  %v4340 = vmul.f32 %v3758, %v4110
  %v4341 = vmul.f32 %v3799, %v4151
  %v4342 = vmul.f32 %v3679, %v4031
  %v4343 = vmul.f32 %v3720, %v4072
  %v4344 = vmul.f32 %v3761, %v4113
  %v4345 = vmul.f32 %v3802, %v4154
  %v4346 = vmul.f32 %v3682, %v4034
  %v4347 = vmul.f32 %v3723, %v4075
  %v4348 = vmul.f32 %v3764, %v4116
  %v4349 = vmul.f32 %v3805, %v4157
  %v4350 = vmul.f32 %v3685, %v4037
  %v4351 = vmul.f32 %v3726, %v4078
  %v4352 = vmul.f32 %v3767, %v4119
  %v4353 = vmul.f32 %v3808, %v4160
  %v4354 = vmul.f32 %v3688, %v4040
  %v4355 = vmul.f32 %v3729, %v4081
  %v4356 = vmul.f32 %v3770, %v4122
  %v4357 = vmul.f32 %v3811, %v4163
  %v4358 = vmul.f32 %v3691, %v4043
  %v4359 = vmul.f32 %v3732, %v4084
  %v4360 = vmul.f32 %v3773, %v4125
  %v4361 = vmul.f32 %v3814, %v4166
  %v4362 = vmul.f32 %v3694, %v4046
  %v4363 = vmul.f32 %v3735, %v4087
  %v4364 = vmul.f32 %v3776, %v4128
  %v4365 = vmul.f32 %v3817, %v4169
  %v4366 = vmul.f32 %v3697, %v4049
  %v4367 = vmul.f32 %v3738, %v4090
  %v4368 = vmul.f32 %v3779, %v4131
  %v4369 = vmul.f32 %v3820, %v4172
  %v4370 = vadd.f32 %v4338, %v4342
  %v4371 = vadd.f32 %v4370, %v4346
  %v4372 = vadd.f32 %v4371, %v4350
  %v4373 = vadd.f32 %v4372, %v4354
  %v4374 = vadd.f32 %v4373, %v4358
  %v4375 = vadd.f32 %v4374, %v4362
  %v4376 = vadd.f32 %v4375, %v4366
  %v4377 = vrot.slane %v4376, 4
  %v4378 = vadd.f32 %v4376, %v4377
  %v4379 = vrot.slane %v4378, 2
  %v4380 = vadd.f32 %v4378, %v4379
  %v4381 = vrot.slane %v4380, 1
  %v4382 = vadd.f32 %v4380, %v4381
  %v4383 = vadd.f32 %v4339, %v4343
  %v4384 = vadd.f32 %v4383, %v4347
  %v4385 = vadd.f32 %v4384, %v4351
  %v4386 = vadd.f32 %v4385, %v4355
  %v4387 = vadd.f32 %v4386, %v4359
  %v4388 = vadd.f32 %v4387, %v4363
  %v4389 = vadd.f32 %v4388, %v4367
  %v4390 = vrot.slane %v4389, 4
  %v4391 = vadd.f32 %v4389, %v4390
  %v4392 = vrot.slane %v4391, 2
  %v4393 = vadd.f32 %v4391, %v4392
  %v4394 = vrot.slane %v4393, 1
  %v4395 = vadd.f32 %v4393, %v4394
  %v4396 = vadd.f32 %v4340, %v4344
  %v4397 = vadd.f32 %v4396, %v4348
  %v4398 = vadd.f32 %v4397, %v4352
  %v4399 = vadd.f32 %v4398, %v4356
  %v4400 = vadd.f32 %v4399, %v4360
  %v4401 = vadd.f32 %v4400, %v4364
  %v4402 = vadd.f32 %v4401, %v4368
  %v4403 = vrot.slane %v4402, 4
  %v4404 = vadd.f32 %v4402, %v4403
  %v4405 = vrot.slane %v4404, 2
  %v4406 = vadd.f32 %v4404, %v4405
  %v4407 = vrot.slane %v4406, 1
  %v4408 = vadd.f32 %v4406, %v4407
  %v4409 = vadd.f32 %v4341, %v4345
  %v4410 = vadd.f32 %v4409, %v4349
  %v4411 = vadd.f32 %v4410, %v4353
  %v4412 = vadd.f32 %v4411, %v4357
  %v4413 = vadd.f32 %v4412, %v4361
  %v4414 = vadd.f32 %v4413, %v4365
  %v4415 = vadd.f32 %v4414, %v4369
  %v4416 = vrot.slane %v4415, 4
  %v4417 = vadd.f32 %v4415, %v4416
  %v4418 = vrot.slane %v4417, 2
  %v4419 = vadd.f32 %v4417, %v4418
  %v4420 = vrot.slane %v4419, 1
  %v4421 = vadd.f32 %v4419, %v4420
  %v4422 = vmul.f32 %v4382, %v728
  %v4423 = vmul.f32 %v4395, %v728
  %v4424 = vmul.f32 %v4408, %v728
  %v4425 = vmul.f32 %v4421, %v728
  %v4426 = vsub.f32 %v3258, %v4422
  %v4427 = vsub.f32 %v3259, %v4423
  %v4428 = vsub.f32 %v3260, %v4424
  %v4429 = vsub.f32 %v3261, %v4425
  %v4430 = vmul.f32 %v3840, %v4192
  %v4431 = vmul.f32 %v3881, %v4233
  %v4432 = vmul.f32 %v3922, %v4274
  %v4433 = vmul.f32 %v3963, %v4315
  %v4434 = vmul.f32 %v3843, %v4195
  %v4435 = vmul.f32 %v3884, %v4236
  %v4436 = vmul.f32 %v3925, %v4277
  %v4437 = vmul.f32 %v3966, %v4318
  %v4438 = vmul.f32 %v3846, %v4198
  %v4439 = vmul.f32 %v3887, %v4239
  %v4440 = vmul.f32 %v3928, %v4280
  %v4441 = vmul.f32 %v3969, %v4321
  %v4442 = vmul.f32 %v3849, %v4201
  %v4443 = vmul.f32 %v3890, %v4242
  %v4444 = vmul.f32 %v3931, %v4283
  %v4445 = vmul.f32 %v3972, %v4324
  %v4446 = vmul.f32 %v3852, %v4204
  %v4447 = vmul.f32 %v3893, %v4245
  %v4448 = vmul.f32 %v3934, %v4286
  %v4449 = vmul.f32 %v3975, %v4327
  %v4450 = vmul.f32 %v3855, %v4207
  %v4451 = vmul.f32 %v3896, %v4248
  %v4452 = vmul.f32 %v3937, %v4289
  %v4453 = vmul.f32 %v3978, %v4330
  %v4454 = vmul.f32 %v3858, %v4210
  %v4455 = vmul.f32 %v3899, %v4251
  %v4456 = vmul.f32 %v3940, %v4292
  %v4457 = vmul.f32 %v3981, %v4333
  %v4458 = vmul.f32 %v3861, %v4213
  %v4459 = vmul.f32 %v3902, %v4254
  %v4460 = vmul.f32 %v3943, %v4295
  %v4461 = vmul.f32 %v3984, %v4336
  %v4462 = vadd.f32 %v4430, %v4434
  %v4463 = vadd.f32 %v4462, %v4438
  %v4464 = vadd.f32 %v4463, %v4442
  %v4465 = vadd.f32 %v4464, %v4446
  %v4466 = vadd.f32 %v4465, %v4450
  %v4467 = vadd.f32 %v4466, %v4454
  %v4468 = vadd.f32 %v4467, %v4458
  %v4469 = vrot.slane %v4468, 4
  %v4470 = vadd.f32 %v4468, %v4469
  %v4471 = vrot.slane %v4470, 2
  %v4472 = vadd.f32 %v4470, %v4471
  %v4473 = vrot.slane %v4472, 1
  %v4474 = vadd.f32 %v4472, %v4473
  %v4475 = vadd.f32 %v4431, %v4435
  %v4476 = vadd.f32 %v4475, %v4439
  %v4477 = vadd.f32 %v4476, %v4443
  %v4478 = vadd.f32 %v4477, %v4447
  %v4479 = vadd.f32 %v4478, %v4451
  %v4480 = vadd.f32 %v4479, %v4455
  %v4481 = vadd.f32 %v4480, %v4459
  %v4482 = vrot.slane %v4481, 4
  %v4483 = vadd.f32 %v4481, %v4482
  %v4484 = vrot.slane %v4483, 2
  %v4485 = vadd.f32 %v4483, %v4484
  %v4486 = vrot.slane %v4485, 1
  %v4487 = vadd.f32 %v4485, %v4486
  %v4488 = vadd.f32 %v4432, %v4436
  %v4489 = vadd.f32 %v4488, %v4440
  %v4490 = vadd.f32 %v4489, %v4444
  %v4491 = vadd.f32 %v4490, %v4448
  %v4492 = vadd.f32 %v4491, %v4452
  %v4493 = vadd.f32 %v4492, %v4456
  %v4494 = vadd.f32 %v4493, %v4460
  %v4495 = vrot.slane %v4494, 4
  %v4496 = vadd.f32 %v4494, %v4495
  %v4497 = vrot.slane %v4496, 2
  %v4498 = vadd.f32 %v4496, %v4497
  %v4499 = vrot.slane %v4498, 1
  %v4500 = vadd.f32 %v4498, %v4499
  %v4501 = vadd.f32 %v4433, %v4437
  %v4502 = vadd.f32 %v4501, %v4441
  %v4503 = vadd.f32 %v4502, %v4445
  %v4504 = vadd.f32 %v4503, %v4449
  %v4505 = vadd.f32 %v4504, %v4453
  %v4506 = vadd.f32 %v4505, %v4457
  %v4507 = vadd.f32 %v4506, %v4461
  %v4508 = vrot.slane %v4507, 4
  %v4509 = vadd.f32 %v4507, %v4508
  %v4510 = vrot.slane %v4509, 2
  %v4511 = vadd.f32 %v4509, %v4510
  %v4512 = vrot.slane %v4511, 1
  %v4513 = vadd.f32 %v4511, %v4512
  %v4514 = vmul.f32 %v4474, %v728
  %v4515 = vmul.f32 %v4487, %v728
  %v4516 = vmul.f32 %v4500, %v728
  %v4517 = vmul.f32 %v4513, %v728
  %v4518 = vsub.f32 %v3346, %v4514
  %v4519 = vsub.f32 %v3347, %v4515
  %v4520 = vsub.f32 %v3348, %v4516
  %v4521 = vsub.f32 %v3349, %v4517
  %v4526 = vrot.slane %v3051, 7
  %v4527 = vrot.slane %v3052, 6
  %v4528 = vrot.slane %v3053, 5
  %vm4529 = vcmask 1040384
  %v4530 = vsel %vm4529, %v3050, %v4526
  %vm4531 = vcmask 1042434
  %v4532 = vsel %vm4531, %v4527, %v4528
  %vm4533 = vcmask 1041408
  %v4534 = vsel %vm4533, %v4530, %v4532
  %v4536 = vlaneseq
  %vm4537 = vcmp.ge.s32.totalorder %v4536, 0
  %vm4538 = vcmp.lt.s32.totalorder %v4536, 512
  %vm4539 = vmand %vm4537, %vm4538
  %4540 = vst.msk [vmem:[%s7] ss:$2 sm:$0xf] %vm4539, %v4534
  %v4545 = vrot.slane %v3107, 7
  %v4546 = vrot.slane %v3108, 6
  %v4547 = vrot.slane %v3109, 5
  %v4548 = vsel %vm4529, %v3106, %v4545
  %v4549 = vsel %vm4531, %v4546, %v4547
  %v4550 = vsel %vm4533, %v4548, %v4549
  %s4552 = scalar_lea.vmem %s7, 8
  %4553 = vst.msk [vmem:[%s4552] ss:$2 sm:$0xf] %vm4539, %v4550
  %v4558 = vrot.slane %v4427, 7
  %v4559 = vrot.slane %v4428, 6
  %v4560 = vrot.slane %v4429, 5
  %v4561 = vsel %vm4529, %v4426, %v4558
  %v4562 = vsel %vm4531, %v4559, %v4560
  %v4563 = vsel %vm4533, %v4561, %v4562
  %s4565 = scalar_lea.vmem %s7, 1
  %4566 = vst.msk [vmem:[%s4565] ss:$2 sm:$0xf] %vm4539, %v4563
  %v4571 = vrot.slane %v4519, 7
  %v4572 = vrot.slane %v4520, 6
  %v4573 = vrot.slane %v4521, 5
  %v4574 = vsel %vm4529, %v4518, %v4571
  %v4575 = vsel %vm4531, %v4572, %v4573
  %v4576 = vsel %vm4533, %v4574, %v4575
  %s4578 = scalar_lea.vmem %s7, 9
  %4579 = vst.msk [vmem:[%s4578] ss:$2 sm:$0xf] %vm4539, %v4576
  %4580 = vxpose.xlu0.b32.start [1/16] %v3392, 128
  %4581 = vxpose.xlu0.b32.cont [2/16] %v3395, 128
  %4582 = vxpose.xlu0.b32.cont [3/16] %v3398, 128
  %4583 = vxpose.xlu0.b32.cont [4/16] %v3401, 128
  %4584 = vxpose.xlu0.b32.cont [5/16] %v3404, 128
  %4585 = vxpose.xlu0.b32.cont [6/16] %v3407, 128
  %4586 = vxpose.xlu0.b32.cont [7/16] %v3410, 128
  %4587 = vxpose.xlu0.b32.cont [8/16] %v3413, 128
  %4588 = vxpose.xlu0.b32.cont [9/16] 0.0, 128
  %4589 = vxpose.xlu0.b32.cont [10/16] 0.0, 128
  %4590 = vxpose.xlu0.b32.cont [11/16] 0.0, 128
  %4591 = vxpose.xlu0.b32.cont [12/16] 0.0, 128
  %4592 = vxpose.xlu0.b32.cont [13/16] 0.0, 128
  %4593 = vxpose.xlu0.b32.cont [14/16] 0.0, 128
  %4594 = vxpose.xlu0.b32.cont [15/16] 0.0, 128
  %4595 = vxpose.xlu0.b32.end [16/16] 0.0, 128
  %v4596 = vpop.trf.xlu0
  %v4597 = vpop.trf.xlu0
  %v4598 = vpop.trf.xlu0
  %v4599 = vpop.trf.xlu0
  %v4600 = vpop.trf.xlu0
  %v4601 = vpop.trf.xlu0
  %v4602 = vpop.trf.xlu0
  %v4603 = vpop.trf.xlu0
  %v4604 = vpop.trf.xlu0
  %v4605 = vpop.trf.xlu0
  %v4606 = vpop.trf.xlu0
  %v4607 = vpop.trf.xlu0
  %v4608 = vpop.trf.xlu0
  %v4609 = vpop.trf.xlu0
  %v4610 = vpop.trf.xlu0
  %v4611 = vpop.trf.xlu0
  %v4612 = vld [vmem:[%s5] sm:$0xff]
  %v4613 = vld [vmem:[%s5 + $0x8] sm:$0xff]
  %v4614 = vld [vmem:[%s5 + $0x10] sm:$0xff]
  %v4615 = vld [vmem:[%s5 + $0x18] sm:$0xff]
  %v4616 = vld [vmem:[%s5 + $0x20] sm:$0xff]
  %v4617 = vld [vmem:[%s5 + $0x28] sm:$0xff]
  %v4618 = vld [vmem:[%s5 + $0x30] sm:$0xff]
  %v4619 = vld [vmem:[%s5 + $0x38] sm:$0xff]
  %v4620 = vld [vmem:[%s6] sm:$0x1]
  %v4622 = vperm.slane %v4620, 0
  %v4625 = vsel %vm697, %v4596, 0
  %v4628 = vsel %vm697, %v4597, 0
  %v4631 = vsel %vm697, %v4598, 0
  %v4634 = vsel %vm697, %v4599, 0
  %v4637 = vsel %vm697, %v4600, 0
  %v4640 = vsel %vm697, %v4601, 0
  %v4643 = vsel %vm697, %v4602, 0
  %v4646 = vsel %vm697, %v4603, 0
  %4648 = vmatpush.msra.mxu0 0.0
  %4649 = vmatpush.msra.mxu0 0.0
  %4650 = vmatpush.msra.mxu0 0.0
  %4651 = vmatpush.msra.mxu0 0.0
  %4652 = vmatpush.msra.mxu0 0.0
  %4653 = vmatpush.msra.mxu0 0.0
  %4654 = vmatpush.msra.mxu0 0.0
  %4655 = vmatpush.msra.mxu0 0.0
  %4656 = vmatpush.msra.mxu0 %v4619
  %4657 = vmatpush.msra.mxu0 %v4618
  %4658 = vmatpush.msra.mxu0 %v4617
  %4659 = vmatpush.msra.mxu0 %v4616
  %4660 = vmatpush.msra.mxu0 %v4615
  %4661 = vmatpush.msra.mxu0 %v4614
  %4662 = vmatpush.msra.mxu0 %v4613
  %4663 = vmatpush.msra.mxu0 %v4612
  %4664 = vmatmul.f32.gmra.mxu0 %v4625
  %v4665 = vpop.f32.mrf.mxu0
  %v4666 = vadd.f32 %v4622, %v4665
  %4667 = vmatmul.f32.gmra.mxu0 %v4628
  %v4668 = vpop.f32.mrf.mxu0
  %v4669 = vadd.f32 %v4622, %v4668
  %4670 = vmatmul.f32.gmra.mxu0 %v4631
  %v4671 = vpop.f32.mrf.mxu0
  %v4672 = vadd.f32 %v4622, %v4671
  %4673 = vmatmul.f32.gmra.mxu0 %v4634
  %v4674 = vpop.f32.mrf.mxu0
  %v4675 = vadd.f32 %v4622, %v4674
  %4676 = vmatmul.f32.gmra.mxu0 %v4637
  %v4677 = vpop.f32.mrf.mxu0
  %v4678 = vadd.f32 %v4622, %v4677
  %4679 = vmatmul.f32.gmra.mxu0 %v4640
  %v4680 = vpop.f32.mrf.mxu0
  %v4681 = vadd.f32 %v4622, %v4680
  %4682 = vmatmul.f32.gmra.mxu0 %v4643
  %v4683 = vpop.f32.mrf.mxu0
  %v4684 = vadd.f32 %v4622, %v4683
  %4685 = vmatmul.f32.gmra.mxu0 %v4646
  %v4686 = vpop.f32.mrf.mxu0
  %v4687 = vadd.f32 %v4622, %v4686
  %4688 = vdwg.mxu0
  %4689 = vst [vmem:[%s8] sm:$0xff] %v4666
  %4690 = vst [vmem:[%s8 + $0x8] sm:$0xff] %v4669
  %4691 = vst [vmem:[%s8 + $0x10] sm:$0xff] %v4672
  %4692 = vst [vmem:[%s8 + $0x18] sm:$0xff] %v4675
  %4693 = vst [vmem:[%s8 + $0x20] sm:$0xff] %v4678
  %4694 = vst [vmem:[%s8 + $0x28] sm:$0xff] %v4681
  %4695 = vst [vmem:[%s8 + $0x30] sm:$0xff] %v4684
  %4696 = vst [vmem:[%s8 + $0x38] sm:$0xff] %v4687
  // Predicated region
  $region30: #{cqt_mgd_forward.1} parent=0 // pred_check
    _
  $region31: #{cqt_mgd_forward.1} parent=0 // pred_check_branch
    %4698 = sbr.rel (0) target = $region33
  $region32: #{cqt_mgd_forward.1} parent=0 // pred_region
    _
  $region33: #{cqt_mgd_forward.1} parent=0 // pred_fallthru
    _
  // Predicated region
  $region34: #{cqt_mgd_forward.1} parent=0 // pred_check
    _
  $region35: #{cqt_mgd_forward.1} parent=0 // pred_check_branch
    %4700 = sbr.rel (0) target = $region37
  $region36: #{cqt_mgd_forward.1} parent=0 // pred_region
    _
  $region37: #{cqt_mgd_forward.1} parent=0 // pred_fallthru
    _
  // Predicated region
  $region38: #{cqt_mgd_forward.1} parent=0 // pred_check
    _
  $region39: #{cqt_mgd_forward.1} parent=0 // pred_check_branch
    %4702 = sbr.rel (0) target = $region41
  $region40: #{cqt_mgd_forward.1} parent=0 // pred_region
    _
  $region41: #{cqt_mgd_forward.1} parent=0 // pred_fallthru
    _
  // Predicated region
  $region42: #{cqt_mgd_forward.1} parent=0 // pred_check
    _
  $region43: #{cqt_mgd_forward.1} parent=0 // pred_check_branch
    %4704 = sbr.rel (0) target = $region45
  $region44: #{cqt_mgd_forward.1} parent=0 // pred_region
    _
  $region45: #{cqt_mgd_forward.1} parent=0 // pred_fallthru
    _

</llo_original>
